<compile_context>
chip_gen: v6e
topology: v6e:2x2x1
jax: 0.10.0
libtpu: 0.0.40
codegen_flags: <defaults>
</compile_context>

<pallas_src>
import jax
import jax.numpy as jnp
from jax import lax
from jax.experimental import pallas as pl
from jax.experimental.pallas import tpu as pltpu


# -----------------------------------------------------------------------------
# Fused kernel: whole forward pass for one batch tile (grid axis = batch tiles).
# Weight layout (pre-arranged in the wrapper, gate order [i|f|o|g]):
#   x        : (T, BT, D)   time-major, batch tile of BT rows
#   w_ih_bi  : (D, 8H)      [fwd gates | bwd gates]
#   b_bi     : (1, 8H)      b_ih + b_hh for both directions
#   w_hh_f/b : (H, 4H)      recurrent weights
#   w_uni    : (3H, 4H)     [w_uf ; w_ub ; w_hh_u]  (uni layer, fused)
#   b_u      : (1, 4H)
#   w1,b1    : (H, 384), (1, 384)    head Linear(H,300) zero-padded to 384
#   w2,b2    : (384, C), (1, C)
# -----------------------------------------------------------------------------
def _fused_lstm_kernel(x_ref, wih_bi_ref, whh_f_ref, whh_b_ref, b_bi_ref,
                       w_uni_ref, b_u_ref, w1_ref, b1_ref, w2_ref, b2_ref,
                       out_ref, gx_scr):
    H = whh_f_ref.shape[0]
    T = x_ref.shape[0]
    BT = x_ref.shape[1]

    # ---- Hoisted input projection for BOTH bi directions (off the critical
    #      path; per-timestep matmuls into VMEM scratch).
    wih_bi = wih_bi_ref[...]
    b_bi_b = jnp.broadcast_to(b_bi_ref[...], (BT, 8 * H))
    for t in range(T):
        gx_scr[t * BT:(t + 1) * BT, :] = (
            jnp.dot(x_ref[t], wih_bi, preferred_element_type=jnp.float32)
            + b_bi_b)

    def cell(gates, c):
        # gate columns are ordered [i | f | o | g]
        sfo = jax.nn.sigmoid(gates[:, :3 * H])
        i = sfo[:, 0 * H:1 * H]
        f = sfo[:, 1 * H:2 * H]
        o = sfo[:, 2 * H:3 * H]
        g = jnp.tanh(gates[:, 3 * H:])
        c_new = f * c + i * g
        h_new = o * jnp.tanh(c_new)
        return h_new, c_new

    zeros = jnp.zeros((BT, H), jnp.float32)

    # ---- Interleaved independent fwd / bwd recurrences (hoisted weights,
    #      hidden sequences kept in registers).
    whh_f = whh_f_ref[...]
    whh_b = whh_b_ref[...]
    hf, cf = zeros, zeros
    hb, cb = zeros, zeros
    hf_seq = [None] * T
    hb_seq = [None] * T
    for t in range(T):
        rb = T - 1 - t
        gx_f = gx_scr[t * BT:(t + 1) * BT, 0:4 * H]
        gx_b = gx_scr[rb * BT:(rb + 1) * BT, 4 * H:8 * H]
        gates_f = gx_f + jnp.dot(hf, whh_f, preferred_element_type=jnp.float32)
        gates_b = gx_b + jnp.dot(hb, whh_b, preferred_element_type=jnp.float32)
        hf, cf = cell(gates_f, cf)
        hb, cb = cell(gates_b, cb)
        hf_seq[t] = hf
        hb_seq[rb] = hb

    # ---- Unidirectional layer: one fused (BT,3H)@(3H,4H) matmul per step.
    w_uni = w_uni_ref[...]
    b_u_b = jnp.broadcast_to(b_u_ref[...], (BT, 4 * H))
    hu, cu = zeros, zeros
    for t in range(T):
        hcat = jnp.concatenate([hf_seq[t], hb_seq[t], hu], axis=-1)   # (BT, 3H)
        gates_u = (jnp.dot(hcat, w_uni, preferred_element_type=jnp.float32)
                   + b_u_b)
        hu, cu = cell(gates_u, cu)

    # ---- Classification head on the last uni hidden state (stays in VMEM).
    h1 = jnp.dot(hu, w1_ref[...], preferred_element_type=jnp.float32) + b1_ref[...]
    alpha = 1.6732632423543772
    scale = 1.0507009873554805
    h1 = scale * jnp.where(h1 > 0, h1, alpha * (jnp.exp(h1) - 1.0))   # SELU
    # TODO(synk): nn.Dropout(0.5) is identity in eval mode; training-mode RNG
    # dropout (pltpu.prng_seed / prng_random_bits) not implemented.
    logits = jnp.dot(h1, w2_ref[...], preferred_element_type=jnp.float32) + b2_ref[...]
    if out_ref.shape[1] == 1:
        out_ref[...] = jax.nn.sigmoid(logits).astype(out_ref.dtype)
    else:
        out_ref[...] = jax.nn.softmax(logits, axis=-1).astype(out_ref.dtype)


# -----------------------------------------------------------------------------
# Wrapper: layout plumbing (gate reorder, weight stacking, padding, grid).
# -----------------------------------------------------------------------------
def _reorder_ifog(w):
    """Permute gate columns from PyTorch [i|f|g|o] to kernel [i|f|o|g]."""
    H = w.shape[-1] // 4
    return jnp.concatenate([w[..., :2 * H], w[..., 3 * H:], w[..., 2 * H:3 * H]],
                           axis=-1)


def _prep_kernel_weights(params):
    wf, whf, bf = params["bi_fwd"]
    wb, whb, bb = params["bi_bwd"]
    wu, whu, bu = params["uni"]
    w1, b1, w2, b2 = params["head"]
    H = whf.shape[0]

    w_ih_bi = jnp.concatenate([_reorder_ifog(wf), _reorder_ifog(wb)], axis=-1)  # (D, 8H)
    b_bi = jnp.concatenate([_reorder_ifog(bf), _reorder_ifog(bb)], axis=-1)      # (1, 8H)
    w_hh_f = _reorder_ifog(whf)
    w_hh_b = _reorder_ifog(whb)

    wu_r = _reorder_ifog(wu)                       # (2H, 4H)
    w_uni = jnp.concatenate([wu_r[:H],             # multiplies h_fwd
                             wu_r[H:],             # multiplies h_bwd
                             _reorder_ifog(whu)],  # multiplies h_uni
                            axis=0)                # (3H, 4H)
    b_u = _reorder_ifog(bu)

    # Head: pad the 300-wide hidden to a full lane multiple (384).
    F = w1.shape[1]
    Fp = ((F + 127) // 128) * 128
    w1p = jnp.pad(w1, ((0, 0), (0, Fp - F)))
    b1p = jnp.pad(b1, ((0, 0), (0, Fp - F)))
    w2p = jnp.pad(w2, ((0, Fp - F), (0, 0)))

    return (w_ih_bi, w_hh_f, w_hh_b, b_bi, w_uni, b_u, w1p, b1p, w2p, b2)


def lstm_model_forward(x, params):
    """x: (B, T, D) batch-first, like the PyTorch module."""
    B, T, D = x.shape
    H = params["bi_fwd"][1].shape[0]
    C = params["head"][2].shape[1]

    # Batch tiling: small batches pad only to a sublane group (8); large
    # batches are split into <=256-row tiles sharded across cores.
    BT_MAX = 256
    Bp8 = ((B + 7) // 8) * 8
    if Bp8 <= BT_MAX:
        BT, Bp = Bp8, Bp8
    else:
        BT = BT_MAX
        Bp = ((B + BT - 1) // BT) * BT
    nb = Bp // BT

    x_tm = jnp.transpose(x, (1, 0, 2)).astype(jnp.float32)    # (T, B, D)
    x_tm = jnp.pad(x_tm, ((0, 0), (0, Bp - B), (0, 0)))        # (T, Bp, D)

    weights = _prep_kernel_weights(params)
    w_specs = [pl.BlockSpec(w.shape, lambda b: (0, 0)) for w in weights]

    out = pl.pallas_call(
        _fused_lstm_kernel,
        out_shape=jax.ShapeDtypeStruct((Bp, C), jnp.float32),
        grid=(nb,),
        in_specs=[pl.BlockSpec((T, BT, D), lambda b: (0, b, 0))] + w_specs,
        out_specs=pl.BlockSpec((BT, C), lambda b: (b, 0)),
        scratch_shapes=[
            pltpu.VMEM((T * BT, 8 * H), jnp.float32),   # hoisted bi input projections
        ],
        compiler_params=pltpu.CompilerParams(
            dimension_semantics=("parallel",)),
    )(x_tm, *weights)
    return out[:B]


# -----------------------------------------------------------------------------
# Pure-JAX reference (lax.scan, PyTorch gate order [i|f|g|o]) for verification.
# -----------------------------------------------------------------------------
def _lstm_ref_dir(x_tm, w_ih_t, w_hh_t, b, reverse):
    T, B, _ = x_tm.shape
    H = w_hh_t.shape[0]
    xs = x_tm[::-1] if reverse else x_tm

    def step(carry, x_t):
        h, c = carry
        gates = x_t @ w_ih_t + h @ w_hh_t + b
        i = jax.nn.sigmoid(gates[:, :H])
        f = jax.nn.sigmoid(gates[:, H:2 * H])
        g = jnp.tanh(gates[:, 2 * H:3 * H])
        o = jax.nn.sigmoid(gates[:, 3 * H:])
        c = f * c + i * g
        h = o * jnp.tanh(c)
        return (h, c), h

    init = (jnp.zeros((B, H), jnp.float32), jnp.zeros((B, H), jnp.float32))
    _, hs = lax.scan(step, init, xs)
    return hs[::-1] if reverse else hs


def lstm_model_ref(x, params):
    x_tm = jnp.transpose(x, (1, 0, 2))
    h_fwd = _lstm_ref_dir(x_tm, *params["bi_fwd"], reverse=False)
    h_bwd = _lstm_ref_dir(x_tm, *params["bi_bwd"], reverse=True)
    h_bi = jnp.concatenate([h_fwd, h_bwd], axis=-1)
    h_uni = _lstm_ref_dir(h_bi, *params["uni"], reverse=False)
    h_last = h_uni[-1]
    w1, b1, w2, b2 = params["head"]
    h = h_last @ w1 + b1
    alpha, scale = 1.6732632423543772, 1.0507009873554805
    h = scale * jnp.where(h > 0, h, alpha * (jnp.exp(h) - 1.0))
    logits = h @ w2 + b2
    if logits.shape[1] == 1:
        return jax.nn.sigmoid(logits)
    return jax.nn.softmax(logits, axis=-1)


# -----------------------------------------------------------------------------
# Deterministic parameter init (PyTorch-style U(-1/sqrt(H), 1/sqrt(H))).
# Stored in PyTorch gate order [i|f|g|o]; the kernel wrapper reorders.
# -----------------------------------------------------------------------------
def init_params(key, input_size, hidden_size, num_classes):
    H = hidden_size
    k = 1.0 / jnp.sqrt(jnp.float32(H))
    keys = jax.random.split(key, 16)

    def u(kk, shape, bound):
        return jax.random.uniform(kk, shape, jnp.float32, -bound, bound)

    def lstm_params(ks, in_dim):
        w_ih_t = u(ks[0], (in_dim, 4 * H), k)      # transposed vs PyTorch (4H, in)
        w_hh_t = u(ks[1], (H, 4 * H), k)
        b = u(ks[2], (1, 4 * H), k) + u(ks[3], (1, 4 * H), k)   # b_ih + b_hh
        return (w_ih_t, w_hh_t, b)

    params = {
        "bi_fwd": lstm_params(keys[0:4], input_size),
        "bi_bwd": lstm_params(keys[4:8], input_size),
        "uni": lstm_params(keys[8:12], 2 * H),
        "head": (
            u(keys[12], (H, 300), 1.0 / jnp.sqrt(jnp.float32(H))),
            u(keys[13], (1, 300), 1.0 / jnp.sqrt(jnp.float32(H))),
            u(keys[14], (300, num_classes), 1.0 / jnp.sqrt(jnp.float32(300))),
            u(keys[15], (1, num_classes), 1.0 / jnp.sqrt(jnp.float32(300))),
        ),
    }
    return params


if __name__ == "__main__":
    B, T, D, H, C = 2, 8, 4, 32, 1   # batch, seq, input_size, hidden_size, num_classes

    root = jax.random.PRNGKey(0)
    k_params, k_x = jax.random.split(root)
    params = init_params(k_params, D, H, C)
    x = jax.random.normal(k_x, (B, T, D), jnp.float32)   # batch-first (B, T, D)

    out = jax.jit(lstm_model_forward)(x, params)
    out = jax.block_until_ready(out)

    ref = jax.block_until_ready(lstm_model_ref(x, params))
    assert out.shape == (B, C)
    assert jnp.allclose(out, ref, rtol=1e-3, atol=1e-4), (out, ref)

    print("KERNEL_OK")
</pallas_src>

<mosaic_0001>
module attributes {stable_mosaic.version = 11 : i64} {
  func.func @_fused_lstm_kernel(%arg0: i32, %arg1: memref<8x8x4xf32, #tpu.memory_space<vmem>>, %arg2: memref<4x256xf32, #tpu.memory_space<vmem>>, %arg3: memref<32x128xf32, #tpu.memory_space<vmem>>, %arg4: memref<32x128xf32, #tpu.memory_space<vmem>>, %arg5: memref<1x256xf32, #tpu.memory_space<vmem>>, %arg6: memref<96x128xf32, #tpu.memory_space<vmem>>, %arg7: memref<1x128xf32, #tpu.memory_space<vmem>>, %arg8: memref<32x384xf32, #tpu.memory_space<vmem>>, %arg9: memref<1x384xf32, #tpu.memory_space<vmem>>, %arg10: memref<384x1xf32, #tpu.memory_space<vmem>>, %arg11: memref<1x1xf32, #tpu.memory_space<vmem>>, %arg12: memref<8x1xf32, #tpu.memory_space<vmem>>, %arg13: memref<64x256xf32, #tpu.memory_space<vmem>>) attributes {dimension_semantics = [#tpu.dimension_semantics<parallel>], iteration_bounds = array<i64: 1>, scalar_prefetch = 0 : i64, scratch_operands = 1 : i64, tpu.core_type = #tpu.core_type<tc>, window_params = [{transform_indices = @transform_0, window_bounds = array<i64: 8, 8, 4>}, {pipeline_mode = #tpu.pipeline_mode<synchronous>, transform_indices = @transform_1, window_bounds = array<i64: 4, 256>}, {pipeline_mode = #tpu.pipeline_mode<synchronous>, transform_indices = @transform_2, window_bounds = array<i64: 32, 128>}, {pipeline_mode = #tpu.pipeline_mode<synchronous>, transform_indices = @transform_3, window_bounds = array<i64: 32, 128>}, {pipeline_mode = #tpu.pipeline_mode<synchronous>, transform_indices = @transform_4, window_bounds = array<i64: 1, 256>}, {pipeline_mode = #tpu.pipeline_mode<synchronous>, transform_indices = @transform_5, window_bounds = array<i64: 96, 128>}, {pipeline_mode = #tpu.pipeline_mode<synchronous>, transform_indices = @transform_6, window_bounds = array<i64: 1, 128>}, {pipeline_mode = #tpu.pipeline_mode<synchronous>, transform_indices = @transform_7, window_bounds = array<i64: 32, 384>}, {pipeline_mode = #tpu.pipeline_mode<synchronous>, transform_indices = @transform_8, window_bounds = array<i64: 1, 384>}, {pipeline_mode = #tpu.pipeline_mode<synchronous>, transform_indices = @transform_9, window_bounds = array<i64: 384, 1>}, {pipeline_mode = #tpu.pipeline_mode<synchronous>, transform_indices = @transform_10, window_bounds = array<i64: 1, 1>}, {transform_indices = @transform_11, window_bounds = array<i64: 8, 1>}]} {
    %c0 = arith.constant 0 : index
    %c0_0 = arith.constant 0 : index
    %0 = vector.load %arg2[%c0, %c0_0] : memref<4x256xf32, #tpu.memory_space<vmem>>, vector<4x256xf32>
    %c0_1 = arith.constant 0 : index
    %c0_2 = arith.constant 0 : index
    %1 = vector.load %arg5[%c0_1, %c0_2] : memref<1x256xf32, #tpu.memory_space<vmem>>, vector<1x256xf32>
    %2 = vector.shape_cast %1 : vector<1x256xf32> to vector<1x256xf32>
    %3 = vector.broadcast %2 : vector<1x256xf32> to vector<8x256xf32>
    %c0_3 = arith.constant 0 : index
    %c0_4 = arith.constant 0 : index
    %c0_5 = arith.constant 0 : index
    %4 = vector.load %arg1[%c0_3, %c0_4, %c0_5] : memref<8x8x4xf32, #tpu.memory_space<vmem>>, vector<1x8x4xf32>
    %5 = vector.shape_cast %4 : vector<1x8x4xf32> to vector<8x4xf32>
    %cst = arith.constant dense<0.000000e+00> : vector<8x256xf32>
    %6 = tpu.matmul %5, %0, %cst {dimension_numbers = #tpu.dot_dimension_numbers<[1], [0], [0], [1], [0, 0, 1, 1], [], []>} : vector<8x4xf32>, vector<4x256xf32>, vector<8x256xf32> -> vector<8x256xf32>
    %7 = arith.addf %6, %3 : vector<8x256xf32>
    %c0_6 = arith.constant 0 : index
    %c0_7 = arith.constant 0 : index
    %8 = vector.load %arg13[%c0_6, %c0_7] : memref<64x256xf32, #tpu.memory_space<vmem>>, vector<8x256xf32>
    tpu.vector_store %arg13[%c0_6, %c0_7], %7 {strides = array<i32>} : memref<64x256xf32, #tpu.memory_space<vmem>>, vector<8x256xf32>,
    %c1 = arith.constant 1 : index
    %c0_8 = arith.constant 0 : index
    %c0_9 = arith.constant 0 : index
    %9 = vector.load %arg1[%c1, %c0_8, %c0_9] : memref<8x8x4xf32, #tpu.memory_space<vmem>>, vector<1x8x4xf32>
    %10 = vector.shape_cast %9 : vector<1x8x4xf32> to vector<8x4xf32>
    %cst_10 = arith.constant dense<0.000000e+00> : vector<8x256xf32>
    %11 = tpu.matmul %10, %0, %cst_10 {dimension_numbers = #tpu.dot_dimension_numbers<[1], [0], [0], [1], [0, 0, 1, 1], [], []>} : vector<8x4xf32>, vector<4x256xf32>, vector<8x256xf32> -> vector<8x256xf32>
    %12 = arith.addf %11, %3 : vector<8x256xf32>
    %c8 = arith.constant 8 : index
    %c0_11 = arith.constant 0 : index
    %13 = vector.load %arg13[%c8, %c0_11] : memref<64x256xf32, #tpu.memory_space<vmem>>, vector<8x256xf32>
    tpu.vector_store %arg13[%c8, %c0_11], %12 {strides = array<i32>} : memref<64x256xf32, #tpu.memory_space<vmem>>, vector<8x256xf32>,
    %c2 = arith.constant 2 : index
    %c0_12 = arith.constant 0 : index
    %c0_13 = arith.constant 0 : index
    %14 = vector.load %arg1[%c2, %c0_12, %c0_13] : memref<8x8x4xf32, #tpu.memory_space<vmem>>, vector<1x8x4xf32>
    %15 = vector.shape_cast %14 : vector<1x8x4xf32> to vector<8x4xf32>
    %cst_14 = arith.constant dense<0.000000e+00> : vector<8x256xf32>
    %16 = tpu.matmul %15, %0, %cst_14 {dimension_numbers = #tpu.dot_dimension_numbers<[1], [0], [0], [1], [0, 0, 1, 1], [], []>} : vector<8x4xf32>, vector<4x256xf32>, vector<8x256xf32> -> vector<8x256xf32>
    %17 = arith.addf %16, %3 : vector<8x256xf32>
    %c16 = arith.constant 16 : index
    %c0_15 = arith.constant 0 : index
    %18 = vector.load %arg13[%c16, %c0_15] : memref<64x256xf32, #tpu.memory_space<vmem>>, vector<8x256xf32>
    tpu.vector_store %arg13[%c16, %c0_15], %17 {strides = array<i32>} : memref<64x256xf32, #tpu.memory_space<vmem>>, vector<8x256xf32>,
    %c3 = arith.constant 3 : index
    %c0_16 = arith.constant 0 : index
    %c0_17 = arith.constant 0 : index
    %19 = vector.load %arg1[%c3, %c0_16, %c0_17] : memref<8x8x4xf32, #tpu.memory_space<vmem>>, vector<1x8x4xf32>
    %20 = vector.shape_cast %19 : vector<1x8x4xf32> to vector<8x4xf32>
    %cst_18 = arith.constant dense<0.000000e+00> : vector<8x256xf32>
    %21 = tpu.matmul %20, %0, %cst_18 {dimension_numbers = #tpu.dot_dimension_numbers<[1], [0], [0], [1], [0, 0, 1, 1], [], []>} : vector<8x4xf32>, vector<4x256xf32>, vector<8x256xf32> -> vector<8x256xf32>
    %22 = arith.addf %21, %3 : vector<8x256xf32>
    %c24 = arith.constant 24 : index
    %c0_19 = arith.constant 0 : index
    %23 = vector.load %arg13[%c24, %c0_19] : memref<64x256xf32, #tpu.memory_space<vmem>>, vector<8x256xf32>
    tpu.vector_store %arg13[%c24, %c0_19], %22 {strides = array<i32>} : memref<64x256xf32, #tpu.memory_space<vmem>>, vector<8x256xf32>,
    %c4 = arith.constant 4 : index
    %c0_20 = arith.constant 0 : index
    %c0_21 = arith.constant 0 : index
    %24 = vector.load %arg1[%c4, %c0_20, %c0_21] : memref<8x8x4xf32, #tpu.memory_space<vmem>>, vector<1x8x4xf32>
    %25 = vector.shape_cast %24 : vector<1x8x4xf32> to vector<8x4xf32>
    %cst_22 = arith.constant dense<0.000000e+00> : vector<8x256xf32>
    %26 = tpu.matmul %25, %0, %cst_22 {dimension_numbers = #tpu.dot_dimension_numbers<[1], [0], [0], [1], [0, 0, 1, 1], [], []>} : vector<8x4xf32>, vector<4x256xf32>, vector<8x256xf32> -> vector<8x256xf32>
    %27 = arith.addf %26, %3 : vector<8x256xf32>
    %c32 = arith.constant 32 : index
    %c0_23 = arith.constant 0 : index
    %28 = vector.load %arg13[%c32, %c0_23] : memref<64x256xf32, #tpu.memory_space<vmem>>, vector<8x256xf32>
    tpu.vector_store %arg13[%c32, %c0_23], %27 {strides = array<i32>} : memref<64x256xf32, #tpu.memory_space<vmem>>, vector<8x256xf32>,
    %c5 = arith.constant 5 : index
    %c0_24 = arith.constant 0 : index
    %c0_25 = arith.constant 0 : index
    %29 = vector.load %arg1[%c5, %c0_24, %c0_25] : memref<8x8x4xf32, #tpu.memory_space<vmem>>, vector<1x8x4xf32>
    %30 = vector.shape_cast %29 : vector<1x8x4xf32> to vector<8x4xf32>
    %cst_26 = arith.constant dense<0.000000e+00> : vector<8x256xf32>
    %31 = tpu.matmul %30, %0, %cst_26 {dimension_numbers = #tpu.dot_dimension_numbers<[1], [0], [0], [1], [0, 0, 1, 1], [], []>} : vector<8x4xf32>, vector<4x256xf32>, vector<8x256xf32> -> vector<8x256xf32>
    %32 = arith.addf %31, %3 : vector<8x256xf32>
    %c40 = arith.constant 40 : index
    %c0_27 = arith.constant 0 : index
    %33 = vector.load %arg13[%c40, %c0_27] : memref<64x256xf32, #tpu.memory_space<vmem>>, vector<8x256xf32>
    tpu.vector_store %arg13[%c40, %c0_27], %32 {strides = array<i32>} : memref<64x256xf32, #tpu.memory_space<vmem>>, vector<8x256xf32>,
    %c6 = arith.constant 6 : index
    %c0_28 = arith.constant 0 : index
    %c0_29 = arith.constant 0 : index
    %34 = vector.load %arg1[%c6, %c0_28, %c0_29] : memref<8x8x4xf32, #tpu.memory_space<vmem>>, vector<1x8x4xf32>
    %35 = vector.shape_cast %34 : vector<1x8x4xf32> to vector<8x4xf32>
    %cst_30 = arith.constant dense<0.000000e+00> : vector<8x256xf32>
    %36 = tpu.matmul %35, %0, %cst_30 {dimension_numbers = #tpu.dot_dimension_numbers<[1], [0], [0], [1], [0, 0, 1, 1], [], []>} : vector<8x4xf32>, vector<4x256xf32>, vector<8x256xf32> -> vector<8x256xf32>
    %37 = arith.addf %36, %3 : vector<8x256xf32>
    %c48 = arith.constant 48 : index
    %c0_31 = arith.constant 0 : index
    %38 = vector.load %arg13[%c48, %c0_31] : memref<64x256xf32, #tpu.memory_space<vmem>>, vector<8x256xf32>
    tpu.vector_store %arg13[%c48, %c0_31], %37 {strides = array<i32>} : memref<64x256xf32, #tpu.memory_space<vmem>>, vector<8x256xf32>,
    %c7 = arith.constant 7 : index
    %c0_32 = arith.constant 0 : index
    %c0_33 = arith.constant 0 : index
    %39 = vector.load %arg1[%c7, %c0_32, %c0_33] : memref<8x8x4xf32, #tpu.memory_space<vmem>>, vector<1x8x4xf32>
    %40 = vector.shape_cast %39 : vector<1x8x4xf32> to vector<8x4xf32>
    %cst_34 = arith.constant dense<0.000000e+00> : vector<8x256xf32>
    %41 = tpu.matmul %40, %0, %cst_34 {dimension_numbers = #tpu.dot_dimension_numbers<[1], [0], [0], [1], [0, 0, 1, 1], [], []>} : vector<8x4xf32>, vector<4x256xf32>, vector<8x256xf32> -> vector<8x256xf32>
    %42 = arith.addf %41, %3 : vector<8x256xf32>
    %c56 = arith.constant 56 : index
    %c0_35 = arith.constant 0 : index
    %43 = vector.load %arg13[%c56, %c0_35] : memref<64x256xf32, #tpu.memory_space<vmem>>, vector<8x256xf32>
    tpu.vector_store %arg13[%c56, %c0_35], %42 {strides = array<i32>} : memref<64x256xf32, #tpu.memory_space<vmem>>, vector<8x256xf32>,
    %cst_36 = arith.constant 0.000000e+00 : f32
    %44 = vector.broadcast %cst_36 : f32 to vector<8x32xf32>
    %c0_37 = arith.constant 0 : index
    %c0_38 = arith.constant 0 : index
    %45 = vector.load %arg3[%c0_37, %c0_38] : memref<32x128xf32, #tpu.memory_space<vmem>>, vector<32x128xf32>
    %c0_39 = arith.constant 0 : index
    %c0_40 = arith.constant 0 : index
    %46 = vector.load %arg4[%c0_39, %c0_40] : memref<32x128xf32, #tpu.memory_space<vmem>>, vector<32x128xf32>
    %c0_41 = arith.constant 0 : index
    %c0_42 = arith.constant 0 : index
    %47 = vector.load %arg13[%c0_41, %c0_42] : memref<64x256xf32, #tpu.memory_space<vmem>>, vector<8x128xf32>
    %c56_43 = arith.constant 56 : index
    %c128 = arith.constant 128 : index
    %48 = vector.load %arg13[%c56_43, %c128] : memref<64x256xf32, #tpu.memory_space<vmem>>, vector<8x128xf32>
    %cst_44 = arith.constant dense<0.000000e+00> : vector<8x128xf32>
    %49 = tpu.matmul %44, %45, %cst_44 {dimension_numbers = #tpu.dot_dimension_numbers<[1], [0], [0], [1], [0, 0, 1, 1], [], []>} : vector<8x32xf32>, vector<32x128xf32>, vector<8x128xf32> -> vector<8x128xf32>
    %50 = arith.addf %47, %49 : vector<8x128xf32>
    %cst_45 = arith.constant dense<0.000000e+00> : vector<8x128xf32>
    %51 = tpu.matmul %44, %46, %cst_45 {dimension_numbers = #tpu.dot_dimension_numbers<[1], [0], [0], [1], [0, 0, 1, 1], [], []>} : vector<8x32xf32>, vector<32x128xf32>, vector<8x128xf32> -> vector<8x128xf32>
    %52 = arith.addf %48, %51 : vector<8x128xf32>
    %53 = vector.extract_strided_slice %50 {offsets = [0, 0], sizes = [8, 96], strides = [1, 1]} : vector<8x128xf32> to vector<8x96xf32>
    %54 = arith.negf %53 : vector<8x96xf32>
    %55 = math.exp %54 : vector<8x96xf32>
    %cst_46 = arith.constant 1.000000e+00 : f32
    %56 = vector.broadcast %cst_46 : f32 to vector<8x96xf32>
    %57 = arith.addf %56, %55 : vector<8x96xf32>
    %58 = arith.divf %56, %57 : vector<8x96xf32>
    %59 = vector.extract_strided_slice %58 {offsets = [0, 0], sizes = [8, 32], strides = [1, 1]} : vector<8x96xf32> to vector<8x32xf32>
    %60 = vector.extract_strided_slice %58 {offsets = [0, 32], sizes = [8, 32], strides = [1, 1]} : vector<8x96xf32> to vector<8x32xf32>
    %61 = vector.extract_strided_slice %58 {offsets = [0, 64], sizes = [8, 32], strides = [1, 1]} : vector<8x96xf32> to vector<8x32xf32>
    %62 = vector.extract_strided_slice %50 {offsets = [0, 96], sizes = [8, 32], strides = [1, 1]} : vector<8x128xf32> to vector<8x32xf32>
    %63 = math.tanh %62 : vector<8x32xf32>
    %64 = arith.mulf %60, %44 : vector<8x32xf32>
    %65 = arith.mulf %59, %63 : vector<8x32xf32>
    %66 = arith.addf %64, %65 : vector<8x32xf32>
    %67 = math.tanh %66 : vector<8x32xf32>
    %68 = arith.mulf %61, %67 : vector<8x32xf32>
    %69 = vector.extract_strided_slice %52 {offsets = [0, 0], sizes = [8, 96], strides = [1, 1]} : vector<8x128xf32> to vector<8x96xf32>
    %70 = arith.negf %69 : vector<8x96xf32>
    %71 = math.exp %70 : vector<8x96xf32>
    %cst_47 = arith.constant 1.000000e+00 : f32
    %72 = vector.broadcast %cst_47 : f32 to vector<8x96xf32>
    %73 = arith.addf %72, %71 : vector<8x96xf32>
    %74 = arith.divf %72, %73 : vector<8x96xf32>
    %75 = vector.extract_strided_slice %74 {offsets = [0, 0], sizes = [8, 32], strides = [1, 1]} : vector<8x96xf32> to vector<8x32xf32>
    %76 = vector.extract_strided_slice %74 {offsets = [0, 32], sizes = [8, 32], strides = [1, 1]} : vector<8x96xf32> to vector<8x32xf32>
    %77 = vector.extract_strided_slice %74 {offsets = [0, 64], sizes = [8, 32], strides = [1, 1]} : vector<8x96xf32> to vector<8x32xf32>
    %78 = vector.extract_strided_slice %52 {offsets = [0, 96], sizes = [8, 32], strides = [1, 1]} : vector<8x128xf32> to vector<8x32xf32>
    %79 = math.tanh %78 : vector<8x32xf32>
    %80 = arith.mulf %76, %44 : vector<8x32xf32>
    %81 = arith.mulf %75, %79 : vector<8x32xf32>
    %82 = arith.addf %80, %81 : vector<8x32xf32>
    %83 = math.tanh %82 : vector<8x32xf32>
    %84 = arith.mulf %77, %83 : vector<8x32xf32>
    %c8_48 = arith.constant 8 : index
    %c0_49 = arith.constant 0 : index
    %85 = vector.load %arg13[%c8_48, %c0_49] : memref<64x256xf32, #tpu.memory_space<vmem>>, vector<8x128xf32>
    %c48_50 = arith.constant 48 : index
    %c128_51 = arith.constant 128 : index
    %86 = vector.load %arg13[%c48_50, %c128_51] : memref<64x256xf32, #tpu.memory_space<vmem>>, vector<8x128xf32>
    %cst_52 = arith.constant dense<0.000000e+00> : vector<8x128xf32>
    %87 = tpu.matmul %68, %45, %cst_52 {dimension_numbers = #tpu.dot_dimension_numbers<[1], [0], [0], [1], [0, 0, 1, 1], [], []>} : vector<8x32xf32>, vector<32x128xf32>, vector<8x128xf32> -> vector<8x128xf32>
    %88 = arith.addf %85, %87 : vector<8x128xf32>
    %cst_53 = arith.constant dense<0.000000e+00> : vector<8x128xf32>
    %89 = tpu.matmul %84, %46, %cst_53 {dimension_numbers = #tpu.dot_dimension_numbers<[1], [0], [0], [1], [0, 0, 1, 1], [], []>} : vector<8x32xf32>, vector<32x128xf32>, vector<8x128xf32> -> vector<8x128xf32>
    %90 = arith.addf %86, %89 : vector<8x128xf32>
    %91 = vector.extract_strided_slice %88 {offsets = [0, 0], sizes = [8, 96], strides = [1, 1]} : vector<8x128xf32> to vector<8x96xf32>
    %92 = arith.negf %91 : vector<8x96xf32>
    %93 = math.exp %92 : vector<8x96xf32>
    %cst_54 = arith.constant 1.000000e+00 : f32
    %94 = vector.broadcast %cst_54 : f32 to vector<8x96xf32>
    %95 = arith.addf %94, %93 : vector<8x96xf32>
    %96 = arith.divf %94, %95 : vector<8x96xf32>
    %97 = vector.extract_strided_slice %96 {offsets = [0, 0], sizes = [8, 32], strides = [1, 1]} : vector<8x96xf32> to vector<8x32xf32>
    %98 = vector.extract_strided_slice %96 {offsets = [0, 32], sizes = [8, 32], strides = [1, 1]} : vector<8x96xf32> to vector<8x32xf32>
    %99 = vector.extract_strided_slice %96 {offsets = [0, 64], sizes = [8, 32], strides = [1, 1]} : vector<8x96xf32> to vector<8x32xf32>
    %100 = vector.extract_strided_slice %88 {offsets = [0, 96], sizes = [8, 32], strides = [1, 1]} : vector<8x128xf32> to vector<8x32xf32>
    %101 = math.tanh %100 : vector<8x32xf32>
    %102 = arith.mulf %98, %66 : vector<8x32xf32>
    %103 = arith.mulf %97, %101 : vector<8x32xf32>
    %104 = arith.addf %102, %103 : vector<8x32xf32>
    %105 = math.tanh %104 : vector<8x32xf32>
    %106 = arith.mulf %99, %105 : vector<8x32xf32>
    %107 = vector.extract_strided_slice %90 {offsets = [0, 0], sizes = [8, 96], strides = [1, 1]} : vector<8x128xf32> to vector<8x96xf32>
    %108 = arith.negf %107 : vector<8x96xf32>
    %109 = math.exp %108 : vector<8x96xf32>
    %cst_55 = arith.constant 1.000000e+00 : f32
    %110 = vector.broadcast %cst_55 : f32 to vector<8x96xf32>
    %111 = arith.addf %110, %109 : vector<8x96xf32>
    %112 = arith.divf %110, %111 : vector<8x96xf32>
    %113 = vector.extract_strided_slice %112 {offsets = [0, 0], sizes = [8, 32], strides = [1, 1]} : vector<8x96xf32> to vector<8x32xf32>
    %114 = vector.extract_strided_slice %112 {offsets = [0, 32], sizes = [8, 32], strides = [1, 1]} : vector<8x96xf32> to vector<8x32xf32>
    %115 = vector.extract_strided_slice %112 {offsets = [0, 64], sizes = [8, 32], strides = [1, 1]} : vector<8x96xf32> to vector<8x32xf32>
    %116 = vector.extract_strided_slice %90 {offsets = [0, 96], sizes = [8, 32], strides = [1, 1]} : vector<8x128xf32> to vector<8x32xf32>
    %117 = math.tanh %116 : vector<8x32xf32>
    %118 = arith.mulf %114, %82 : vector<8x32xf32>
    %119 = arith.mulf %113, %117 : vector<8x32xf32>
    %120 = arith.addf %118, %119 : vector<8x32xf32>
    %121 = math.tanh %120 : vector<8x32xf32>
    %122 = arith.mulf %115, %121 : vector<8x32xf32>
    %c16_56 = arith.constant 16 : index
    %c0_57 = arith.constant 0 : index
    %123 = vector.load %arg13[%c16_56, %c0_57] : memref<64x256xf32, #tpu.memory_space<vmem>>, vector<8x128xf32>
    %c40_58 = arith.constant 40 : index
    %c128_59 = arith.constant 128 : index
    %124 = vector.load %arg13[%c40_58, %c128_59] : memref<64x256xf32, #tpu.memory_space<vmem>>, vector<8x128xf32>
    %cst_60 = arith.constant dense<0.000000e+00> : vector<8x128xf32>
    %125 = tpu.matmul %106, %45, %cst_60 {dimension_numbers = #tpu.dot_dimension_numbers<[1], [0], [0], [1], [0, 0, 1, 1], [], []>} : vector<8x32xf32>, vector<32x128xf32>, vector<8x128xf32> -> vector<8x128xf32>
    %126 = arith.addf %123, %125 : vector<8x128xf32>
    %cst_61 = arith.constant dense<0.000000e+00> : vector<8x128xf32>
    %127 = tpu.matmul %122, %46, %cst_61 {dimension_numbers = #tpu.dot_dimension_numbers<[1], [0], [0], [1], [0, 0, 1, 1], [], []>} : vector<8x32xf32>, vector<32x128xf32>, vector<8x128xf32> -> vector<8x128xf32>
    %128 = arith.addf %124, %127 : vector<8x128xf32>
    %129 = vector.extract_strided_slice %126 {offsets = [0, 0], sizes = [8, 96], strides = [1, 1]} : vector<8x128xf32> to vector<8x96xf32>
    %130 = arith.negf %129 : vector<8x96xf32>
    %131 = math.exp %130 : vector<8x96xf32>
    %cst_62 = arith.constant 1.000000e+00 : f32
    %132 = vector.broadcast %cst_62 : f32 to vector<8x96xf32>
    %133 = arith.addf %132, %131 : vector<8x96xf32>
    %134 = arith.divf %132, %133 : vector<8x96xf32>
    %135 = vector.extract_strided_slice %134 {offsets = [0, 0], sizes = [8, 32], strides = [1, 1]} : vector<8x96xf32> to vector<8x32xf32>
    %136 = vector.extract_strided_slice %134 {offsets = [0, 32], sizes = [8, 32], strides = [1, 1]} : vector<8x96xf32> to vector<8x32xf32>
    %137 = vector.extract_strided_slice %134 {offsets = [0, 64], sizes = [8, 32], strides = [1, 1]} : vector<8x96xf32> to vector<8x32xf32>
    %138 = vector.extract_strided_slice %126 {offsets = [0, 96], sizes = [8, 32], strides = [1, 1]} : vector<8x128xf32> to vector<8x32xf32>
    %139 = math.tanh %138 : vector<8x32xf32>
    %140 = arith.mulf %136, %104 : vector<8x32xf32>
    %141 = arith.mulf %135, %139 : vector<8x32xf32>
    %142 = arith.addf %140, %141 : vector<8x32xf32>
    %143 = math.tanh %142 : vector<8x32xf32>
    %144 = arith.mulf %137, %143 : vector<8x32xf32>
    %145 = vector.extract_strided_slice %128 {offsets = [0, 0], sizes = [8, 96], strides = [1, 1]} : vector<8x128xf32> to vector<8x96xf32>
    %146 = arith.negf %145 : vector<8x96xf32>
    %147 = math.exp %146 : vector<8x96xf32>
    %cst_63 = arith.constant 1.000000e+00 : f32
    %148 = vector.broadcast %cst_63 : f32 to vector<8x96xf32>
    %149 = arith.addf %148, %147 : vector<8x96xf32>
    %150 = arith.divf %148, %149 : vector<8x96xf32>
    %151 = vector.extract_strided_slice %150 {offsets = [0, 0], sizes = [8, 32], strides = [1, 1]} : vector<8x96xf32> to vector<8x32xf32>
    %152 = vector.extract_strided_slice %150 {offsets = [0, 32], sizes = [8, 32], strides = [1, 1]} : vector<8x96xf32> to vector<8x32xf32>
    %153 = vector.extract_strided_slice %150 {offsets = [0, 64], sizes = [8, 32], strides = [1, 1]} : vector<8x96xf32> to vector<8x32xf32>
    %154 = vector.extract_strided_slice %128 {offsets = [0, 96], sizes = [8, 32], strides = [1, 1]} : vector<8x128xf32> to vector<8x32xf32>
    %155 = math.tanh %154 : vector<8x32xf32>
    %156 = arith.mulf %152, %120 : vector<8x32xf32>
    %157 = arith.mulf %151, %155 : vector<8x32xf32>
    %158 = arith.addf %156, %157 : vector<8x32xf32>
    %159 = math.tanh %158 : vector<8x32xf32>
    %160 = arith.mulf %153, %159 : vector<8x32xf32>
    %c24_64 = arith.constant 24 : index
    %c0_65 = arith.constant 0 : index
    %161 = vector.load %arg13[%c24_64, %c0_65] : memref<64x256xf32, #tpu.memory_space<vmem>>, vector<8x128xf32>
    %c32_66 = arith.constant 32 : index
    %c128_67 = arith.constant 128 : index
    %162 = vector.load %arg13[%c32_66, %c128_67] : memref<64x256xf32, #tpu.memory_space<vmem>>, vector<8x128xf32>
    %cst_68 = arith.constant dense<0.000000e+00> : vector<8x128xf32>
    %163 = tpu.matmul %144, %45, %cst_68 {dimension_numbers = #tpu.dot_dimension_numbers<[1], [0], [0], [1], [0, 0, 1, 1], [], []>} : vector<8x32xf32>, vector<32x128xf32>, vector<8x128xf32> -> vector<8x128xf32>
    %164 = arith.addf %161, %163 : vector<8x128xf32>
    %cst_69 = arith.constant dense<0.000000e+00> : vector<8x128xf32>
    %165 = tpu.matmul %160, %46, %cst_69 {dimension_numbers = #tpu.dot_dimension_numbers<[1], [0], [0], [1], [0, 0, 1, 1], [], []>} : vector<8x32xf32>, vector<32x128xf32>, vector<8x128xf32> -> vector<8x128xf32>
    %166 = arith.addf %162, %165 : vector<8x128xf32>
    %167 = vector.extract_strided_slice %164 {offsets = [0, 0], sizes = [8, 96], strides = [1, 1]} : vector<8x128xf32> to vector<8x96xf32>
    %168 = arith.negf %167 : vector<8x96xf32>
    %169 = math.exp %168 : vector<8x96xf32>
    %cst_70 = arith.constant 1.000000e+00 : f32
    %170 = vector.broadcast %cst_70 : f32 to vector<8x96xf32>
    %171 = arith.addf %170, %169 : vector<8x96xf32>
    %172 = arith.divf %170, %171 : vector<8x96xf32>
    %173 = vector.extract_strided_slice %172 {offsets = [0, 0], sizes = [8, 32], strides = [1, 1]} : vector<8x96xf32> to vector<8x32xf32>
    %174 = vector.extract_strided_slice %172 {offsets = [0, 32], sizes = [8, 32], strides = [1, 1]} : vector<8x96xf32> to vector<8x32xf32>
    %175 = vector.extract_strided_slice %172 {offsets = [0, 64], sizes = [8, 32], strides = [1, 1]} : vector<8x96xf32> to vector<8x32xf32>
    %176 = vector.extract_strided_slice %164 {offsets = [0, 96], sizes = [8, 32], strides = [1, 1]} : vector<8x128xf32> to vector<8x32xf32>
    %177 = math.tanh %176 : vector<8x32xf32>
    %178 = arith.mulf %174, %142 : vector<8x32xf32>
    %179 = arith.mulf %173, %177 : vector<8x32xf32>
    %180 = arith.addf %178, %179 : vector<8x32xf32>
    %181 = math.tanh %180 : vector<8x32xf32>
    %182 = arith.mulf %175, %181 : vector<8x32xf32>
    %183 = vector.extract_strided_slice %166 {offsets = [0, 0], sizes = [8, 96], strides = [1, 1]} : vector<8x128xf32> to vector<8x96xf32>
    %184 = arith.negf %183 : vector<8x96xf32>
    %185 = math.exp %184 : vector<8x96xf32>
    %cst_71 = arith.constant 1.000000e+00 : f32
    %186 = vector.broadcast %cst_71 : f32 to vector<8x96xf32>
    %187 = arith.addf %186, %185 : vector<8x96xf32>
    %188 = arith.divf %186, %187 : vector<8x96xf32>
    %189 = vector.extract_strided_slice %188 {offsets = [0, 0], sizes = [8, 32], strides = [1, 1]} : vector<8x96xf32> to vector<8x32xf32>
    %190 = vector.extract_strided_slice %188 {offsets = [0, 32], sizes = [8, 32], strides = [1, 1]} : vector<8x96xf32> to vector<8x32xf32>
    %191 = vector.extract_strided_slice %188 {offsets = [0, 64], sizes = [8, 32], strides = [1, 1]} : vector<8x96xf32> to vector<8x32xf32>
    %192 = vector.extract_strided_slice %166 {offsets = [0, 96], sizes = [8, 32], strides = [1, 1]} : vector<8x128xf32> to vector<8x32xf32>
    %193 = math.tanh %192 : vector<8x32xf32>
    %194 = arith.mulf %190, %158 : vector<8x32xf32>
    %195 = arith.mulf %189, %193 : vector<8x32xf32>
    %196 = arith.addf %194, %195 : vector<8x32xf32>
    %197 = math.tanh %196 : vector<8x32xf32>
    %198 = arith.mulf %191, %197 : vector<8x32xf32>
    %c32_72 = arith.constant 32 : index
    %c0_73 = arith.constant 0 : index
    %199 = vector.load %arg13[%c32_72, %c0_73] : memref<64x256xf32, #tpu.memory_space<vmem>>, vector<8x128xf32>
    %c24_74 = arith.constant 24 : index
    %c128_75 = arith.constant 128 : index
    %200 = vector.load %arg13[%c24_74, %c128_75] : memref<64x256xf32, #tpu.memory_space<vmem>>, vector<8x128xf32>
    %cst_76 = arith.constant dense<0.000000e+00> : vector<8x128xf32>
    %201 = tpu.matmul %182, %45, %cst_76 {dimension_numbers = #tpu.dot_dimension_numbers<[1], [0], [0], [1], [0, 0, 1, 1], [], []>} : vector<8x32xf32>, vector<32x128xf32>, vector<8x128xf32> -> vector<8x128xf32>
    %202 = arith.addf %199, %201 : vector<8x128xf32>
    %cst_77 = arith.constant dense<0.000000e+00> : vector<8x128xf32>
    %203 = tpu.matmul %198, %46, %cst_77 {dimension_numbers = #tpu.dot_dimension_numbers<[1], [0], [0], [1], [0, 0, 1, 1], [], []>} : vector<8x32xf32>, vector<32x128xf32>, vector<8x128xf32> -> vector<8x128xf32>
    %204 = arith.addf %200, %203 : vector<8x128xf32>
    %205 = vector.extract_strided_slice %202 {offsets = [0, 0], sizes = [8, 96], strides = [1, 1]} : vector<8x128xf32> to vector<8x96xf32>
    %206 = arith.negf %205 : vector<8x96xf32>
    %207 = math.exp %206 : vector<8x96xf32>
    %cst_78 = arith.constant 1.000000e+00 : f32
    %208 = vector.broadcast %cst_78 : f32 to vector<8x96xf32>
    %209 = arith.addf %208, %207 : vector<8x96xf32>
    %210 = arith.divf %208, %209 : vector<8x96xf32>
    %211 = vector.extract_strided_slice %210 {offsets = [0, 0], sizes = [8, 32], strides = [1, 1]} : vector<8x96xf32> to vector<8x32xf32>
    %212 = vector.extract_strided_slice %210 {offsets = [0, 32], sizes = [8, 32], strides = [1, 1]} : vector<8x96xf32> to vector<8x32xf32>
    %213 = vector.extract_strided_slice %210 {offsets = [0, 64], sizes = [8, 32], strides = [1, 1]} : vector<8x96xf32> to vector<8x32xf32>
    %214 = vector.extract_strided_slice %202 {offsets = [0, 96], sizes = [8, 32], strides = [1, 1]} : vector<8x128xf32> to vector<8x32xf32>
    %215 = math.tanh %214 : vector<8x32xf32>
    %216 = arith.mulf %212, %180 : vector<8x32xf32>
    %217 = arith.mulf %211, %215 : vector<8x32xf32>
    %218 = arith.addf %216, %217 : vector<8x32xf32>
    %219 = math.tanh %218 : vector<8x32xf32>
    %220 = arith.mulf %213, %219 : vector<8x32xf32>
    %221 = vector.extract_strided_slice %204 {offsets = [0, 0], sizes = [8, 96], strides = [1, 1]} : vector<8x128xf32> to vector<8x96xf32>
    %222 = arith.negf %221 : vector<8x96xf32>
    %223 = math.exp %222 : vector<8x96xf32>
    %cst_79 = arith.constant 1.000000e+00 : f32
    %224 = vector.broadcast %cst_79 : f32 to vector<8x96xf32>
    %225 = arith.addf %224, %223 : vector<8x96xf32>
    %226 = arith.divf %224, %225 : vector<8x96xf32>
    %227 = vector.extract_strided_slice %226 {offsets = [0, 0], sizes = [8, 32], strides = [1, 1]} : vector<8x96xf32> to vector<8x32xf32>
    %228 = vector.extract_strided_slice %226 {offsets = [0, 32], sizes = [8, 32], strides = [1, 1]} : vector<8x96xf32> to vector<8x32xf32>
    %229 = vector.extract_strided_slice %226 {offsets = [0, 64], sizes = [8, 32], strides = [1, 1]} : vector<8x96xf32> to vector<8x32xf32>
    %230 = vector.extract_strided_slice %204 {offsets = [0, 96], sizes = [8, 32], strides = [1, 1]} : vector<8x128xf32> to vector<8x32xf32>
    %231 = math.tanh %230 : vector<8x32xf32>
    %232 = arith.mulf %228, %196 : vector<8x32xf32>
    %233 = arith.mulf %227, %231 : vector<8x32xf32>
    %234 = arith.addf %232, %233 : vector<8x32xf32>
    %235 = math.tanh %234 : vector<8x32xf32>
    %236 = arith.mulf %229, %235 : vector<8x32xf32>
    %c40_80 = arith.constant 40 : index
    %c0_81 = arith.constant 0 : index
    %237 = vector.load %arg13[%c40_80, %c0_81] : memref<64x256xf32, #tpu.memory_space<vmem>>, vector<8x128xf32>
    %c16_82 = arith.constant 16 : index
    %c128_83 = arith.constant 128 : index
    %238 = vector.load %arg13[%c16_82, %c128_83] : memref<64x256xf32, #tpu.memory_space<vmem>>, vector<8x128xf32>
    %cst_84 = arith.constant dense<0.000000e+00> : vector<8x128xf32>
    %239 = tpu.matmul %220, %45, %cst_84 {dimension_numbers = #tpu.dot_dimension_numbers<[1], [0], [0], [1], [0, 0, 1, 1], [], []>} : vector<8x32xf32>, vector<32x128xf32>, vector<8x128xf32> -> vector<8x128xf32>
    %240 = arith.addf %237, %239 : vector<8x128xf32>
    %cst_85 = arith.constant dense<0.000000e+00> : vector<8x128xf32>
    %241 = tpu.matmul %236, %46, %cst_85 {dimension_numbers = #tpu.dot_dimension_numbers<[1], [0], [0], [1], [0, 0, 1, 1], [], []>} : vector<8x32xf32>, vector<32x128xf32>, vector<8x128xf32> -> vector<8x128xf32>
    %242 = arith.addf %238, %241 : vector<8x128xf32>
    %243 = vector.extract_strided_slice %240 {offsets = [0, 0], sizes = [8, 96], strides = [1, 1]} : vector<8x128xf32> to vector<8x96xf32>
    %244 = arith.negf %243 : vector<8x96xf32>
    %245 = math.exp %244 : vector<8x96xf32>
    %cst_86 = arith.constant 1.000000e+00 : f32
    %246 = vector.broadcast %cst_86 : f32 to vector<8x96xf32>
    %247 = arith.addf %246, %245 : vector<8x96xf32>
    %248 = arith.divf %246, %247 : vector<8x96xf32>
    %249 = vector.extract_strided_slice %248 {offsets = [0, 0], sizes = [8, 32], strides = [1, 1]} : vector<8x96xf32> to vector<8x32xf32>
    %250 = vector.extract_strided_slice %248 {offsets = [0, 32], sizes = [8, 32], strides = [1, 1]} : vector<8x96xf32> to vector<8x32xf32>
    %251 = vector.extract_strided_slice %248 {offsets = [0, 64], sizes = [8, 32], strides = [1, 1]} : vector<8x96xf32> to vector<8x32xf32>
    %252 = vector.extract_strided_slice %240 {offsets = [0, 96], sizes = [8, 32], strides = [1, 1]} : vector<8x128xf32> to vector<8x32xf32>
    %253 = math.tanh %252 : vector<8x32xf32>
    %254 = arith.mulf %250, %218 : vector<8x32xf32>
    %255 = arith.mulf %249, %253 : vector<8x32xf32>
    %256 = arith.addf %254, %255 : vector<8x32xf32>
    %257 = math.tanh %256 : vector<8x32xf32>
    %258 = arith.mulf %251, %257 : vector<8x32xf32>
    %259 = vector.extract_strided_slice %242 {offsets = [0, 0], sizes = [8, 96], strides = [1, 1]} : vector<8x128xf32> to vector<8x96xf32>
    %260 = arith.negf %259 : vector<8x96xf32>
    %261 = math.exp %260 : vector<8x96xf32>
    %cst_87 = arith.constant 1.000000e+00 : f32
    %262 = vector.broadcast %cst_87 : f32 to vector<8x96xf32>
    %263 = arith.addf %262, %261 : vector<8x96xf32>
    %264 = arith.divf %262, %263 : vector<8x96xf32>
    %265 = vector.extract_strided_slice %264 {offsets = [0, 0], sizes = [8, 32], strides = [1, 1]} : vector<8x96xf32> to vector<8x32xf32>
    %266 = vector.extract_strided_slice %264 {offsets = [0, 32], sizes = [8, 32], strides = [1, 1]} : vector<8x96xf32> to vector<8x32xf32>
    %267 = vector.extract_strided_slice %264 {offsets = [0, 64], sizes = [8, 32], strides = [1, 1]} : vector<8x96xf32> to vector<8x32xf32>
    %268 = vector.extract_strided_slice %242 {offsets = [0, 96], sizes = [8, 32], strides = [1, 1]} : vector<8x128xf32> to vector<8x32xf32>
    %269 = math.tanh %268 : vector<8x32xf32>
    %270 = arith.mulf %266, %234 : vector<8x32xf32>
    %271 = arith.mulf %265, %269 : vector<8x32xf32>
    %272 = arith.addf %270, %271 : vector<8x32xf32>
    %273 = math.tanh %272 : vector<8x32xf32>
    %274 = arith.mulf %267, %273 : vector<8x32xf32>
    %c48_88 = arith.constant 48 : index
    %c0_89 = arith.constant 0 : index
    %275 = vector.load %arg13[%c48_88, %c0_89] : memref<64x256xf32, #tpu.memory_space<vmem>>, vector<8x128xf32>
    %c8_90 = arith.constant 8 : index
    %c128_91 = arith.constant 128 : index
    %276 = vector.load %arg13[%c8_90, %c128_91] : memref<64x256xf32, #tpu.memory_space<vmem>>, vector<8x128xf32>
    %cst_92 = arith.constant dense<0.000000e+00> : vector<8x128xf32>
    %277 = tpu.matmul %258, %45, %cst_92 {dimension_numbers = #tpu.dot_dimension_numbers<[1], [0], [0], [1], [0, 0, 1, 1], [], []>} : vector<8x32xf32>, vector<32x128xf32>, vector<8x128xf32> -> vector<8x128xf32>
    %278 = arith.addf %275, %277 : vector<8x128xf32>
    %cst_93 = arith.constant dense<0.000000e+00> : vector<8x128xf32>
    %279 = tpu.matmul %274, %46, %cst_93 {dimension_numbers = #tpu.dot_dimension_numbers<[1], [0], [0], [1], [0, 0, 1, 1], [], []>} : vector<8x32xf32>, vector<32x128xf32>, vector<8x128xf32> -> vector<8x128xf32>
    %280 = arith.addf %276, %279 : vector<8x128xf32>
    %281 = vector.extract_strided_slice %278 {offsets = [0, 0], sizes = [8, 96], strides = [1, 1]} : vector<8x128xf32> to vector<8x96xf32>
    %282 = arith.negf %281 : vector<8x96xf32>
    %283 = math.exp %282 : vector<8x96xf32>
    %cst_94 = arith.constant 1.000000e+00 : f32
    %284 = vector.broadcast %cst_94 : f32 to vector<8x96xf32>
    %285 = arith.addf %284, %283 : vector<8x96xf32>
    %286 = arith.divf %284, %285 : vector<8x96xf32>
    %287 = vector.extract_strided_slice %286 {offsets = [0, 0], sizes = [8, 32], strides = [1, 1]} : vector<8x96xf32> to vector<8x32xf32>
    %288 = vector.extract_strided_slice %286 {offsets = [0, 32], sizes = [8, 32], strides = [1, 1]} : vector<8x96xf32> to vector<8x32xf32>
    %289 = vector.extract_strided_slice %286 {offsets = [0, 64], sizes = [8, 32], strides = [1, 1]} : vector<8x96xf32> to vector<8x32xf32>
    %290 = vector.extract_strided_slice %278 {offsets = [0, 96], sizes = [8, 32], strides = [1, 1]} : vector<8x128xf32> to vector<8x32xf32>
    %291 = math.tanh %290 : vector<8x32xf32>
    %292 = arith.mulf %288, %256 : vector<8x32xf32>
    %293 = arith.mulf %287, %291 : vector<8x32xf32>
    %294 = arith.addf %292, %293 : vector<8x32xf32>
    %295 = math.tanh %294 : vector<8x32xf32>
    %296 = arith.mulf %289, %295 : vector<8x32xf32>
    %297 = vector.extract_strided_slice %280 {offsets = [0, 0], sizes = [8, 96], strides = [1, 1]} : vector<8x128xf32> to vector<8x96xf32>
    %298 = arith.negf %297 : vector<8x96xf32>
    %299 = math.exp %298 : vector<8x96xf32>
    %cst_95 = arith.constant 1.000000e+00 : f32
    %300 = vector.broadcast %cst_95 : f32 to vector<8x96xf32>
    %301 = arith.addf %300, %299 : vector<8x96xf32>
    %302 = arith.divf %300, %301 : vector<8x96xf32>
    %303 = vector.extract_strided_slice %302 {offsets = [0, 0], sizes = [8, 32], strides = [1, 1]} : vector<8x96xf32> to vector<8x32xf32>
    %304 = vector.extract_strided_slice %302 {offsets = [0, 32], sizes = [8, 32], strides = [1, 1]} : vector<8x96xf32> to vector<8x32xf32>
    %305 = vector.extract_strided_slice %302 {offsets = [0, 64], sizes = [8, 32], strides = [1, 1]} : vector<8x96xf32> to vector<8x32xf32>
    %306 = vector.extract_strided_slice %280 {offsets = [0, 96], sizes = [8, 32], strides = [1, 1]} : vector<8x128xf32> to vector<8x32xf32>
    %307 = math.tanh %306 : vector<8x32xf32>
    %308 = arith.mulf %304, %272 : vector<8x32xf32>
    %309 = arith.mulf %303, %307 : vector<8x32xf32>
    %310 = arith.addf %308, %309 : vector<8x32xf32>
    %311 = math.tanh %310 : vector<8x32xf32>
    %312 = arith.mulf %305, %311 : vector<8x32xf32>
    %c56_96 = arith.constant 56 : index
    %c0_97 = arith.constant 0 : index
    %313 = vector.load %arg13[%c56_96, %c0_97] : memref<64x256xf32, #tpu.memory_space<vmem>>, vector<8x128xf32>
    %c0_98 = arith.constant 0 : index
    %c128_99 = arith.constant 128 : index
    %314 = vector.load %arg13[%c0_98, %c128_99] : memref<64x256xf32, #tpu.memory_space<vmem>>, vector<8x128xf32>
    %cst_100 = arith.constant dense<0.000000e+00> : vector<8x128xf32>
    %315 = tpu.matmul %296, %45, %cst_100 {dimension_numbers = #tpu.dot_dimension_numbers<[1], [0], [0], [1], [0, 0, 1, 1], [], []>} : vector<8x32xf32>, vector<32x128xf32>, vector<8x128xf32> -> vector<8x128xf32>
    %316 = arith.addf %313, %315 : vector<8x128xf32>
    %cst_101 = arith.constant dense<0.000000e+00> : vector<8x128xf32>
    %317 = tpu.matmul %312, %46, %cst_101 {dimension_numbers = #tpu.dot_dimension_numbers<[1], [0], [0], [1], [0, 0, 1, 1], [], []>} : vector<8x32xf32>, vector<32x128xf32>, vector<8x128xf32> -> vector<8x128xf32>
    %318 = arith.addf %314, %317 : vector<8x128xf32>
    %319 = vector.extract_strided_slice %316 {offsets = [0, 0], sizes = [8, 96], strides = [1, 1]} : vector<8x128xf32> to vector<8x96xf32>
    %320 = arith.negf %319 : vector<8x96xf32>
    %321 = math.exp %320 : vector<8x96xf32>
    %cst_102 = arith.constant 1.000000e+00 : f32
    %322 = vector.broadcast %cst_102 : f32 to vector<8x96xf32>
    %323 = arith.addf %322, %321 : vector<8x96xf32>
    %324 = arith.divf %322, %323 : vector<8x96xf32>
    %325 = vector.extract_strided_slice %324 {offsets = [0, 0], sizes = [8, 32], strides = [1, 1]} : vector<8x96xf32> to vector<8x32xf32>
    %326 = vector.extract_strided_slice %324 {offsets = [0, 32], sizes = [8, 32], strides = [1, 1]} : vector<8x96xf32> to vector<8x32xf32>
    %327 = vector.extract_strided_slice %324 {offsets = [0, 64], sizes = [8, 32], strides = [1, 1]} : vector<8x96xf32> to vector<8x32xf32>
    %328 = vector.extract_strided_slice %316 {offsets = [0, 96], sizes = [8, 32], strides = [1, 1]} : vector<8x128xf32> to vector<8x32xf32>
    %329 = math.tanh %328 : vector<8x32xf32>
    %330 = arith.mulf %326, %294 : vector<8x32xf32>
    %331 = arith.mulf %325, %329 : vector<8x32xf32>
    %332 = arith.addf %330, %331 : vector<8x32xf32>
    %333 = math.tanh %332 : vector<8x32xf32>
    %334 = arith.mulf %327, %333 : vector<8x32xf32>
    %335 = vector.extract_strided_slice %318 {offsets = [0, 0], sizes = [8, 96], strides = [1, 1]} : vector<8x128xf32> to vector<8x96xf32>
    %336 = arith.negf %335 : vector<8x96xf32>
    %337 = math.exp %336 : vector<8x96xf32>
    %cst_103 = arith.constant 1.000000e+00 : f32
    %338 = vector.broadcast %cst_103 : f32 to vector<8x96xf32>
    %339 = arith.addf %338, %337 : vector<8x96xf32>
    %340 = arith.divf %338, %339 : vector<8x96xf32>
    %341 = vector.extract_strided_slice %340 {offsets = [0, 0], sizes = [8, 32], strides = [1, 1]} : vector<8x96xf32> to vector<8x32xf32>
    %342 = vector.extract_strided_slice %340 {offsets = [0, 32], sizes = [8, 32], strides = [1, 1]} : vector<8x96xf32> to vector<8x32xf32>
    %343 = vector.extract_strided_slice %340 {offsets = [0, 64], sizes = [8, 32], strides = [1, 1]} : vector<8x96xf32> to vector<8x32xf32>
    %344 = vector.extract_strided_slice %318 {offsets = [0, 96], sizes = [8, 32], strides = [1, 1]} : vector<8x128xf32> to vector<8x32xf32>
    %345 = math.tanh %344 : vector<8x32xf32>
    %346 = arith.mulf %342, %310 : vector<8x32xf32>
    %347 = arith.mulf %341, %345 : vector<8x32xf32>
    %348 = arith.addf %346, %347 : vector<8x32xf32>
    %349 = math.tanh %348 : vector<8x32xf32>
    %350 = arith.mulf %343, %349 : vector<8x32xf32>
    %c0_104 = arith.constant 0 : index
    %c0_105 = arith.constant 0 : index
    %351 = vector.load %arg6[%c0_104, %c0_105] : memref<96x128xf32, #tpu.memory_space<vmem>>, vector<96x128xf32>
    %c0_106 = arith.constant 0 : index
    %c0_107 = arith.constant 0 : index
    %352 = vector.load %arg7[%c0_106, %c0_107] : memref<1x128xf32, #tpu.memory_space<vmem>>, vector<1x128xf32>
    %353 = vector.shape_cast %352 : vector<1x128xf32> to vector<1x128xf32>
    %354 = vector.broadcast %353 : vector<1x128xf32> to vector<8x128xf32>
    %355 = tpu.concatenate %68, %350, %44 in 1 : vector<8x32xf32>, vector<8x32xf32>, vector<8x32xf32> -> vector<8x96xf32>
    %cst_108 = arith.constant dense<0.000000e+00> : vector<8x128xf32>
    %356 = tpu.matmul %355, %351, %cst_108 {dimension_numbers = #tpu.dot_dimension_numbers<[1], [0], [0], [1], [0, 0, 1, 1], [], []>} : vector<8x96xf32>, vector<96x128xf32>, vector<8x128xf32> -> vector<8x128xf32>
    %357 = arith.addf %356, %354 : vector<8x128xf32>
    %358 = vector.extract_strided_slice %357 {offsets = [0, 0], sizes = [8, 96], strides = [1, 1]} : vector<8x128xf32> to vector<8x96xf32>
    %359 = arith.negf %358 : vector<8x96xf32>
    %360 = math.exp %359 : vector<8x96xf32>
    %cst_109 = arith.constant 1.000000e+00 : f32
    %361 = vector.broadcast %cst_109 : f32 to vector<8x96xf32>
    %362 = arith.addf %361, %360 : vector<8x96xf32>
    %363 = arith.divf %361, %362 : vector<8x96xf32>
    %364 = vector.extract_strided_slice %363 {offsets = [0, 0], sizes = [8, 32], strides = [1, 1]} : vector<8x96xf32> to vector<8x32xf32>
    %365 = vector.extract_strided_slice %363 {offsets = [0, 32], sizes = [8, 32], strides = [1, 1]} : vector<8x96xf32> to vector<8x32xf32>
    %366 = vector.extract_strided_slice %363 {offsets = [0, 64], sizes = [8, 32], strides = [1, 1]} : vector<8x96xf32> to vector<8x32xf32>
    %367 = vector.extract_strided_slice %357 {offsets = [0, 96], sizes = [8, 32], strides = [1, 1]} : vector<8x128xf32> to vector<8x32xf32>
    %368 = math.tanh %367 : vector<8x32xf32>
    %369 = arith.mulf %365, %44 : vector<8x32xf32>
    %370 = arith.mulf %364, %368 : vector<8x32xf32>
    %371 = arith.addf %369, %370 : vector<8x32xf32>
    %372 = math.tanh %371 : vector<8x32xf32>
    %373 = arith.mulf %366, %372 : vector<8x32xf32>
    %374 = tpu.concatenate %106, %312, %373 in 1 : vector<8x32xf32>, vector<8x32xf32>, vector<8x32xf32> -> vector<8x96xf32>
    %cst_110 = arith.constant dense<0.000000e+00> : vector<8x128xf32>
    %375 = tpu.matmul %374, %351, %cst_110 {dimension_numbers = #tpu.dot_dimension_numbers<[1], [0], [0], [1], [0, 0, 1, 1], [], []>} : vector<8x96xf32>, vector<96x128xf32>, vector<8x128xf32> -> vector<8x128xf32>
    %376 = arith.addf %375, %354 : vector<8x128xf32>
    %377 = vector.extract_strided_slice %376 {offsets = [0, 0], sizes = [8, 96], strides = [1, 1]} : vector<8x128xf32> to vector<8x96xf32>
    %378 = arith.negf %377 : vector<8x96xf32>
    %379 = math.exp %378 : vector<8x96xf32>
    %cst_111 = arith.constant 1.000000e+00 : f32
    %380 = vector.broadcast %cst_111 : f32 to vector<8x96xf32>
    %381 = arith.addf %380, %379 : vector<8x96xf32>
    %382 = arith.divf %380, %381 : vector<8x96xf32>
    %383 = vector.extract_strided_slice %382 {offsets = [0, 0], sizes = [8, 32], strides = [1, 1]} : vector<8x96xf32> to vector<8x32xf32>
    %384 = vector.extract_strided_slice %382 {offsets = [0, 32], sizes = [8, 32], strides = [1, 1]} : vector<8x96xf32> to vector<8x32xf32>
    %385 = vector.extract_strided_slice %382 {offsets = [0, 64], sizes = [8, 32], strides = [1, 1]} : vector<8x96xf32> to vector<8x32xf32>
    %386 = vector.extract_strided_slice %376 {offsets = [0, 96], sizes = [8, 32], strides = [1, 1]} : vector<8x128xf32> to vector<8x32xf32>
    %387 = math.tanh %386 : vector<8x32xf32>
    %388 = arith.mulf %384, %371 : vector<8x32xf32>
    %389 = arith.mulf %383, %387 : vector<8x32xf32>
    %390 = arith.addf %388, %389 : vector<8x32xf32>
    %391 = math.tanh %390 : vector<8x32xf32>
    %392 = arith.mulf %385, %391 : vector<8x32xf32>
    %393 = tpu.concatenate %144, %274, %392 in 1 : vector<8x32xf32>, vector<8x32xf32>, vector<8x32xf32> -> vector<8x96xf32>
    %cst_112 = arith.constant dense<0.000000e+00> : vector<8x128xf32>
    %394 = tpu.matmul %393, %351, %cst_112 {dimension_numbers = #tpu.dot_dimension_numbers<[1], [0], [0], [1], [0, 0, 1, 1], [], []>} : vector<8x96xf32>, vector<96x128xf32>, vector<8x128xf32> -> vector<8x128xf32>
    %395 = arith.addf %394, %354 : vector<8x128xf32>
    %396 = vector.extract_strided_slice %395 {offsets = [0, 0], sizes = [8, 96], strides = [1, 1]} : vector<8x128xf32> to vector<8x96xf32>
    %397 = arith.negf %396 : vector<8x96xf32>
    %398 = math.exp %397 : vector<8x96xf32>
    %cst_113 = arith.constant 1.000000e+00 : f32
    %399 = vector.broadcast %cst_113 : f32 to vector<8x96xf32>
    %400 = arith.addf %399, %398 : vector<8x96xf32>
    %401 = arith.divf %399, %400 : vector<8x96xf32>
    %402 = vector.extract_strided_slice %401 {offsets = [0, 0], sizes = [8, 32], strides = [1, 1]} : vector<8x96xf32> to vector<8x32xf32>
    %403 = vector.extract_strided_slice %401 {offsets = [0, 32], sizes = [8, 32], strides = [1, 1]} : vector<8x96xf32> to vector<8x32xf32>
    %404 = vector.extract_strided_slice %401 {offsets = [0, 64], sizes = [8, 32], strides = [1, 1]} : vector<8x96xf32> to vector<8x32xf32>
    %405 = vector.extract_strided_slice %395 {offsets = [0, 96], sizes = [8, 32], strides = [1, 1]} : vector<8x128xf32> to vector<8x32xf32>
    %406 = math.tanh %405 : vector<8x32xf32>
    %407 = arith.mulf %403, %390 : vector<8x32xf32>
    %408 = arith.mulf %402, %406 : vector<8x32xf32>
    %409 = arith.addf %407, %408 : vector<8x32xf32>
    %410 = math.tanh %409 : vector<8x32xf32>
    %411 = arith.mulf %404, %410 : vector<8x32xf32>
    %412 = tpu.concatenate %182, %236, %411 in 1 : vector<8x32xf32>, vector<8x32xf32>, vector<8x32xf32> -> vector<8x96xf32>
    %cst_114 = arith.constant dense<0.000000e+00> : vector<8x128xf32>
    %413 = tpu.matmul %412, %351, %cst_114 {dimension_numbers = #tpu.dot_dimension_numbers<[1], [0], [0], [1], [0, 0, 1, 1], [], []>} : vector<8x96xf32>, vector<96x128xf32>, vector<8x128xf32> -> vector<8x128xf32>
    %414 = arith.addf %413, %354 : vector<8x128xf32>
    %415 = vector.extract_strided_slice %414 {offsets = [0, 0], sizes = [8, 96], strides = [1, 1]} : vector<8x128xf32> to vector<8x96xf32>
    %416 = arith.negf %415 : vector<8x96xf32>
    %417 = math.exp %416 : vector<8x96xf32>
    %cst_115 = arith.constant 1.000000e+00 : f32
    %418 = vector.broadcast %cst_115 : f32 to vector<8x96xf32>
    %419 = arith.addf %418, %417 : vector<8x96xf32>
    %420 = arith.divf %418, %419 : vector<8x96xf32>
    %421 = vector.extract_strided_slice %420 {offsets = [0, 0], sizes = [8, 32], strides = [1, 1]} : vector<8x96xf32> to vector<8x32xf32>
    %422 = vector.extract_strided_slice %420 {offsets = [0, 32], sizes = [8, 32], strides = [1, 1]} : vector<8x96xf32> to vector<8x32xf32>
    %423 = vector.extract_strided_slice %420 {offsets = [0, 64], sizes = [8, 32], strides = [1, 1]} : vector<8x96xf32> to vector<8x32xf32>
    %424 = vector.extract_strided_slice %414 {offsets = [0, 96], sizes = [8, 32], strides = [1, 1]} : vector<8x128xf32> to vector<8x32xf32>
    %425 = math.tanh %424 : vector<8x32xf32>
    %426 = arith.mulf %422, %409 : vector<8x32xf32>
    %427 = arith.mulf %421, %425 : vector<8x32xf32>
    %428 = arith.addf %426, %427 : vector<8x32xf32>
    %429 = math.tanh %428 : vector<8x32xf32>
    %430 = arith.mulf %423, %429 : vector<8x32xf32>
    %431 = tpu.concatenate %220, %198, %430 in 1 : vector<8x32xf32>, vector<8x32xf32>, vector<8x32xf32> -> vector<8x96xf32>
    %cst_116 = arith.constant dense<0.000000e+00> : vector<8x128xf32>
    %432 = tpu.matmul %431, %351, %cst_116 {dimension_numbers = #tpu.dot_dimension_numbers<[1], [0], [0], [1], [0, 0, 1, 1], [], []>} : vector<8x96xf32>, vector<96x128xf32>, vector<8x128xf32> -> vector<8x128xf32>
    %433 = arith.addf %432, %354 : vector<8x128xf32>
    %434 = vector.extract_strided_slice %433 {offsets = [0, 0], sizes = [8, 96], strides = [1, 1]} : vector<8x128xf32> to vector<8x96xf32>
    %435 = arith.negf %434 : vector<8x96xf32>
    %436 = math.exp %435 : vector<8x96xf32>
    %cst_117 = arith.constant 1.000000e+00 : f32
    %437 = vector.broadcast %cst_117 : f32 to vector<8x96xf32>
    %438 = arith.addf %437, %436 : vector<8x96xf32>
    %439 = arith.divf %437, %438 : vector<8x96xf32>
    %440 = vector.extract_strided_slice %439 {offsets = [0, 0], sizes = [8, 32], strides = [1, 1]} : vector<8x96xf32> to vector<8x32xf32>
    %441 = vector.extract_strided_slice %439 {offsets = [0, 32], sizes = [8, 32], strides = [1, 1]} : vector<8x96xf32> to vector<8x32xf32>
    %442 = vector.extract_strided_slice %439 {offsets = [0, 64], sizes = [8, 32], strides = [1, 1]} : vector<8x96xf32> to vector<8x32xf32>
    %443 = vector.extract_strided_slice %433 {offsets = [0, 96], sizes = [8, 32], strides = [1, 1]} : vector<8x128xf32> to vector<8x32xf32>
    %444 = math.tanh %443 : vector<8x32xf32>
    %445 = arith.mulf %441, %428 : vector<8x32xf32>
    %446 = arith.mulf %440, %444 : vector<8x32xf32>
    %447 = arith.addf %445, %446 : vector<8x32xf32>
    %448 = math.tanh %447 : vector<8x32xf32>
    %449 = arith.mulf %442, %448 : vector<8x32xf32>
    %450 = tpu.concatenate %258, %160, %449 in 1 : vector<8x32xf32>, vector<8x32xf32>, vector<8x32xf32> -> vector<8x96xf32>
    %cst_118 = arith.constant dense<0.000000e+00> : vector<8x128xf32>
    %451 = tpu.matmul %450, %351, %cst_118 {dimension_numbers = #tpu.dot_dimension_numbers<[1], [0], [0], [1], [0, 0, 1, 1], [], []>} : vector<8x96xf32>, vector<96x128xf32>, vector<8x128xf32> -> vector<8x128xf32>
    %452 = arith.addf %451, %354 : vector<8x128xf32>
    %453 = vector.extract_strided_slice %452 {offsets = [0, 0], sizes = [8, 96], strides = [1, 1]} : vector<8x128xf32> to vector<8x96xf32>
    %454 = arith.negf %453 : vector<8x96xf32>
    %455 = math.exp %454 : vector<8x96xf32>
    %cst_119 = arith.constant 1.000000e+00 : f32
    %456 = vector.broadcast %cst_119 : f32 to vector<8x96xf32>
    %457 = arith.addf %456, %455 : vector<8x96xf32>
    %458 = arith.divf %456, %457 : vector<8x96xf32>
    %459 = vector.extract_strided_slice %458 {offsets = [0, 0], sizes = [8, 32], strides = [1, 1]} : vector<8x96xf32> to vector<8x32xf32>
    %460 = vector.extract_strided_slice %458 {offsets = [0, 32], sizes = [8, 32], strides = [1, 1]} : vector<8x96xf32> to vector<8x32xf32>
    %461 = vector.extract_strided_slice %458 {offsets = [0, 64], sizes = [8, 32], strides = [1, 1]} : vector<8x96xf32> to vector<8x32xf32>
    %462 = vector.extract_strided_slice %452 {offsets = [0, 96], sizes = [8, 32], strides = [1, 1]} : vector<8x128xf32> to vector<8x32xf32>
    %463 = math.tanh %462 : vector<8x32xf32>
    %464 = arith.mulf %460, %447 : vector<8x32xf32>
    %465 = arith.mulf %459, %463 : vector<8x32xf32>
    %466 = arith.addf %464, %465 : vector<8x32xf32>
    %467 = math.tanh %466 : vector<8x32xf32>
    %468 = arith.mulf %461, %467 : vector<8x32xf32>
    %469 = tpu.concatenate %296, %122, %468 in 1 : vector<8x32xf32>, vector<8x32xf32>, vector<8x32xf32> -> vector<8x96xf32>
    %cst_120 = arith.constant dense<0.000000e+00> : vector<8x128xf32>
    %470 = tpu.matmul %469, %351, %cst_120 {dimension_numbers = #tpu.dot_dimension_numbers<[1], [0], [0], [1], [0, 0, 1, 1], [], []>} : vector<8x96xf32>, vector<96x128xf32>, vector<8x128xf32> -> vector<8x128xf32>
    %471 = arith.addf %470, %354 : vector<8x128xf32>
    %472 = vector.extract_strided_slice %471 {offsets = [0, 0], sizes = [8, 96], strides = [1, 1]} : vector<8x128xf32> to vector<8x96xf32>
    %473 = arith.negf %472 : vector<8x96xf32>
    %474 = math.exp %473 : vector<8x96xf32>
    %cst_121 = arith.constant 1.000000e+00 : f32
    %475 = vector.broadcast %cst_121 : f32 to vector<8x96xf32>
    %476 = arith.addf %475, %474 : vector<8x96xf32>
    %477 = arith.divf %475, %476 : vector<8x96xf32>
    %478 = vector.extract_strided_slice %477 {offsets = [0, 0], sizes = [8, 32], strides = [1, 1]} : vector<8x96xf32> to vector<8x32xf32>
    %479 = vector.extract_strided_slice %477 {offsets = [0, 32], sizes = [8, 32], strides = [1, 1]} : vector<8x96xf32> to vector<8x32xf32>
    %480 = vector.extract_strided_slice %477 {offsets = [0, 64], sizes = [8, 32], strides = [1, 1]} : vector<8x96xf32> to vector<8x32xf32>
    %481 = vector.extract_strided_slice %471 {offsets = [0, 96], sizes = [8, 32], strides = [1, 1]} : vector<8x128xf32> to vector<8x32xf32>
    %482 = math.tanh %481 : vector<8x32xf32>
    %483 = arith.mulf %479, %466 : vector<8x32xf32>
    %484 = arith.mulf %478, %482 : vector<8x32xf32>
    %485 = arith.addf %483, %484 : vector<8x32xf32>
    %486 = math.tanh %485 : vector<8x32xf32>
    %487 = arith.mulf %480, %486 : vector<8x32xf32>
    %488 = tpu.concatenate %334, %84, %487 in 1 : vector<8x32xf32>, vector<8x32xf32>, vector<8x32xf32> -> vector<8x96xf32>
    %cst_122 = arith.constant dense<0.000000e+00> : vector<8x128xf32>
    %489 = tpu.matmul %488, %351, %cst_122 {dimension_numbers = #tpu.dot_dimension_numbers<[1], [0], [0], [1], [0, 0, 1, 1], [], []>} : vector<8x96xf32>, vector<96x128xf32>, vector<8x128xf32> -> vector<8x128xf32>
    %490 = arith.addf %489, %354 : vector<8x128xf32>
    %491 = vector.extract_strided_slice %490 {offsets = [0, 0], sizes = [8, 96], strides = [1, 1]} : vector<8x128xf32> to vector<8x96xf32>
    %492 = arith.negf %491 : vector<8x96xf32>
    %493 = math.exp %492 : vector<8x96xf32>
    %cst_123 = arith.constant 1.000000e+00 : f32
    %494 = vector.broadcast %cst_123 : f32 to vector<8x96xf32>
    %495 = arith.addf %494, %493 : vector<8x96xf32>
    %496 = arith.divf %494, %495 : vector<8x96xf32>
    %497 = vector.extract_strided_slice %496 {offsets = [0, 0], sizes = [8, 32], strides = [1, 1]} : vector<8x96xf32> to vector<8x32xf32>
    %498 = vector.extract_strided_slice %496 {offsets = [0, 32], sizes = [8, 32], strides = [1, 1]} : vector<8x96xf32> to vector<8x32xf32>
    %499 = vector.extract_strided_slice %496 {offsets = [0, 64], sizes = [8, 32], strides = [1, 1]} : vector<8x96xf32> to vector<8x32xf32>
    %500 = vector.extract_strided_slice %490 {offsets = [0, 96], sizes = [8, 32], strides = [1, 1]} : vector<8x128xf32> to vector<8x32xf32>
    %501 = math.tanh %500 : vector<8x32xf32>
    %502 = arith.mulf %498, %485 : vector<8x32xf32>
    %503 = arith.mulf %497, %501 : vector<8x32xf32>
    %504 = arith.addf %502, %503 : vector<8x32xf32>
    %505 = math.tanh %504 : vector<8x32xf32>
    %506 = arith.mulf %499, %505 : vector<8x32xf32>
    %c0_124 = arith.constant 0 : index
    %c0_125 = arith.constant 0 : index
    %507 = vector.load %arg8[%c0_124, %c0_125] : memref<32x384xf32, #tpu.memory_space<vmem>>, vector<32x384xf32>
    %cst_126 = arith.constant dense<0.000000e+00> : vector<8x384xf32>
    %508 = tpu.matmul %506, %507, %cst_126 {dimension_numbers = #tpu.dot_dimension_numbers<[1], [0], [0], [1], [0, 0, 1, 1], [], []>} : vector<8x32xf32>, vector<32x384xf32>, vector<8x384xf32> -> vector<8x384xf32>
    %c0_127 = arith.constant 0 : index
    %c0_128 = arith.constant 0 : index
    %509 = vector.load %arg9[%c0_127, %c0_128] : memref<1x384xf32, #tpu.memory_space<vmem>>, vector<1x384xf32>
    %510 = vector.broadcast %509 : vector<1x384xf32> to vector<8x384xf32>
    %511 = arith.addf %508, %510 : vector<8x384xf32>
    %cst_129 = arith.constant 0.000000e+00 : f32
    %512 = vector.broadcast %cst_129 : f32 to vector<8x384xf32>
    %513 = arith.cmpf ogt, %511, %512 : vector<8x384xf32>
    %514 = math.exp %511 : vector<8x384xf32>
    %cst_130 = arith.constant 1.000000e+00 : f32
    %515 = vector.broadcast %cst_130 : f32 to vector<8x384xf32>
    %516 = arith.subf %514, %515 : vector<8x384xf32>
    %cst_131 = arith.constant 1.67326319 : f32
    %517 = vector.broadcast %cst_131 : f32 to vector<8x384xf32>
    %518 = arith.mulf %517, %516 : vector<8x384xf32>
    %519 = arith.select %513, %511, %518 : vector<8x384xi1>, vector<8x384xf32>
    %cst_132 = arith.constant 1.05070102 : f32
    %520 = vector.broadcast %cst_132 : f32 to vector<8x384xf32>
    %521 = arith.mulf %520, %519 : vector<8x384xf32>
    %c0_133 = arith.constant 0 : index
    %c0_134 = arith.constant 0 : index
    %522 = vector.load %arg10[%c0_133, %c0_134] : memref<384x1xf32, #tpu.memory_space<vmem>>, vector<384x1xf32>
    %cst_135 = arith.constant dense<0.000000e+00> : vector<8x1xf32>
    %523 = tpu.matmul %521, %522, %cst_135 {dimension_numbers = #tpu.dot_dimension_numbers<[1], [0], [0], [1], [0, 0, 1, 1], [], []>} : vector<8x384xf32>, vector<384x1xf32>, vector<8x1xf32> -> vector<8x1xf32>
    %c0_136 = arith.constant 0 : index
    %c0_137 = arith.constant 0 : index
    %524 = vector.load %arg11[%c0_136, %c0_137] : memref<1x1xf32, #tpu.memory_space<vmem>>, vector<1x1xf32>
    %525 = vector.broadcast %524 : vector<1x1xf32> to vector<8x1xf32>
    %526 = arith.addf %523, %525 : vector<8x1xf32>
    %527 = arith.negf %526 : vector<8x1xf32>
    %528 = math.exp %527 : vector<8x1xf32>
    %cst_138 = arith.constant 1.000000e+00 : f32
    %529 = vector.broadcast %cst_138 : f32 to vector<8x1xf32>
    %530 = arith.addf %529, %528 : vector<8x1xf32>
    %531 = arith.divf %529, %530 : vector<8x1xf32>
    %c0_139 = arith.constant 0 : index
    %c0_140 = arith.constant 0 : index
    %532 = vector.load %arg12[%c0_139, %c0_140] : memref<8x1xf32, #tpu.memory_space<vmem>>, vector<8x1xf32>
    tpu.vector_store %arg12[%c0_139, %c0_140], %531 {strides = array<i32>} : memref<8x1xf32, #tpu.memory_space<vmem>>, vector<8x1xf32>,
    return
  }
  func.func @transform_0(%arg0: i32) -> (i32, i32, i32) {
    %c0_i32 = arith.constant 0 : i32
    %c0_i32_0 = arith.constant 0 : i32
    %c0_i32_1 = arith.constant 0 : i32
    return %c0_i32, %arg0, %c0_i32_0 : i32, i32, i32
  }
  func.func @transform_1(%arg0: i32) -> (i32, i32) {
    %c0_i32 = arith.constant 0 : i32
    %c0_i32_0 = arith.constant 0 : i32
    %c0_i32_1 = arith.constant 0 : i32
    return %c0_i32, %c0_i32_0 : i32, i32
  }
  func.func @transform_2(%arg0: i32) -> (i32, i32) {
    %c0_i32 = arith.constant 0 : i32
    %c0_i32_0 = arith.constant 0 : i32
    %c0_i32_1 = arith.constant 0 : i32
    return %c0_i32, %c0_i32_0 : i32, i32
  }
  func.func @transform_3(%arg0: i32) -> (i32, i32) {
    %c0_i32 = arith.constant 0 : i32
    %c0_i32_0 = arith.constant 0 : i32
    %c0_i32_1 = arith.constant 0 : i32
    return %c0_i32, %c0_i32_0 : i32, i32
  }
  func.func @transform_4(%arg0: i32) -> (i32, i32) {
    %c0_i32 = arith.constant 0 : i32
    %c0_i32_0 = arith.constant 0 : i32
    %c0_i32_1 = arith.constant 0 : i32
    return %c0_i32, %c0_i32_0 : i32, i32
  }
  func.func @transform_5(%arg0: i32) -> (i32, i32) {
    %c0_i32 = arith.constant 0 : i32
    %c0_i32_0 = arith.constant 0 : i32
    %c0_i32_1 = arith.constant 0 : i32
    return %c0_i32, %c0_i32_0 : i32, i32
  }
  func.func @transform_6(%arg0: i32) -> (i32, i32) {
    %c0_i32 = arith.constant 0 : i32
    %c0_i32_0 = arith.constant 0 : i32
    %c0_i32_1 = arith.constant 0 : i32
    return %c0_i32, %c0_i32_0 : i32, i32
  }
  func.func @transform_7(%arg0: i32) -> (i32, i32) {
    %c0_i32 = arith.constant 0 : i32
    %c0_i32_0 = arith.constant 0 : i32
    %c0_i32_1 = arith.constant 0 : i32
    return %c0_i32, %c0_i32_0 : i32, i32
  }
  func.func @transform_8(%arg0: i32) -> (i32, i32) {
    %c0_i32 = arith.constant 0 : i32
    %c0_i32_0 = arith.constant 0 : i32
    %c0_i32_1 = arith.constant 0 : i32
    return %c0_i32, %c0_i32_0 : i32, i32
  }
  func.func @transform_9(%arg0: i32) -> (i32, i32) {
    %c0_i32 = arith.constant 0 : i32
    %c0_i32_0 = arith.constant 0 : i32
    %c0_i32_1 = arith.constant 0 : i32
    return %c0_i32, %c0_i32_0 : i32, i32
  }
  func.func @transform_10(%arg0: i32) -> (i32, i32) {
    %c0_i32 = arith.constant 0 : i32
    %c0_i32_0 = arith.constant 0 : i32
    %c0_i32_1 = arith.constant 0 : i32
    return %c0_i32, %c0_i32_0 : i32, i32
  }
  func.func @transform_11(%arg0: i32) -> (i32, i32) {
    %c0_i32 = arith.constant 0 : i32
    %c0_i32_0 = arith.constant 0 : i32
    return %arg0, %c0_i32 : i32, i32
  }
}

</mosaic_0001>

<llo_original>
// kernel: lstm_model_forward.1
$region0: #{lstm_model_forward.1}
  #allocation0 [shape = 'u32[]', space=smem, size = 0x4, offset = 0x4, fixed_abs, tag = 'smem constant byte address 0x4 - core index']
  #allocation1 [shape = 'u32[144,128]{1,0:T(1,128)}', space=vmem, size = 0x12000, scoped, tag = 'internal scratch']
  #allocation2 [shape = 'f32[64,256]{1,0:T(8,128)}', space=vmem, size = 0x10000, scoped, tag = 'scratch operand']
  #allocation3 [shape = 'f32[1,1]{1,0:T(1,128)S(1)}', space=vmem, size = 0x200, scoped, tag = 'scoped memory for lstm_model_forward.1']
  %s0 = inlined_call_operand.vmem [shape: f32[8,8,4], index: 0, kind: input, shape index: {}]
  %s1 = inlined_call_operand.vmem [shape: f32[4,256], index: 1, kind: input, shape index: {}]
  %s2 = inlined_call_operand.vmem [shape: f32[32,128], index: 2, kind: input, shape index: {}]
  %s3 = inlined_call_operand.vmem [shape: f32[32,128], index: 3, kind: input, shape index: {}]
  %s4 = inlined_call_operand.vmem [shape: f32[1,256], index: 4, kind: input, shape index: {}]
  %s5 = inlined_call_operand.vmem [shape: f32[96,128], index: 5, kind: input, shape index: {}]
  %s6 = inlined_call_operand.vmem [shape: f32[1,128], index: 6, kind: input, shape index: {}]
  %s7 = inlined_call_operand.vmem [shape: f32[32,384], index: 7, kind: input, shape index: {}]
  %s8 = inlined_call_operand.vmem [shape: f32[1,384], index: 8, kind: input, shape index: {}]
  %s9 = inlined_call_operand.vmem [shape: f32[384,1], index: 9, kind: input, shape index: {}]
  %s10 = inlined_call_operand.<no memory space> [shape: f32[1,1], index: 10, kind: input, shape index: {}]
  %s11 = inlined_call_operand.vmem [shape: f32[8,1], index: 11, kind: output, shape index: {}]
  %s12 = sld [smem:[#allocation0]]
  $region54: #{lstm_model_forward.1} parent=0
    _
  %s14 = ssub.s32 1, %s12
  %s15 = scalar_select 0, %s14, %s12
  %v16 = vstv %s10
  %17 = vst [vmem:[#allocation3] sm:$0x1] %v16
  // Predicated region
  $region2: #{lstm_model_forward.1} parent=0 // pred_check
    _
  $region3: #{lstm_model_forward.1} parent=0 // pred_check_branch
    %19 = sbr.rel (0) target = $region5
  $region4: #{lstm_model_forward.1} parent=0 // pred_region
    _
  $region5: #{lstm_model_forward.1} parent=0 // pred_fallthru
    _
  // Predicated region
  $region6: #{lstm_model_forward.1} parent=0 // pred_check
    _
  $region7: #{lstm_model_forward.1} parent=0 // pred_check_branch
    %21 = sbr.rel (0) target = $region9
  $region8: #{lstm_model_forward.1} parent=0 // pred_region
    _
  $region9: #{lstm_model_forward.1} parent=0 // pred_fallthru
    _
  // Predicated region
  $region10: #{lstm_model_forward.1} parent=0 // pred_check
    _
  $region11: #{lstm_model_forward.1} parent=0 // pred_check_branch
    %23 = sbr.rel (0) target = $region13
  $region12: #{lstm_model_forward.1} parent=0 // pred_region
    _
  $region13: #{lstm_model_forward.1} parent=0 // pred_fallthru
    _
  // Predicated region
  $region14: #{lstm_model_forward.1} parent=0 // pred_check
    _
  $region15: #{lstm_model_forward.1} parent=0 // pred_check_branch
    %25 = sbr.rel (0) target = $region17
  $region16: #{lstm_model_forward.1} parent=0 // pred_region
    _
  $region17: #{lstm_model_forward.1} parent=0 // pred_fallthru
    _
  // Predicated region
  $region18: #{lstm_model_forward.1} parent=0 // pred_check
    _
  $region19: #{lstm_model_forward.1} parent=0 // pred_check_branch
    %27 = sbr.rel (0) target = $region21
  $region20: #{lstm_model_forward.1} parent=0 // pred_region
    _
  $region21: #{lstm_model_forward.1} parent=0 // pred_fallthru
    _
  // Predicated region
  $region22: #{lstm_model_forward.1} parent=0 // pred_check
    _
  $region23: #{lstm_model_forward.1} parent=0 // pred_check_branch
    %29 = sbr.rel (0) target = $region25
  $region24: #{lstm_model_forward.1} parent=0 // pred_region
    _
  $region25: #{lstm_model_forward.1} parent=0 // pred_fallthru
    _
  // Predicated region
  $region26: #{lstm_model_forward.1} parent=0 // pred_check
    _
  $region27: #{lstm_model_forward.1} parent=0 // pred_check_branch
    %31 = sbr.rel (0) target = $region29
  $region28: #{lstm_model_forward.1} parent=0 // pred_region
    _
  $region29: #{lstm_model_forward.1} parent=0 // pred_fallthru
    _
  // Predicated region
  $region30: #{lstm_model_forward.1} parent=0 // pred_check
    _
  $region31: #{lstm_model_forward.1} parent=0 // pred_check_branch
    %33 = sbr.rel (0) target = $region33
  $region32: #{lstm_model_forward.1} parent=0 // pred_region
    _
  $region33: #{lstm_model_forward.1} parent=0 // pred_fallthru
    _
  // Predicated region
  $region34: #{lstm_model_forward.1} parent=0 // pred_check
    _
  $region35: #{lstm_model_forward.1} parent=0 // pred_check_branch
    %35 = sbr.rel (0) target = $region37
  $region36: #{lstm_model_forward.1} parent=0 // pred_region
    _
  $region37: #{lstm_model_forward.1} parent=0 // pred_fallthru
    _
  // Predicated region
  $region38: #{lstm_model_forward.1} parent=0 // pred_check
    _
  $region39: #{lstm_model_forward.1} parent=0 // pred_check_branch
    %37 = sbr.rel (0) target = $region41
  $region40: #{lstm_model_forward.1} parent=0 // pred_region
    _
  $region41: #{lstm_model_forward.1} parent=0 // pred_fallthru
    _
  // Predicated region
  $region42: #{lstm_model_forward.1} parent=0 // pred_check
    _
  $region43: #{lstm_model_forward.1} parent=0 // pred_check_branch
    %39 = sbr.rel (0) target = $region45
  $region44: #{lstm_model_forward.1} parent=0 // pred_region
    _
  $region45: #{lstm_model_forward.1} parent=0 // pred_fallthru
    _
  %v40 = vld [vmem:[%s1] sm:$0xff]
  %v41 = vld [vmem:[%s4] sm:$0x3]
  %v43 = vlaneseq
  %v44 = vshrl.u32 %v43, 7
  %v45 = vsub.s32 0, %v44
  %v46 = vrot.slane %v41, %v45
  %v47 = vlaneseq
  %v48 = vshrl.u32 %v47, 7
  %v49 = vsub.s32 1, %v48
  %v50 = vrot.slane %v41, %v49
  %v53 = vld [vmem:[%s0] sm:$0xff]
  %v55 = vcombine.high %v40, %v40
  %vm56 = vcmask 31744
  %v58 = vsel %vm56, %v53, 0
  %vm60 = vcmask 1043456
  %v61 = vsel %vm60, %v40, 0
  %v63 = vsel %vm60, %v55, 0
  %65 = vmatprep.subr.mxu0 0.0
  %66 = vmatpush1.msra.mxu0 0.0
  %67 = vmatprep.subr.mxu0 0.0
  %68 = vmatpush1.msra.mxu0 0.0
  %69 = vmatprep.subr.mxu0 0.0
  %70 = vmatpush1.msra.mxu0 0.0
  %71 = vmatprep.subr.mxu0 0.0
  %72 = vmatpush1.msra.mxu0 0.0
  %73 = vmatprep.subr.mxu0 0.0
  %74 = vmatpush1.msra.mxu0 0.0
  %75 = vmatprep.subr.mxu0 0.0
  %76 = vmatpush1.msra.mxu0 0.0
  %77 = vmatprep.subr.mxu0 0.0
  %78 = vmatpush1.msra.mxu0 0.0
  %79 = vmatprep.subr.mxu0 0.0
  %80 = vmatpush1.msra.mxu0 0.0
  %81 = vmatprep.subr.mxu0 0.0
  %82 = vmatpush1.msra.mxu0 0.0
  %83 = vmatprep.subr.mxu0 0.0
  %84 = vmatpush1.msra.mxu0 0.0
  %85 = vmatprep.subr.mxu0 0.0
  %86 = vmatpush1.msra.mxu0 0.0
  %87 = vmatprep.subr.mxu0 0.0
  %88 = vmatpush1.msra.mxu0 0.0
  %89 = vmatprep.subr.mxu0 0.0
  %90 = vmatpush1.msra.mxu0 0.0
  %91 = vmatprep.subr.mxu0 0.0
  %92 = vmatpush1.msra.mxu0 0.0
  %93 = vmatprep.subr.mxu0 0.0
  %94 = vmatpush1.msra.mxu0 0.0
  %95 = vmatprep.subr.mxu0 %v63
  %96 = vmatpush1.msra.mxu0 %v61
  %97 = vmatprep.subr.mxu0 0.0
  %98 = vmatpush2.msra.mxu0 0.0
  %99 = vmatprep.subr.mxu0 0.0
  %100 = vmatpush2.msra.mxu0 0.0
  %101 = vmatprep.subr.mxu0 0.0
  %102 = vmatpush2.msra.mxu0 0.0
  %103 = vmatprep.subr.mxu0 0.0
  %104 = vmatpush2.msra.mxu0 0.0
  %105 = vmatprep.subr.mxu0 0.0
  %106 = vmatpush2.msra.mxu0 0.0
  %107 = vmatprep.subr.mxu0 0.0
  %108 = vmatpush2.msra.mxu0 0.0
  %109 = vmatprep.subr.mxu0 0.0
  %110 = vmatpush2.msra.mxu0 0.0
  %111 = vmatprep.subr.mxu0 0.0
  %112 = vmatpush2.msra.mxu0 0.0
  %113 = vmatprep.subr.mxu0 0.0
  %114 = vmatpush2.msra.mxu0 0.0
  %115 = vmatprep.subr.mxu0 0.0
  %116 = vmatpush2.msra.mxu0 0.0
  %117 = vmatprep.subr.mxu0 0.0
  %118 = vmatpush2.msra.mxu0 0.0
  %119 = vmatprep.subr.mxu0 0.0
  %120 = vmatpush2.msra.mxu0 0.0
  %121 = vmatprep.subr.mxu0 0.0
  %122 = vmatpush2.msra.mxu0 0.0
  %123 = vmatprep.subr.mxu0 0.0
  %124 = vmatpush2.msra.mxu0 0.0
  %125 = vmatprep.subr.mxu0 0.0
  %126 = vmatpush2.msra.mxu0 0.0
  %127 = vmatprep.subr.mxu0 0.0
  %128 = vmatpush2.msra.mxu0 0.0
  %129 = vmatprep.mubr.f32.mxu0 0.0
  %130 = vmatmul.mubr.f32.gmra.mxu0 %v58
  %v131 = vpop.f32.mrf.mxu0
  %v132 = vadd.f32 %v46, %v131
  %v133 = vpop.f32.mrf.mxu0
  %v134 = vadd.f32 %v50, %v133
  %135 = vdwg.mxu0
  %136 = vst [vmem:[#allocation2] sm:$0xff] %v132
  %137 = vst [vmem:[#allocation2 + $0x8] sm:$0xff] %v134
  %s138 = scalar_lea.vmem %s0, 8
  %v139 = vld [vmem:[%s138] sm:$0xff]
  %v141 = vsel %vm56, %v139, 0
  %143 = vmatprep.subr.mxu0 0.0
  %144 = vmatpush1.msra.mxu0 0.0
  %145 = vmatprep.subr.mxu0 0.0
  %146 = vmatpush1.msra.mxu0 0.0
  %147 = vmatprep.subr.mxu0 0.0
  %148 = vmatpush1.msra.mxu0 0.0
  %149 = vmatprep.subr.mxu0 0.0
  %150 = vmatpush1.msra.mxu0 0.0
  %151 = vmatprep.subr.mxu0 0.0
  %152 = vmatpush1.msra.mxu0 0.0
  %153 = vmatprep.subr.mxu0 0.0
  %154 = vmatpush1.msra.mxu0 0.0
  %155 = vmatprep.subr.mxu0 0.0
  %156 = vmatpush1.msra.mxu0 0.0
  %157 = vmatprep.subr.mxu0 0.0
  %158 = vmatpush1.msra.mxu0 0.0
  %159 = vmatprep.subr.mxu0 0.0
  %160 = vmatpush1.msra.mxu0 0.0
  %161 = vmatprep.subr.mxu0 0.0
  %162 = vmatpush1.msra.mxu0 0.0
  %163 = vmatprep.subr.mxu0 0.0
  %164 = vmatpush1.msra.mxu0 0.0
  %165 = vmatprep.subr.mxu0 0.0
  %166 = vmatpush1.msra.mxu0 0.0
  %167 = vmatprep.subr.mxu0 0.0
  %168 = vmatpush1.msra.mxu0 0.0
  %169 = vmatprep.subr.mxu0 0.0
  %170 = vmatpush1.msra.mxu0 0.0
  %171 = vmatprep.subr.mxu0 0.0
  %172 = vmatpush1.msra.mxu0 0.0
  %173 = vmatprep.subr.mxu0 %v63
  %174 = vmatpush1.msra.mxu0 %v61
  %175 = vmatprep.subr.mxu0 0.0
  %176 = vmatpush2.msra.mxu0 0.0
  %177 = vmatprep.subr.mxu0 0.0
  %178 = vmatpush2.msra.mxu0 0.0
  %179 = vmatprep.subr.mxu0 0.0
  %180 = vmatpush2.msra.mxu0 0.0
  %181 = vmatprep.subr.mxu0 0.0
  %182 = vmatpush2.msra.mxu0 0.0
  %183 = vmatprep.subr.mxu0 0.0
  %184 = vmatpush2.msra.mxu0 0.0
  %185 = vmatprep.subr.mxu0 0.0
  %186 = vmatpush2.msra.mxu0 0.0
  %187 = vmatprep.subr.mxu0 0.0
  %188 = vmatpush2.msra.mxu0 0.0
  %189 = vmatprep.subr.mxu0 0.0
  %190 = vmatpush2.msra.mxu0 0.0
  %191 = vmatprep.subr.mxu0 0.0
  %192 = vmatpush2.msra.mxu0 0.0
  %193 = vmatprep.subr.mxu0 0.0
  %194 = vmatpush2.msra.mxu0 0.0
  %195 = vmatprep.subr.mxu0 0.0
  %196 = vmatpush2.msra.mxu0 0.0
  %197 = vmatprep.subr.mxu0 0.0
  %198 = vmatpush2.msra.mxu0 0.0
  %199 = vmatprep.subr.mxu0 0.0
  %200 = vmatpush2.msra.mxu0 0.0
  %201 = vmatprep.subr.mxu0 0.0
  %202 = vmatpush2.msra.mxu0 0.0
  %203 = vmatprep.subr.mxu0 0.0
  %204 = vmatpush2.msra.mxu0 0.0
  %205 = vmatprep.subr.mxu0 0.0
  %206 = vmatpush2.msra.mxu0 0.0
  %207 = vmatprep.mubr.f32.mxu0 0.0
  %208 = vmatmul.mubr.f32.gmra.mxu0 %v141
  %v209 = vpop.f32.mrf.mxu0
  %v210 = vadd.f32 %v46, %v209
  %v211 = vpop.f32.mrf.mxu0
  %v212 = vadd.f32 %v50, %v211
  %213 = vdwg.mxu0
  %214 = vst [vmem:[#allocation2 + $0x10] sm:$0xff] %v210
  %215 = vst [vmem:[#allocation2 + $0x18] sm:$0xff] %v212
  %s216 = scalar_lea.vmem %s0, 16
  %v217 = vld [vmem:[%s216] sm:$0xff]
  %v219 = vsel %vm56, %v217, 0
  %221 = vmatprep.subr.mxu0 0.0
  %222 = vmatpush1.msra.mxu0 0.0
  %223 = vmatprep.subr.mxu0 0.0
  %224 = vmatpush1.msra.mxu0 0.0
  %225 = vmatprep.subr.mxu0 0.0
  %226 = vmatpush1.msra.mxu0 0.0
  %227 = vmatprep.subr.mxu0 0.0
  %228 = vmatpush1.msra.mxu0 0.0
  %229 = vmatprep.subr.mxu0 0.0
  %230 = vmatpush1.msra.mxu0 0.0
  %231 = vmatprep.subr.mxu0 0.0
  %232 = vmatpush1.msra.mxu0 0.0
  %233 = vmatprep.subr.mxu0 0.0
  %234 = vmatpush1.msra.mxu0 0.0
  %235 = vmatprep.subr.mxu0 0.0
  %236 = vmatpush1.msra.mxu0 0.0
  %237 = vmatprep.subr.mxu0 0.0
  %238 = vmatpush1.msra.mxu0 0.0
  %239 = vmatprep.subr.mxu0 0.0
  %240 = vmatpush1.msra.mxu0 0.0
  %241 = vmatprep.subr.mxu0 0.0
  %242 = vmatpush1.msra.mxu0 0.0
  %243 = vmatprep.subr.mxu0 0.0
  %244 = vmatpush1.msra.mxu0 0.0
  %245 = vmatprep.subr.mxu0 0.0
  %246 = vmatpush1.msra.mxu0 0.0
  %247 = vmatprep.subr.mxu0 0.0
  %248 = vmatpush1.msra.mxu0 0.0
  %249 = vmatprep.subr.mxu0 0.0
  %250 = vmatpush1.msra.mxu0 0.0
  %251 = vmatprep.subr.mxu0 %v63
  %252 = vmatpush1.msra.mxu0 %v61
  %253 = vmatprep.subr.mxu0 0.0
  %254 = vmatpush2.msra.mxu0 0.0
  %255 = vmatprep.subr.mxu0 0.0
  %256 = vmatpush2.msra.mxu0 0.0
  %257 = vmatprep.subr.mxu0 0.0
  %258 = vmatpush2.msra.mxu0 0.0
  %259 = vmatprep.subr.mxu0 0.0
  %260 = vmatpush2.msra.mxu0 0.0
  %261 = vmatprep.subr.mxu0 0.0
  %262 = vmatpush2.msra.mxu0 0.0
  %263 = vmatprep.subr.mxu0 0.0
  %264 = vmatpush2.msra.mxu0 0.0
  %265 = vmatprep.subr.mxu0 0.0
  %266 = vmatpush2.msra.mxu0 0.0
  %267 = vmatprep.subr.mxu0 0.0
  %268 = vmatpush2.msra.mxu0 0.0
  %269 = vmatprep.subr.mxu0 0.0
  %270 = vmatpush2.msra.mxu0 0.0
  %271 = vmatprep.subr.mxu0 0.0
  %272 = vmatpush2.msra.mxu0 0.0
  %273 = vmatprep.subr.mxu0 0.0
  %274 = vmatpush2.msra.mxu0 0.0
  %275 = vmatprep.subr.mxu0 0.0
  %276 = vmatpush2.msra.mxu0 0.0
  %277 = vmatprep.subr.mxu0 0.0
  %278 = vmatpush2.msra.mxu0 0.0
  %279 = vmatprep.subr.mxu0 0.0
  %280 = vmatpush2.msra.mxu0 0.0
  %281 = vmatprep.subr.mxu0 0.0
  %282 = vmatpush2.msra.mxu0 0.0
  %283 = vmatprep.subr.mxu0 0.0
  %284 = vmatpush2.msra.mxu0 0.0
  %285 = vmatprep.mubr.f32.mxu0 0.0
  %286 = vmatmul.mubr.f32.gmra.mxu0 %v219
  %v287 = vpop.f32.mrf.mxu0
  %v288 = vadd.f32 %v46, %v287
  %v289 = vpop.f32.mrf.mxu0
  %v290 = vadd.f32 %v50, %v289
  %291 = vdwg.mxu0
  %292 = vst [vmem:[#allocation2 + $0x20] sm:$0xff] %v288
  %293 = vst [vmem:[#allocation2 + $0x28] sm:$0xff] %v290
  %s294 = scalar_lea.vmem %s0, 24
  %v295 = vld [vmem:[%s294] sm:$0xff]
  %v297 = vsel %vm56, %v295, 0
  %299 = vmatprep.subr.mxu0 0.0
  %300 = vmatpush1.msra.mxu0 0.0
  %301 = vmatprep.subr.mxu0 0.0
  %302 = vmatpush1.msra.mxu0 0.0
  %303 = vmatprep.subr.mxu0 0.0
  %304 = vmatpush1.msra.mxu0 0.0
  %305 = vmatprep.subr.mxu0 0.0
  %306 = vmatpush1.msra.mxu0 0.0
  %307 = vmatprep.subr.mxu0 0.0
  %308 = vmatpush1.msra.mxu0 0.0
  %309 = vmatprep.subr.mxu0 0.0
  %310 = vmatpush1.msra.mxu0 0.0
  %311 = vmatprep.subr.mxu0 0.0
  %312 = vmatpush1.msra.mxu0 0.0
  %313 = vmatprep.subr.mxu0 0.0
  %314 = vmatpush1.msra.mxu0 0.0
  %315 = vmatprep.subr.mxu0 0.0
  %316 = vmatpush1.msra.mxu0 0.0
  %317 = vmatprep.subr.mxu0 0.0
  %318 = vmatpush1.msra.mxu0 0.0
  %319 = vmatprep.subr.mxu0 0.0
  %320 = vmatpush1.msra.mxu0 0.0
  %321 = vmatprep.subr.mxu0 0.0
  %322 = vmatpush1.msra.mxu0 0.0
  %323 = vmatprep.subr.mxu0 0.0
  %324 = vmatpush1.msra.mxu0 0.0
  %325 = vmatprep.subr.mxu0 0.0
  %326 = vmatpush1.msra.mxu0 0.0
  %327 = vmatprep.subr.mxu0 0.0
  %328 = vmatpush1.msra.mxu0 0.0
  %329 = vmatprep.subr.mxu0 %v63
  %330 = vmatpush1.msra.mxu0 %v61
  %331 = vmatprep.subr.mxu0 0.0
  %332 = vmatpush2.msra.mxu0 0.0
  %333 = vmatprep.subr.mxu0 0.0
  %334 = vmatpush2.msra.mxu0 0.0
  %335 = vmatprep.subr.mxu0 0.0
  %336 = vmatpush2.msra.mxu0 0.0
  %337 = vmatprep.subr.mxu0 0.0
  %338 = vmatpush2.msra.mxu0 0.0
  %339 = vmatprep.subr.mxu0 0.0
  %340 = vmatpush2.msra.mxu0 0.0
  %341 = vmatprep.subr.mxu0 0.0
  %342 = vmatpush2.msra.mxu0 0.0
  %343 = vmatprep.subr.mxu0 0.0
  %344 = vmatpush2.msra.mxu0 0.0
  %345 = vmatprep.subr.mxu0 0.0
  %346 = vmatpush2.msra.mxu0 0.0
  %347 = vmatprep.subr.mxu0 0.0
  %348 = vmatpush2.msra.mxu0 0.0
  %349 = vmatprep.subr.mxu0 0.0
  %350 = vmatpush2.msra.mxu0 0.0
  %351 = vmatprep.subr.mxu0 0.0
  %352 = vmatpush2.msra.mxu0 0.0
  %353 = vmatprep.subr.mxu0 0.0
  %354 = vmatpush2.msra.mxu0 0.0
  %355 = vmatprep.subr.mxu0 0.0
  %356 = vmatpush2.msra.mxu0 0.0
  %357 = vmatprep.subr.mxu0 0.0
  %358 = vmatpush2.msra.mxu0 0.0
  %359 = vmatprep.subr.mxu0 0.0
  %360 = vmatpush2.msra.mxu0 0.0
  %361 = vmatprep.subr.mxu0 0.0
  %362 = vmatpush2.msra.mxu0 0.0
  %363 = vmatprep.mubr.f32.mxu0 0.0
  %364 = vmatmul.mubr.f32.gmra.mxu0 %v297
  %v365 = vpop.f32.mrf.mxu0
  %v366 = vadd.f32 %v46, %v365
  %v367 = vpop.f32.mrf.mxu0
  %v368 = vadd.f32 %v50, %v367
  %369 = vdwg.mxu0
  %370 = vst [vmem:[#allocation2 + $0x30] sm:$0xff] %v366
  %371 = vst [vmem:[#allocation2 + $0x38] sm:$0xff] %v368
  %s372 = scalar_lea.vmem %s0, 32
  %v373 = vld [vmem:[%s372] sm:$0xff]
  %v375 = vsel %vm56, %v373, 0
  %377 = vmatprep.subr.mxu0 0.0
  %378 = vmatpush1.msra.mxu0 0.0
  %379 = vmatprep.subr.mxu0 0.0
  %380 = vmatpush1.msra.mxu0 0.0
  %381 = vmatprep.subr.mxu0 0.0
  %382 = vmatpush1.msra.mxu0 0.0
  %383 = vmatprep.subr.mxu0 0.0
  %384 = vmatpush1.msra.mxu0 0.0
  %385 = vmatprep.subr.mxu0 0.0
  %386 = vmatpush1.msra.mxu0 0.0
  %387 = vmatprep.subr.mxu0 0.0
  %388 = vmatpush1.msra.mxu0 0.0
  %389 = vmatprep.subr.mxu0 0.0
  %390 = vmatpush1.msra.mxu0 0.0
  %391 = vmatprep.subr.mxu0 0.0
  %392 = vmatpush1.msra.mxu0 0.0
  %393 = vmatprep.subr.mxu0 0.0
  %394 = vmatpush1.msra.mxu0 0.0
  %395 = vmatprep.subr.mxu0 0.0
  %396 = vmatpush1.msra.mxu0 0.0
  %397 = vmatprep.subr.mxu0 0.0
  %398 = vmatpush1.msra.mxu0 0.0
  %399 = vmatprep.subr.mxu0 0.0
  %400 = vmatpush1.msra.mxu0 0.0
  %401 = vmatprep.subr.mxu0 0.0
  %402 = vmatpush1.msra.mxu0 0.0
  %403 = vmatprep.subr.mxu0 0.0
  %404 = vmatpush1.msra.mxu0 0.0
  %405 = vmatprep.subr.mxu0 0.0
  %406 = vmatpush1.msra.mxu0 0.0
  %407 = vmatprep.subr.mxu0 %v63
  %408 = vmatpush1.msra.mxu0 %v61
  %409 = vmatprep.subr.mxu0 0.0
  %410 = vmatpush2.msra.mxu0 0.0
  %411 = vmatprep.subr.mxu0 0.0
  %412 = vmatpush2.msra.mxu0 0.0
  %413 = vmatprep.subr.mxu0 0.0
  %414 = vmatpush2.msra.mxu0 0.0
  %415 = vmatprep.subr.mxu0 0.0
  %416 = vmatpush2.msra.mxu0 0.0
  %417 = vmatprep.subr.mxu0 0.0
  %418 = vmatpush2.msra.mxu0 0.0
  %419 = vmatprep.subr.mxu0 0.0
  %420 = vmatpush2.msra.mxu0 0.0
  %421 = vmatprep.subr.mxu0 0.0
  %422 = vmatpush2.msra.mxu0 0.0
  %423 = vmatprep.subr.mxu0 0.0
  %424 = vmatpush2.msra.mxu0 0.0
  %425 = vmatprep.subr.mxu0 0.0
  %426 = vmatpush2.msra.mxu0 0.0
  %427 = vmatprep.subr.mxu0 0.0
  %428 = vmatpush2.msra.mxu0 0.0
  %429 = vmatprep.subr.mxu0 0.0
  %430 = vmatpush2.msra.mxu0 0.0
  %431 = vmatprep.subr.mxu0 0.0
  %432 = vmatpush2.msra.mxu0 0.0
  %433 = vmatprep.subr.mxu0 0.0
  %434 = vmatpush2.msra.mxu0 0.0
  %435 = vmatprep.subr.mxu0 0.0
  %436 = vmatpush2.msra.mxu0 0.0
  %437 = vmatprep.subr.mxu0 0.0
  %438 = vmatpush2.msra.mxu0 0.0
  %439 = vmatprep.subr.mxu0 0.0
  %440 = vmatpush2.msra.mxu0 0.0
  %441 = vmatprep.mubr.f32.mxu0 0.0
  %442 = vmatmul.mubr.f32.gmra.mxu0 %v375
  %v443 = vpop.f32.mrf.mxu0
  %v444 = vadd.f32 %v46, %v443
  %v445 = vpop.f32.mrf.mxu0
  %v446 = vadd.f32 %v50, %v445
  %447 = vdwg.mxu0
  %448 = vst [vmem:[#allocation2 + $0x40] sm:$0xff] %v444
  %449 = vst [vmem:[#allocation2 + $0x48] sm:$0xff] %v446
  %s450 = scalar_lea.vmem %s0, 40
  %v451 = vld [vmem:[%s450] sm:$0xff]
  %v453 = vsel %vm56, %v451, 0
  %455 = vmatprep.subr.mxu0 0.0
  %456 = vmatpush1.msra.mxu0 0.0
  %457 = vmatprep.subr.mxu0 0.0
  %458 = vmatpush1.msra.mxu0 0.0
  %459 = vmatprep.subr.mxu0 0.0
  %460 = vmatpush1.msra.mxu0 0.0
  %461 = vmatprep.subr.mxu0 0.0
  %462 = vmatpush1.msra.mxu0 0.0
  %463 = vmatprep.subr.mxu0 0.0
  %464 = vmatpush1.msra.mxu0 0.0
  %465 = vmatprep.subr.mxu0 0.0
  %466 = vmatpush1.msra.mxu0 0.0
  %467 = vmatprep.subr.mxu0 0.0
  %468 = vmatpush1.msra.mxu0 0.0
  %469 = vmatprep.subr.mxu0 0.0
  %470 = vmatpush1.msra.mxu0 0.0
  %471 = vmatprep.subr.mxu0 0.0
  %472 = vmatpush1.msra.mxu0 0.0
  %473 = vmatprep.subr.mxu0 0.0
  %474 = vmatpush1.msra.mxu0 0.0
  %475 = vmatprep.subr.mxu0 0.0
  %476 = vmatpush1.msra.mxu0 0.0
  %477 = vmatprep.subr.mxu0 0.0
  %478 = vmatpush1.msra.mxu0 0.0
  %479 = vmatprep.subr.mxu0 0.0
  %480 = vmatpush1.msra.mxu0 0.0
  %481 = vmatprep.subr.mxu0 0.0
  %482 = vmatpush1.msra.mxu0 0.0
  %483 = vmatprep.subr.mxu0 0.0
  %484 = vmatpush1.msra.mxu0 0.0
  %485 = vmatprep.subr.mxu0 %v63
  %486 = vmatpush1.msra.mxu0 %v61
  %487 = vmatprep.subr.mxu0 0.0
  %488 = vmatpush2.msra.mxu0 0.0
  %489 = vmatprep.subr.mxu0 0.0
  %490 = vmatpush2.msra.mxu0 0.0
  %491 = vmatprep.subr.mxu0 0.0
  %492 = vmatpush2.msra.mxu0 0.0
  %493 = vmatprep.subr.mxu0 0.0
  %494 = vmatpush2.msra.mxu0 0.0
  %495 = vmatprep.subr.mxu0 0.0
  %496 = vmatpush2.msra.mxu0 0.0
  %497 = vmatprep.subr.mxu0 0.0
  %498 = vmatpush2.msra.mxu0 0.0
  %499 = vmatprep.subr.mxu0 0.0
  %500 = vmatpush2.msra.mxu0 0.0
  %501 = vmatprep.subr.mxu0 0.0
  %502 = vmatpush2.msra.mxu0 0.0
  %503 = vmatprep.subr.mxu0 0.0
  %504 = vmatpush2.msra.mxu0 0.0
  %505 = vmatprep.subr.mxu0 0.0
  %506 = vmatpush2.msra.mxu0 0.0
  %507 = vmatprep.subr.mxu0 0.0
  %508 = vmatpush2.msra.mxu0 0.0
  %509 = vmatprep.subr.mxu0 0.0
  %510 = vmatpush2.msra.mxu0 0.0
  %511 = vmatprep.subr.mxu0 0.0
  %512 = vmatpush2.msra.mxu0 0.0
  %513 = vmatprep.subr.mxu0 0.0
  %514 = vmatpush2.msra.mxu0 0.0
  %515 = vmatprep.subr.mxu0 0.0
  %516 = vmatpush2.msra.mxu0 0.0
  %517 = vmatprep.subr.mxu0 0.0
  %518 = vmatpush2.msra.mxu0 0.0
  %519 = vmatprep.mubr.f32.mxu0 0.0
  %520 = vmatmul.mubr.f32.gmra.mxu0 %v453
  %v521 = vpop.f32.mrf.mxu0
  %v522 = vadd.f32 %v46, %v521
  %v523 = vpop.f32.mrf.mxu0
  %v524 = vadd.f32 %v50, %v523
  %525 = vdwg.mxu0
  %526 = vst [vmem:[#allocation2 + $0x50] sm:$0xff] %v522
  %527 = vst [vmem:[#allocation2 + $0x58] sm:$0xff] %v524
  %s528 = scalar_lea.vmem %s0, 48
  %v529 = vld [vmem:[%s528] sm:$0xff]
  %v531 = vsel %vm56, %v529, 0
  %533 = vmatprep.subr.mxu0 0.0
  %534 = vmatpush1.msra.mxu0 0.0
  %535 = vmatprep.subr.mxu0 0.0
  %536 = vmatpush1.msra.mxu0 0.0
  %537 = vmatprep.subr.mxu0 0.0
  %538 = vmatpush1.msra.mxu0 0.0
  %539 = vmatprep.subr.mxu0 0.0
  %540 = vmatpush1.msra.mxu0 0.0
  %541 = vmatprep.subr.mxu0 0.0
  %542 = vmatpush1.msra.mxu0 0.0
  %543 = vmatprep.subr.mxu0 0.0
  %544 = vmatpush1.msra.mxu0 0.0
  %545 = vmatprep.subr.mxu0 0.0
  %546 = vmatpush1.msra.mxu0 0.0
  %547 = vmatprep.subr.mxu0 0.0
  %548 = vmatpush1.msra.mxu0 0.0
  %549 = vmatprep.subr.mxu0 0.0
  %550 = vmatpush1.msra.mxu0 0.0
  %551 = vmatprep.subr.mxu0 0.0
  %552 = vmatpush1.msra.mxu0 0.0
  %553 = vmatprep.subr.mxu0 0.0
  %554 = vmatpush1.msra.mxu0 0.0
  %555 = vmatprep.subr.mxu0 0.0
  %556 = vmatpush1.msra.mxu0 0.0
  %557 = vmatprep.subr.mxu0 0.0
  %558 = vmatpush1.msra.mxu0 0.0
  %559 = vmatprep.subr.mxu0 0.0
  %560 = vmatpush1.msra.mxu0 0.0
  %561 = vmatprep.subr.mxu0 0.0
  %562 = vmatpush1.msra.mxu0 0.0
  %563 = vmatprep.subr.mxu0 %v63
  %564 = vmatpush1.msra.mxu0 %v61
  %565 = vmatprep.subr.mxu0 0.0
  %566 = vmatpush2.msra.mxu0 0.0
  %567 = vmatprep.subr.mxu0 0.0
  %568 = vmatpush2.msra.mxu0 0.0
  %569 = vmatprep.subr.mxu0 0.0
  %570 = vmatpush2.msra.mxu0 0.0
  %571 = vmatprep.subr.mxu0 0.0
  %572 = vmatpush2.msra.mxu0 0.0
  %573 = vmatprep.subr.mxu0 0.0
  %574 = vmatpush2.msra.mxu0 0.0
  %575 = vmatprep.subr.mxu0 0.0
  %576 = vmatpush2.msra.mxu0 0.0
  %577 = vmatprep.subr.mxu0 0.0
  %578 = vmatpush2.msra.mxu0 0.0
  %579 = vmatprep.subr.mxu0 0.0
  %580 = vmatpush2.msra.mxu0 0.0
  %581 = vmatprep.subr.mxu0 0.0
  %582 = vmatpush2.msra.mxu0 0.0
  %583 = vmatprep.subr.mxu0 0.0
  %584 = vmatpush2.msra.mxu0 0.0
  %585 = vmatprep.subr.mxu0 0.0
  %586 = vmatpush2.msra.mxu0 0.0
  %587 = vmatprep.subr.mxu0 0.0
  %588 = vmatpush2.msra.mxu0 0.0
  %589 = vmatprep.subr.mxu0 0.0
  %590 = vmatpush2.msra.mxu0 0.0
  %591 = vmatprep.subr.mxu0 0.0
  %592 = vmatpush2.msra.mxu0 0.0
  %593 = vmatprep.subr.mxu0 0.0
  %594 = vmatpush2.msra.mxu0 0.0
  %595 = vmatprep.subr.mxu0 0.0
  %596 = vmatpush2.msra.mxu0 0.0
  %597 = vmatprep.mubr.f32.mxu0 0.0
  %598 = vmatmul.mubr.f32.gmra.mxu0 %v531
  %v599 = vpop.f32.mrf.mxu0
  %v600 = vadd.f32 %v46, %v599
  %v601 = vpop.f32.mrf.mxu0
  %v602 = vadd.f32 %v50, %v601
  %603 = vdwg.mxu0
  %604 = vst [vmem:[#allocation2 + $0x60] sm:$0xff] %v600
  %605 = vst [vmem:[#allocation2 + $0x68] sm:$0xff] %v602
  %s606 = scalar_lea.vmem %s0, 56
  %v607 = vld [vmem:[%s606] sm:$0xff]
  %v609 = vsel %vm56, %v607, 0
  %611 = vmatprep.subr.mxu0 0.0
  %612 = vmatpush1.msra.mxu0 0.0
  %613 = vmatprep.subr.mxu0 0.0
  %614 = vmatpush1.msra.mxu0 0.0
  %615 = vmatprep.subr.mxu0 0.0
  %616 = vmatpush1.msra.mxu0 0.0
  %617 = vmatprep.subr.mxu0 0.0
  %618 = vmatpush1.msra.mxu0 0.0
  %619 = vmatprep.subr.mxu0 0.0
  %620 = vmatpush1.msra.mxu0 0.0
  %621 = vmatprep.subr.mxu0 0.0
  %622 = vmatpush1.msra.mxu0 0.0
  %623 = vmatprep.subr.mxu0 0.0
  %624 = vmatpush1.msra.mxu0 0.0
  %625 = vmatprep.subr.mxu0 0.0
  %626 = vmatpush1.msra.mxu0 0.0
  %627 = vmatprep.subr.mxu0 0.0
  %628 = vmatpush1.msra.mxu0 0.0
  %629 = vmatprep.subr.mxu0 0.0
  %630 = vmatpush1.msra.mxu0 0.0
  %631 = vmatprep.subr.mxu0 0.0
  %632 = vmatpush1.msra.mxu0 0.0
  %633 = vmatprep.subr.mxu0 0.0
  %634 = vmatpush1.msra.mxu0 0.0
  %635 = vmatprep.subr.mxu0 0.0
  %636 = vmatpush1.msra.mxu0 0.0
  %637 = vmatprep.subr.mxu0 0.0
  %638 = vmatpush1.msra.mxu0 0.0
  %639 = vmatprep.subr.mxu0 0.0
  %640 = vmatpush1.msra.mxu0 0.0
  %641 = vmatprep.subr.mxu0 %v63
  %642 = vmatpush1.msra.mxu0 %v61
  %643 = vmatprep.subr.mxu0 0.0
  %644 = vmatpush2.msra.mxu0 0.0
  %645 = vmatprep.subr.mxu0 0.0
  %646 = vmatpush2.msra.mxu0 0.0
  %647 = vmatprep.subr.mxu0 0.0
  %648 = vmatpush2.msra.mxu0 0.0
  %649 = vmatprep.subr.mxu0 0.0
  %650 = vmatpush2.msra.mxu0 0.0
  %651 = vmatprep.subr.mxu0 0.0
  %652 = vmatpush2.msra.mxu0 0.0
  %653 = vmatprep.subr.mxu0 0.0
  %654 = vmatpush2.msra.mxu0 0.0
  %655 = vmatprep.subr.mxu0 0.0
  %656 = vmatpush2.msra.mxu0 0.0
  %657 = vmatprep.subr.mxu0 0.0
  %658 = vmatpush2.msra.mxu0 0.0
  %659 = vmatprep.subr.mxu0 0.0
  %660 = vmatpush2.msra.mxu0 0.0
  %661 = vmatprep.subr.mxu0 0.0
  %662 = vmatpush2.msra.mxu0 0.0
  %663 = vmatprep.subr.mxu0 0.0
  %664 = vmatpush2.msra.mxu0 0.0
  %665 = vmatprep.subr.mxu0 0.0
  %666 = vmatpush2.msra.mxu0 0.0
  %667 = vmatprep.subr.mxu0 0.0
  %668 = vmatpush2.msra.mxu0 0.0
  %669 = vmatprep.subr.mxu0 0.0
  %670 = vmatpush2.msra.mxu0 0.0
  %671 = vmatprep.subr.mxu0 0.0
  %672 = vmatpush2.msra.mxu0 0.0
  %673 = vmatprep.subr.mxu0 0.0
  %674 = vmatpush2.msra.mxu0 0.0
  %675 = vmatprep.mubr.f32.mxu0 0.0
  %676 = vmatmul.mubr.f32.gmra.mxu0 %v609
  %v677 = vpop.f32.mrf.mxu0
  %v678 = vadd.f32 %v46, %v677
  %v679 = vpop.f32.mrf.mxu0
  %v680 = vadd.f32 %v50, %v679
  %681 = vdwg.mxu0
  %682 = vst [vmem:[#allocation2 + $0x70] sm:$0xff] %v678
  %683 = vst [vmem:[#allocation2 + $0x78] sm:$0xff] %v680
  %v684 = vld [vmem:[%s2] sm:$0xff]
  %v685 = vld [vmem:[%s2 + $0x8] sm:$0xff]
  %v686 = vld [vmem:[%s2 + $0x10] sm:$0xff]
  %v687 = vld [vmem:[%s2 + $0x18] sm:$0xff]
  %v688 = vld [vmem:[%s3] sm:$0xff]
  %v689 = vld [vmem:[%s3 + $0x8] sm:$0xff]
  %v690 = vld [vmem:[%s3 + $0x10] sm:$0xff]
  %v691 = vld [vmem:[%s3 + $0x18] sm:$0xff]
  %v692 = vld [vmem:[#allocation2] sm:$0xff]
  %v693 = vld [vmem:[#allocation2 + $0x78] sm:$0xff]
  %vm694 = vcmask 261120
  %v696 = vsel %vm694, 0.0, 0
  %698 = vmatprep.subr.mxu0 0.0
  %699 = vmatpush1.msra.mxu0 0.0
  %700 = vmatprep.subr.mxu0 0.0
  %701 = vmatpush1.msra.mxu0 0.0
  %702 = vmatprep.subr.mxu0 0.0
  %703 = vmatpush1.msra.mxu0 0.0
  %704 = vmatprep.subr.mxu0 0.0
  %705 = vmatpush1.msra.mxu0 0.0
  %706 = vmatprep.subr.mxu0 0.0
  %707 = vmatpush1.msra.mxu0 0.0
  %708 = vmatprep.subr.mxu0 0.0
  %709 = vmatpush1.msra.mxu0 0.0
  %710 = vmatprep.subr.mxu0 0.0
  %711 = vmatpush1.msra.mxu0 0.0
  %712 = vmatprep.subr.mxu0 0.0
  %713 = vmatpush1.msra.mxu0 0.0
  %714 = vmatprep.subr.mxu0 0.0
  %715 = vmatpush1.msra.mxu0 0.0
  %716 = vmatprep.subr.mxu0 0.0
  %717 = vmatpush1.msra.mxu0 0.0
  %718 = vmatprep.subr.mxu0 0.0
  %719 = vmatpush1.msra.mxu0 0.0
  %720 = vmatprep.subr.mxu0 0.0
  %721 = vmatpush1.msra.mxu0 0.0
  %722 = vmatprep.subr.mxu0 0.0
  %723 = vmatpush1.msra.mxu0 %v687
  %724 = vmatprep.subr.mxu0 0.0
  %725 = vmatpush1.msra.mxu0 %v686
  %726 = vmatprep.subr.mxu0 0.0
  %727 = vmatpush1.msra.mxu0 %v685
  %728 = vmatprep.subr.mxu0 0.0
  %729 = vmatpush1.msra.mxu0 %v684
  %730 = vmatprep.subr.mxu0 0.0
  %731 = vmatpush2.msra.mxu0 0.0
  %732 = vmatprep.subr.mxu0 0.0
  %733 = vmatpush2.msra.mxu0 0.0
  %734 = vmatprep.subr.mxu0 0.0
  %735 = vmatpush2.msra.mxu0 0.0
  %736 = vmatprep.subr.mxu0 0.0
  %737 = vmatpush2.msra.mxu0 0.0
  %738 = vmatprep.subr.mxu0 0.0
  %739 = vmatpush2.msra.mxu0 0.0
  %740 = vmatprep.subr.mxu0 0.0
  %741 = vmatpush2.msra.mxu0 0.0
  %742 = vmatprep.subr.mxu0 0.0
  %743 = vmatpush2.msra.mxu0 0.0
  %744 = vmatprep.subr.mxu0 0.0
  %745 = vmatpush2.msra.mxu0 0.0
  %746 = vmatprep.subr.mxu0 0.0
  %747 = vmatpush2.msra.mxu0 0.0
  %748 = vmatprep.subr.mxu0 0.0
  %749 = vmatpush2.msra.mxu0 0.0
  %750 = vmatprep.subr.mxu0 0.0
  %751 = vmatpush2.msra.mxu0 0.0
  %752 = vmatprep.subr.mxu0 0.0
  %753 = vmatpush2.msra.mxu0 0.0
  %754 = vmatprep.subr.mxu0 0.0
  %755 = vmatpush2.msra.mxu0 0.0
  %756 = vmatprep.subr.mxu0 0.0
  %757 = vmatpush2.msra.mxu0 0.0
  %758 = vmatprep.subr.mxu0 0.0
  %759 = vmatpush2.msra.mxu0 0.0
  %760 = vmatprep.subr.mxu0 0.0
  %761 = vmatpush2.msra.mxu0 0.0
  %762 = vmatprep.mubr.f32.mxu0 0.0
  %763 = vmatmul.mubr.f32.gmra.mxu0 %v696
  %v764 = vpop.f32.mrf.mxu0
  %v765 = vadd.f32 0.0, %v764
  %v766 = vpop.f32.mrf.mxu0
  %767 = vdwg.mxu0
  %v768 = vadd.f32 %v692, %v765
  %769 = vmatprep.subr.mxu0 0.0
  %770 = vmatpush1.msra.mxu0 0.0
  %771 = vmatprep.subr.mxu0 0.0
  %772 = vmatpush1.msra.mxu0 0.0
  %773 = vmatprep.subr.mxu0 0.0
  %774 = vmatpush1.msra.mxu0 0.0
  %775 = vmatprep.subr.mxu0 0.0
  %776 = vmatpush1.msra.mxu0 0.0
  %777 = vmatprep.subr.mxu0 0.0
  %778 = vmatpush1.msra.mxu0 0.0
  %779 = vmatprep.subr.mxu0 0.0
  %780 = vmatpush1.msra.mxu0 0.0
  %781 = vmatprep.subr.mxu0 0.0
  %782 = vmatpush1.msra.mxu0 0.0
  %783 = vmatprep.subr.mxu0 0.0
  %784 = vmatpush1.msra.mxu0 0.0
  %785 = vmatprep.subr.mxu0 0.0
  %786 = vmatpush1.msra.mxu0 0.0
  %787 = vmatprep.subr.mxu0 0.0
  %788 = vmatpush1.msra.mxu0 0.0
  %789 = vmatprep.subr.mxu0 0.0
  %790 = vmatpush1.msra.mxu0 0.0
  %791 = vmatprep.subr.mxu0 0.0
  %792 = vmatpush1.msra.mxu0 0.0
  %793 = vmatprep.subr.mxu0 0.0
  %794 = vmatpush1.msra.mxu0 %v691
  %795 = vmatprep.subr.mxu0 0.0
  %796 = vmatpush1.msra.mxu0 %v690
  %797 = vmatprep.subr.mxu0 0.0
  %798 = vmatpush1.msra.mxu0 %v689
  %799 = vmatprep.subr.mxu0 0.0
  %800 = vmatpush1.msra.mxu0 %v688
  %801 = vmatprep.subr.mxu0 0.0
  %802 = vmatpush2.msra.mxu0 0.0
  %803 = vmatprep.subr.mxu0 0.0
  %804 = vmatpush2.msra.mxu0 0.0
  %805 = vmatprep.subr.mxu0 0.0
  %806 = vmatpush2.msra.mxu0 0.0
  %807 = vmatprep.subr.mxu0 0.0
  %808 = vmatpush2.msra.mxu0 0.0
  %809 = vmatprep.subr.mxu0 0.0
  %810 = vmatpush2.msra.mxu0 0.0
  %811 = vmatprep.subr.mxu0 0.0
  %812 = vmatpush2.msra.mxu0 0.0
  %813 = vmatprep.subr.mxu0 0.0
  %814 = vmatpush2.msra.mxu0 0.0
  %815 = vmatprep.subr.mxu0 0.0
  %816 = vmatpush2.msra.mxu0 0.0
  %817 = vmatprep.subr.mxu0 0.0
  %818 = vmatpush2.msra.mxu0 0.0
  %819 = vmatprep.subr.mxu0 0.0
  %820 = vmatpush2.msra.mxu0 0.0
  %821 = vmatprep.subr.mxu0 0.0
  %822 = vmatpush2.msra.mxu0 0.0
  %823 = vmatprep.subr.mxu0 0.0
  %824 = vmatpush2.msra.mxu0 0.0
  %825 = vmatprep.subr.mxu0 0.0
  %826 = vmatpush2.msra.mxu0 0.0
  %827 = vmatprep.subr.mxu0 0.0
  %828 = vmatpush2.msra.mxu0 0.0
  %829 = vmatprep.subr.mxu0 0.0
  %830 = vmatpush2.msra.mxu0 0.0
  %831 = vmatprep.subr.mxu0 0.0
  %832 = vmatpush2.msra.mxu0 0.0
  %833 = vmatprep.mubr.f32.mxu0 0.0
  %834 = vmatmul.mubr.f32.gmra.mxu0 %v696
  %v835 = vpop.f32.mrf.mxu0
  %v836 = vadd.f32 0.0, %v835
  %v837 = vpop.f32.mrf.mxu0
  %838 = vdwg.mxu0
  %v839 = vadd.f32 %v693, %v836
  %v840 = vxor.u32 %v768, 2147483648
  %v841 = vmul.f32 %v840, 1.442695
  %v842 = vpow.pop %v841
  %v843 = vadd.f32 %v842, 1.0
  %v844 = vrcp.pop %v843
  %v845 = vmul.f32 1.0, %v844
  %v846 = vtanh.pop %v768
  %v847 = vmul.f32 %v845, 0.0
  %849 = vrot.lane.b32.xlu0 %v846, 32
  %v850 = vpop.permute.xlu0 %849
  %v852 = vmul.f32 %v845, %v850
  %854 = vrot.lane.b32.xlu0 %v852, 32
  %v855 = vpop.permute.xlu0 %854
  %v857 = vadd.f32 %v847, %v855
  %v858 = vtanh.pop %v857
  %860 = vrot.lane.b32.xlu0 %v858, 32
  %v861 = vpop.permute.xlu0 %860
  %v863 = vmul.f32 %v845, %v861
  %v864 = vxor.u32 %v839, 2147483648
  %v865 = vmul.f32 %v864, 1.442695
  %v866 = vpow.pop %v865
  %v867 = vadd.f32 %v866, 1.0
  %v868 = vrcp.pop %v867
  %v869 = vmul.f32 1.0, %v868
  %v870 = vtanh.pop %v839
  %v871 = vmul.f32 %v869, 0.0
  %873 = vrot.lane.b32.xlu0 %v870, 32
  %v874 = vpop.permute.xlu0 %873
  %v876 = vmul.f32 %v869, %v874
  %878 = vrot.lane.b32.xlu0 %v876, 32
  %v879 = vpop.permute.xlu0 %878
  %v881 = vadd.f32 %v871, %v879
  %v882 = vtanh.pop %v881
  %884 = vrot.lane.b32.xlu0 %v882, 32
  %v885 = vpop.permute.xlu0 %884
  %v887 = vmul.f32 %v869, %v885
  %v888 = vld [vmem:[#allocation2 + $0x10] sm:$0xff]
  %v889 = vld [vmem:[#allocation2 + $0x68] sm:$0xff]
  %891 = vrot.lane.b32.xlu0 %v863, 64
  %v892 = vpop.permute.xlu0 %891
  %v893 = vsel %vm694, %v892, 0
  %895 = vmatprep.subr.mxu0 0.0
  %896 = vmatpush1.msra.mxu0 0.0
  %897 = vmatprep.subr.mxu0 0.0
  %898 = vmatpush1.msra.mxu0 0.0
  %899 = vmatprep.subr.mxu0 0.0
  %900 = vmatpush1.msra.mxu0 0.0
  %901 = vmatprep.subr.mxu0 0.0
  %902 = vmatpush1.msra.mxu0 0.0
  %903 = vmatprep.subr.mxu0 0.0
  %904 = vmatpush1.msra.mxu0 0.0
  %905 = vmatprep.subr.mxu0 0.0
  %906 = vmatpush1.msra.mxu0 0.0
  %907 = vmatprep.subr.mxu0 0.0
  %908 = vmatpush1.msra.mxu0 0.0
  %909 = vmatprep.subr.mxu0 0.0
  %910 = vmatpush1.msra.mxu0 0.0
  %911 = vmatprep.subr.mxu0 0.0
  %912 = vmatpush1.msra.mxu0 0.0
  %913 = vmatprep.subr.mxu0 0.0
  %914 = vmatpush1.msra.mxu0 0.0
  %915 = vmatprep.subr.mxu0 0.0
  %916 = vmatpush1.msra.mxu0 0.0
  %917 = vmatprep.subr.mxu0 0.0
  %918 = vmatpush1.msra.mxu0 0.0
  %919 = vmatprep.subr.mxu0 0.0
  %920 = vmatpush1.msra.mxu0 %v687
  %921 = vmatprep.subr.mxu0 0.0
  %922 = vmatpush1.msra.mxu0 %v686
  %923 = vmatprep.subr.mxu0 0.0
  %924 = vmatpush1.msra.mxu0 %v685
  %925 = vmatprep.subr.mxu0 0.0
  %926 = vmatpush1.msra.mxu0 %v684
  %927 = vmatprep.subr.mxu0 0.0
  %928 = vmatpush2.msra.mxu0 0.0
  %929 = vmatprep.subr.mxu0 0.0
  %930 = vmatpush2.msra.mxu0 0.0
  %931 = vmatprep.subr.mxu0 0.0
  %932 = vmatpush2.msra.mxu0 0.0
  %933 = vmatprep.subr.mxu0 0.0
  %934 = vmatpush2.msra.mxu0 0.0
  %935 = vmatprep.subr.mxu0 0.0
  %936 = vmatpush2.msra.mxu0 0.0
  %937 = vmatprep.subr.mxu0 0.0
  %938 = vmatpush2.msra.mxu0 0.0
  %939 = vmatprep.subr.mxu0 0.0
  %940 = vmatpush2.msra.mxu0 0.0
  %941 = vmatprep.subr.mxu0 0.0
  %942 = vmatpush2.msra.mxu0 0.0
  %943 = vmatprep.subr.mxu0 0.0
  %944 = vmatpush2.msra.mxu0 0.0
  %945 = vmatprep.subr.mxu0 0.0
  %946 = vmatpush2.msra.mxu0 0.0
  %947 = vmatprep.subr.mxu0 0.0
  %948 = vmatpush2.msra.mxu0 0.0
  %949 = vmatprep.subr.mxu0 0.0
  %950 = vmatpush2.msra.mxu0 0.0
  %951 = vmatprep.subr.mxu0 0.0
  %952 = vmatpush2.msra.mxu0 0.0
  %953 = vmatprep.subr.mxu0 0.0
  %954 = vmatpush2.msra.mxu0 0.0
  %955 = vmatprep.subr.mxu0 0.0
  %956 = vmatpush2.msra.mxu0 0.0
  %957 = vmatprep.subr.mxu0 0.0
  %958 = vmatpush2.msra.mxu0 0.0
  %959 = vmatprep.mubr.f32.mxu0 0.0
  %960 = vmatmul.mubr.f32.gmra.mxu0 %v893
  %v961 = vpop.f32.mrf.mxu0
  %v962 = vadd.f32 0.0, %v961
  %v963 = vpop.f32.mrf.mxu0
  %964 = vdwg.mxu0
  %v965 = vadd.f32 %v888, %v962
  %967 = vrot.lane.b32.xlu0 %v887, 64
  %v968 = vpop.permute.xlu0 %967
  %v969 = vsel %vm694, %v968, 0
  %971 = vmatprep.subr.mxu0 0.0
  %972 = vmatpush1.msra.mxu0 0.0
  %973 = vmatprep.subr.mxu0 0.0
  %974 = vmatpush1.msra.mxu0 0.0
  %975 = vmatprep.subr.mxu0 0.0
  %976 = vmatpush1.msra.mxu0 0.0
  %977 = vmatprep.subr.mxu0 0.0
  %978 = vmatpush1.msra.mxu0 0.0
  %979 = vmatprep.subr.mxu0 0.0
  %980 = vmatpush1.msra.mxu0 0.0
  %981 = vmatprep.subr.mxu0 0.0
  %982 = vmatpush1.msra.mxu0 0.0
  %983 = vmatprep.subr.mxu0 0.0
  %984 = vmatpush1.msra.mxu0 0.0
  %985 = vmatprep.subr.mxu0 0.0
  %986 = vmatpush1.msra.mxu0 0.0
  %987 = vmatprep.subr.mxu0 0.0
  %988 = vmatpush1.msra.mxu0 0.0
  %989 = vmatprep.subr.mxu0 0.0
  %990 = vmatpush1.msra.mxu0 0.0
  %991 = vmatprep.subr.mxu0 0.0
  %992 = vmatpush1.msra.mxu0 0.0
  %993 = vmatprep.subr.mxu0 0.0
  %994 = vmatpush1.msra.mxu0 0.0
  %995 = vmatprep.subr.mxu0 0.0
  %996 = vmatpush1.msra.mxu0 %v691
  %997 = vmatprep.subr.mxu0 0.0
  %998 = vmatpush1.msra.mxu0 %v690
  %999 = vmatprep.subr.mxu0 0.0
  %1000 = vmatpush1.msra.mxu0 %v689
  %1001 = vmatprep.subr.mxu0 0.0
  %1002 = vmatpush1.msra.mxu0 %v688
  %1003 = vmatprep.subr.mxu0 0.0
  %1004 = vmatpush2.msra.mxu0 0.0
  %1005 = vmatprep.subr.mxu0 0.0
  %1006 = vmatpush2.msra.mxu0 0.0
  %1007 = vmatprep.subr.mxu0 0.0
  %1008 = vmatpush2.msra.mxu0 0.0
  %1009 = vmatprep.subr.mxu0 0.0
  %1010 = vmatpush2.msra.mxu0 0.0
  %1011 = vmatprep.subr.mxu0 0.0
  %1012 = vmatpush2.msra.mxu0 0.0
  %1013 = vmatprep.subr.mxu0 0.0
  %1014 = vmatpush2.msra.mxu0 0.0
  %1015 = vmatprep.subr.mxu0 0.0
  %1016 = vmatpush2.msra.mxu0 0.0
  %1017 = vmatprep.subr.mxu0 0.0
  %1018 = vmatpush2.msra.mxu0 0.0
  %1019 = vmatprep.subr.mxu0 0.0
  %1020 = vmatpush2.msra.mxu0 0.0
  %1021 = vmatprep.subr.mxu0 0.0
  %1022 = vmatpush2.msra.mxu0 0.0
  %1023 = vmatprep.subr.mxu0 0.0
  %1024 = vmatpush2.msra.mxu0 0.0
  %1025 = vmatprep.subr.mxu0 0.0
  %1026 = vmatpush2.msra.mxu0 0.0
  %1027 = vmatprep.subr.mxu0 0.0
  %1028 = vmatpush2.msra.mxu0 0.0
  %1029 = vmatprep.subr.mxu0 0.0
  %1030 = vmatpush2.msra.mxu0 0.0
  %1031 = vmatprep.subr.mxu0 0.0
  %1032 = vmatpush2.msra.mxu0 0.0
  %1033 = vmatprep.subr.mxu0 0.0
  %1034 = vmatpush2.msra.mxu0 0.0
  %1035 = vmatprep.mubr.f32.mxu0 0.0
  %1036 = vmatmul.mubr.f32.gmra.mxu0 %v969
  %v1037 = vpop.f32.mrf.mxu0
  %v1038 = vadd.f32 0.0, %v1037
  %v1039 = vpop.f32.mrf.mxu0
  %1040 = vdwg.mxu0
  %v1041 = vadd.f32 %v889, %v1038
  %v1042 = vxor.u32 %v965, 2147483648
  %v1043 = vmul.f32 %v1042, 1.442695
  %v1044 = vpow.pop %v1043
  %v1045 = vadd.f32 %v1044, 1.0
  %v1046 = vrcp.pop %v1045
  %v1047 = vmul.f32 1.0, %v1046
  %v1048 = vtanh.pop %v965
  %v1049 = vmul.f32 %v1047, %v857
  %1051 = vrot.lane.b32.xlu0 %v1048, 32
  %v1052 = vpop.permute.xlu0 %1051
  %v1054 = vmul.f32 %v1047, %v1052
  %1056 = vrot.lane.b32.xlu0 %v1054, 32
  %v1057 = vpop.permute.xlu0 %1056
  %v1059 = vadd.f32 %v1049, %v1057
  %v1060 = vtanh.pop %v1059
  %1062 = vrot.lane.b32.xlu0 %v1060, 32
  %v1063 = vpop.permute.xlu0 %1062
  %v1065 = vmul.f32 %v1047, %v1063
  %v1066 = vxor.u32 %v1041, 2147483648
  %v1067 = vmul.f32 %v1066, 1.442695
  %v1068 = vpow.pop %v1067
  %v1069 = vadd.f32 %v1068, 1.0
  %v1070 = vrcp.pop %v1069
  %v1071 = vmul.f32 1.0, %v1070
  %v1072 = vtanh.pop %v1041
  %v1073 = vmul.f32 %v1071, %v881
  %1075 = vrot.lane.b32.xlu0 %v1072, 32
  %v1076 = vpop.permute.xlu0 %1075
  %v1078 = vmul.f32 %v1071, %v1076
  %1080 = vrot.lane.b32.xlu0 %v1078, 32
  %v1081 = vpop.permute.xlu0 %1080
  %v1083 = vadd.f32 %v1073, %v1081
  %v1084 = vtanh.pop %v1083
  %1086 = vrot.lane.b32.xlu0 %v1084, 32
  %v1087 = vpop.permute.xlu0 %1086
  %v1089 = vmul.f32 %v1071, %v1087
  %v1090 = vld [vmem:[#allocation2 + $0x20] sm:$0xff]
  %v1091 = vld [vmem:[#allocation2 + $0x58] sm:$0xff]
  %1093 = vrot.lane.b32.xlu0 %v1065, 64
  %v1094 = vpop.permute.xlu0 %1093
  %v1095 = vsel %vm694, %v1094, 0
  %1097 = vmatprep.subr.mxu0 0.0
  %1098 = vmatpush1.msra.mxu0 0.0
  %1099 = vmatprep.subr.mxu0 0.0
  %1100 = vmatpush1.msra.mxu0 0.0
  %1101 = vmatprep.subr.mxu0 0.0
  %1102 = vmatpush1.msra.mxu0 0.0
  %1103 = vmatprep.subr.mxu0 0.0
  %1104 = vmatpush1.msra.mxu0 0.0
  %1105 = vmatprep.subr.mxu0 0.0
  %1106 = vmatpush1.msra.mxu0 0.0
  %1107 = vmatprep.subr.mxu0 0.0
  %1108 = vmatpush1.msra.mxu0 0.0
  %1109 = vmatprep.subr.mxu0 0.0
  %1110 = vmatpush1.msra.mxu0 0.0
  %1111 = vmatprep.subr.mxu0 0.0
  %1112 = vmatpush1.msra.mxu0 0.0
  %1113 = vmatprep.subr.mxu0 0.0
  %1114 = vmatpush1.msra.mxu0 0.0
  %1115 = vmatprep.subr.mxu0 0.0
  %1116 = vmatpush1.msra.mxu0 0.0
  %1117 = vmatprep.subr.mxu0 0.0
  %1118 = vmatpush1.msra.mxu0 0.0
  %1119 = vmatprep.subr.mxu0 0.0
  %1120 = vmatpush1.msra.mxu0 0.0
  %1121 = vmatprep.subr.mxu0 0.0
  %1122 = vmatpush1.msra.mxu0 %v687
  %1123 = vmatprep.subr.mxu0 0.0
  %1124 = vmatpush1.msra.mxu0 %v686
  %1125 = vmatprep.subr.mxu0 0.0
  %1126 = vmatpush1.msra.mxu0 %v685
  %1127 = vmatprep.subr.mxu0 0.0
  %1128 = vmatpush1.msra.mxu0 %v684
  %1129 = vmatprep.subr.mxu0 0.0
  %1130 = vmatpush2.msra.mxu0 0.0
  %1131 = vmatprep.subr.mxu0 0.0
  %1132 = vmatpush2.msra.mxu0 0.0
  %1133 = vmatprep.subr.mxu0 0.0
  %1134 = vmatpush2.msra.mxu0 0.0
  %1135 = vmatprep.subr.mxu0 0.0
  %1136 = vmatpush2.msra.mxu0 0.0
  %1137 = vmatprep.subr.mxu0 0.0
  %1138 = vmatpush2.msra.mxu0 0.0
  %1139 = vmatprep.subr.mxu0 0.0
  %1140 = vmatpush2.msra.mxu0 0.0
  %1141 = vmatprep.subr.mxu0 0.0
  %1142 = vmatpush2.msra.mxu0 0.0
  %1143 = vmatprep.subr.mxu0 0.0
  %1144 = vmatpush2.msra.mxu0 0.0
  %1145 = vmatprep.subr.mxu0 0.0
  %1146 = vmatpush2.msra.mxu0 0.0
  %1147 = vmatprep.subr.mxu0 0.0
  %1148 = vmatpush2.msra.mxu0 0.0
  %1149 = vmatprep.subr.mxu0 0.0
  %1150 = vmatpush2.msra.mxu0 0.0
  %1151 = vmatprep.subr.mxu0 0.0
  %1152 = vmatpush2.msra.mxu0 0.0
  %1153 = vmatprep.subr.mxu0 0.0
  %1154 = vmatpush2.msra.mxu0 0.0
  %1155 = vmatprep.subr.mxu0 0.0
  %1156 = vmatpush2.msra.mxu0 0.0
  %1157 = vmatprep.subr.mxu0 0.0
  %1158 = vmatpush2.msra.mxu0 0.0
  %1159 = vmatprep.subr.mxu0 0.0
  %1160 = vmatpush2.msra.mxu0 0.0
  %1161 = vmatprep.mubr.f32.mxu0 0.0
  %1162 = vmatmul.mubr.f32.gmra.mxu0 %v1095
  %v1163 = vpop.f32.mrf.mxu0
  %v1164 = vadd.f32 0.0, %v1163
  %v1165 = vpop.f32.mrf.mxu0
  %1166 = vdwg.mxu0
  %v1167 = vadd.f32 %v1090, %v1164
  %1169 = vrot.lane.b32.xlu0 %v1089, 64
  %v1170 = vpop.permute.xlu0 %1169
  %v1171 = vsel %vm694, %v1170, 0
  %1173 = vmatprep.subr.mxu0 0.0
  %1174 = vmatpush1.msra.mxu0 0.0
  %1175 = vmatprep.subr.mxu0 0.0
  %1176 = vmatpush1.msra.mxu0 0.0
  %1177 = vmatprep.subr.mxu0 0.0
  %1178 = vmatpush1.msra.mxu0 0.0
  %1179 = vmatprep.subr.mxu0 0.0
  %1180 = vmatpush1.msra.mxu0 0.0
  %1181 = vmatprep.subr.mxu0 0.0
  %1182 = vmatpush1.msra.mxu0 0.0
  %1183 = vmatprep.subr.mxu0 0.0
  %1184 = vmatpush1.msra.mxu0 0.0
  %1185 = vmatprep.subr.mxu0 0.0
  %1186 = vmatpush1.msra.mxu0 0.0
  %1187 = vmatprep.subr.mxu0 0.0
  %1188 = vmatpush1.msra.mxu0 0.0
  %1189 = vmatprep.subr.mxu0 0.0
  %1190 = vmatpush1.msra.mxu0 0.0
  %1191 = vmatprep.subr.mxu0 0.0
  %1192 = vmatpush1.msra.mxu0 0.0
  %1193 = vmatprep.subr.mxu0 0.0
  %1194 = vmatpush1.msra.mxu0 0.0
  %1195 = vmatprep.subr.mxu0 0.0
  %1196 = vmatpush1.msra.mxu0 0.0
  %1197 = vmatprep.subr.mxu0 0.0
  %1198 = vmatpush1.msra.mxu0 %v691
  %1199 = vmatprep.subr.mxu0 0.0
  %1200 = vmatpush1.msra.mxu0 %v690
  %1201 = vmatprep.subr.mxu0 0.0
  %1202 = vmatpush1.msra.mxu0 %v689
  %1203 = vmatprep.subr.mxu0 0.0
  %1204 = vmatpush1.msra.mxu0 %v688
  %1205 = vmatprep.subr.mxu0 0.0
  %1206 = vmatpush2.msra.mxu0 0.0
  %1207 = vmatprep.subr.mxu0 0.0
  %1208 = vmatpush2.msra.mxu0 0.0
  %1209 = vmatprep.subr.mxu0 0.0
  %1210 = vmatpush2.msra.mxu0 0.0
  %1211 = vmatprep.subr.mxu0 0.0
  %1212 = vmatpush2.msra.mxu0 0.0
  %1213 = vmatprep.subr.mxu0 0.0
  %1214 = vmatpush2.msra.mxu0 0.0
  %1215 = vmatprep.subr.mxu0 0.0
  %1216 = vmatpush2.msra.mxu0 0.0
  %1217 = vmatprep.subr.mxu0 0.0
  %1218 = vmatpush2.msra.mxu0 0.0
  %1219 = vmatprep.subr.mxu0 0.0
  %1220 = vmatpush2.msra.mxu0 0.0
  %1221 = vmatprep.subr.mxu0 0.0
  %1222 = vmatpush2.msra.mxu0 0.0
  %1223 = vmatprep.subr.mxu0 0.0
  %1224 = vmatpush2.msra.mxu0 0.0
  %1225 = vmatprep.subr.mxu0 0.0
  %1226 = vmatpush2.msra.mxu0 0.0
  %1227 = vmatprep.subr.mxu0 0.0
  %1228 = vmatpush2.msra.mxu0 0.0
  %1229 = vmatprep.subr.mxu0 0.0
  %1230 = vmatpush2.msra.mxu0 0.0
  %1231 = vmatprep.subr.mxu0 0.0
  %1232 = vmatpush2.msra.mxu0 0.0
  %1233 = vmatprep.subr.mxu0 0.0
  %1234 = vmatpush2.msra.mxu0 0.0
  %1235 = vmatprep.subr.mxu0 0.0
  %1236 = vmatpush2.msra.mxu0 0.0
  %1237 = vmatprep.mubr.f32.mxu0 0.0
  %1238 = vmatmul.mubr.f32.gmra.mxu0 %v1171
  %v1239 = vpop.f32.mrf.mxu0
  %v1240 = vadd.f32 0.0, %v1239
  %v1241 = vpop.f32.mrf.mxu0
  %1242 = vdwg.mxu0
  %v1243 = vadd.f32 %v1091, %v1240
  %v1244 = vxor.u32 %v1167, 2147483648
  %v1245 = vmul.f32 %v1244, 1.442695
  %v1246 = vpow.pop %v1245
  %v1247 = vadd.f32 %v1246, 1.0
  %v1248 = vrcp.pop %v1247
  %v1249 = vmul.f32 1.0, %v1248
  %v1250 = vtanh.pop %v1167
  %v1251 = vmul.f32 %v1249, %v1059
  %1253 = vrot.lane.b32.xlu0 %v1250, 32
  %v1254 = vpop.permute.xlu0 %1253
  %v1256 = vmul.f32 %v1249, %v1254
  %1258 = vrot.lane.b32.xlu0 %v1256, 32
  %v1259 = vpop.permute.xlu0 %1258
  %v1261 = vadd.f32 %v1251, %v1259
  %v1262 = vtanh.pop %v1261
  %1264 = vrot.lane.b32.xlu0 %v1262, 32
  %v1265 = vpop.permute.xlu0 %1264
  %v1267 = vmul.f32 %v1249, %v1265
  %v1268 = vxor.u32 %v1243, 2147483648
  %v1269 = vmul.f32 %v1268, 1.442695
  %v1270 = vpow.pop %v1269
  %v1271 = vadd.f32 %v1270, 1.0
  %v1272 = vrcp.pop %v1271
  %v1273 = vmul.f32 1.0, %v1272
  %v1274 = vtanh.pop %v1243
  %v1275 = vmul.f32 %v1273, %v1083
  %1277 = vrot.lane.b32.xlu0 %v1274, 32
  %v1278 = vpop.permute.xlu0 %1277
  %v1280 = vmul.f32 %v1273, %v1278
  %1282 = vrot.lane.b32.xlu0 %v1280, 32
  %v1283 = vpop.permute.xlu0 %1282
  %v1285 = vadd.f32 %v1275, %v1283
  %v1286 = vtanh.pop %v1285
  %1288 = vrot.lane.b32.xlu0 %v1286, 32
  %v1289 = vpop.permute.xlu0 %1288
  %v1291 = vmul.f32 %v1273, %v1289
  %v1292 = vld [vmem:[#allocation2 + $0x30] sm:$0xff]
  %v1293 = vld [vmem:[#allocation2 + $0x48] sm:$0xff]
  %1295 = vrot.lane.b32.xlu0 %v1267, 64
  %v1296 = vpop.permute.xlu0 %1295
  %v1297 = vsel %vm694, %v1296, 0
  %1299 = vmatprep.subr.mxu0 0.0
  %1300 = vmatpush1.msra.mxu0 0.0
  %1301 = vmatprep.subr.mxu0 0.0
  %1302 = vmatpush1.msra.mxu0 0.0
  %1303 = vmatprep.subr.mxu0 0.0
  %1304 = vmatpush1.msra.mxu0 0.0
  %1305 = vmatprep.subr.mxu0 0.0
  %1306 = vmatpush1.msra.mxu0 0.0
  %1307 = vmatprep.subr.mxu0 0.0
  %1308 = vmatpush1.msra.mxu0 0.0
  %1309 = vmatprep.subr.mxu0 0.0
  %1310 = vmatpush1.msra.mxu0 0.0
  %1311 = vmatprep.subr.mxu0 0.0
  %1312 = vmatpush1.msra.mxu0 0.0
  %1313 = vmatprep.subr.mxu0 0.0
  %1314 = vmatpush1.msra.mxu0 0.0
  %1315 = vmatprep.subr.mxu0 0.0
  %1316 = vmatpush1.msra.mxu0 0.0
  %1317 = vmatprep.subr.mxu0 0.0
  %1318 = vmatpush1.msra.mxu0 0.0
  %1319 = vmatprep.subr.mxu0 0.0
  %1320 = vmatpush1.msra.mxu0 0.0
  %1321 = vmatprep.subr.mxu0 0.0
  %1322 = vmatpush1.msra.mxu0 0.0
  %1323 = vmatprep.subr.mxu0 0.0
  %1324 = vmatpush1.msra.mxu0 %v687
  %1325 = vmatprep.subr.mxu0 0.0
  %1326 = vmatpush1.msra.mxu0 %v686
  %1327 = vmatprep.subr.mxu0 0.0
  %1328 = vmatpush1.msra.mxu0 %v685
  %1329 = vmatprep.subr.mxu0 0.0
  %1330 = vmatpush1.msra.mxu0 %v684
  %1331 = vmatprep.subr.mxu0 0.0
  %1332 = vmatpush2.msra.mxu0 0.0
  %1333 = vmatprep.subr.mxu0 0.0
  %1334 = vmatpush2.msra.mxu0 0.0
  %1335 = vmatprep.subr.mxu0 0.0
  %1336 = vmatpush2.msra.mxu0 0.0
  %1337 = vmatprep.subr.mxu0 0.0
  %1338 = vmatpush2.msra.mxu0 0.0
  %1339 = vmatprep.subr.mxu0 0.0
  %1340 = vmatpush2.msra.mxu0 0.0
  %1341 = vmatprep.subr.mxu0 0.0
  %1342 = vmatpush2.msra.mxu0 0.0
  %1343 = vmatprep.subr.mxu0 0.0
  %1344 = vmatpush2.msra.mxu0 0.0
  %1345 = vmatprep.subr.mxu0 0.0
  %1346 = vmatpush2.msra.mxu0 0.0
  %1347 = vmatprep.subr.mxu0 0.0
  %1348 = vmatpush2.msra.mxu0 0.0
  %1349 = vmatprep.subr.mxu0 0.0
  %1350 = vmatpush2.msra.mxu0 0.0
  %1351 = vmatprep.subr.mxu0 0.0
  %1352 = vmatpush2.msra.mxu0 0.0
  %1353 = vmatprep.subr.mxu0 0.0
  %1354 = vmatpush2.msra.mxu0 0.0
  %1355 = vmatprep.subr.mxu0 0.0
  %1356 = vmatpush2.msra.mxu0 0.0
  %1357 = vmatprep.subr.mxu0 0.0
  %1358 = vmatpush2.msra.mxu0 0.0
  %1359 = vmatprep.subr.mxu0 0.0
  %1360 = vmatpush2.msra.mxu0 0.0
  %1361 = vmatprep.subr.mxu0 0.0
  %1362 = vmatpush2.msra.mxu0 0.0
  %1363 = vmatprep.mubr.f32.mxu0 0.0
  %1364 = vmatmul.mubr.f32.gmra.mxu0 %v1297
  %v1365 = vpop.f32.mrf.mxu0
  %v1366 = vadd.f32 0.0, %v1365
  %v1367 = vpop.f32.mrf.mxu0
  %1368 = vdwg.mxu0
  %v1369 = vadd.f32 %v1292, %v1366
  %1371 = vrot.lane.b32.xlu0 %v1291, 64
  %v1372 = vpop.permute.xlu0 %1371
  %v1373 = vsel %vm694, %v1372, 0
  %1375 = vmatprep.subr.mxu0 0.0
  %1376 = vmatpush1.msra.mxu0 0.0
  %1377 = vmatprep.subr.mxu0 0.0
  %1378 = vmatpush1.msra.mxu0 0.0
  %1379 = vmatprep.subr.mxu0 0.0
  %1380 = vmatpush1.msra.mxu0 0.0
  %1381 = vmatprep.subr.mxu0 0.0
  %1382 = vmatpush1.msra.mxu0 0.0
  %1383 = vmatprep.subr.mxu0 0.0
  %1384 = vmatpush1.msra.mxu0 0.0
  %1385 = vmatprep.subr.mxu0 0.0
  %1386 = vmatpush1.msra.mxu0 0.0
  %1387 = vmatprep.subr.mxu0 0.0
  %1388 = vmatpush1.msra.mxu0 0.0
  %1389 = vmatprep.subr.mxu0 0.0
  %1390 = vmatpush1.msra.mxu0 0.0
  %1391 = vmatprep.subr.mxu0 0.0
  %1392 = vmatpush1.msra.mxu0 0.0
  %1393 = vmatprep.subr.mxu0 0.0
  %1394 = vmatpush1.msra.mxu0 0.0
  %1395 = vmatprep.subr.mxu0 0.0
  %1396 = vmatpush1.msra.mxu0 0.0
  %1397 = vmatprep.subr.mxu0 0.0
  %1398 = vmatpush1.msra.mxu0 0.0
  %1399 = vmatprep.subr.mxu0 0.0
  %1400 = vmatpush1.msra.mxu0 %v691
  %1401 = vmatprep.subr.mxu0 0.0
  %1402 = vmatpush1.msra.mxu0 %v690
  %1403 = vmatprep.subr.mxu0 0.0
  %1404 = vmatpush1.msra.mxu0 %v689
  %1405 = vmatprep.subr.mxu0 0.0
  %1406 = vmatpush1.msra.mxu0 %v688
  %1407 = vmatprep.subr.mxu0 0.0
  %1408 = vmatpush2.msra.mxu0 0.0
  %1409 = vmatprep.subr.mxu0 0.0
  %1410 = vmatpush2.msra.mxu0 0.0
  %1411 = vmatprep.subr.mxu0 0.0
  %1412 = vmatpush2.msra.mxu0 0.0
  %1413 = vmatprep.subr.mxu0 0.0
  %1414 = vmatpush2.msra.mxu0 0.0
  %1415 = vmatprep.subr.mxu0 0.0
  %1416 = vmatpush2.msra.mxu0 0.0
  %1417 = vmatprep.subr.mxu0 0.0
  %1418 = vmatpush2.msra.mxu0 0.0
  %1419 = vmatprep.subr.mxu0 0.0
  %1420 = vmatpush2.msra.mxu0 0.0
  %1421 = vmatprep.subr.mxu0 0.0
  %1422 = vmatpush2.msra.mxu0 0.0
  %1423 = vmatprep.subr.mxu0 0.0
  %1424 = vmatpush2.msra.mxu0 0.0
  %1425 = vmatprep.subr.mxu0 0.0
  %1426 = vmatpush2.msra.mxu0 0.0
  %1427 = vmatprep.subr.mxu0 0.0
  %1428 = vmatpush2.msra.mxu0 0.0
  %1429 = vmatprep.subr.mxu0 0.0
  %1430 = vmatpush2.msra.mxu0 0.0
  %1431 = vmatprep.subr.mxu0 0.0
  %1432 = vmatpush2.msra.mxu0 0.0
  %1433 = vmatprep.subr.mxu0 0.0
  %1434 = vmatpush2.msra.mxu0 0.0
  %1435 = vmatprep.subr.mxu0 0.0
  %1436 = vmatpush2.msra.mxu0 0.0
  %1437 = vmatprep.subr.mxu0 0.0
  %1438 = vmatpush2.msra.mxu0 0.0
  %1439 = vmatprep.mubr.f32.mxu0 0.0
  %1440 = vmatmul.mubr.f32.gmra.mxu0 %v1373
  %v1441 = vpop.f32.mrf.mxu0
  %v1442 = vadd.f32 0.0, %v1441
  %v1443 = vpop.f32.mrf.mxu0
  %1444 = vdwg.mxu0
  %v1445 = vadd.f32 %v1293, %v1442
  %v1446 = vxor.u32 %v1369, 2147483648
  %v1447 = vmul.f32 %v1446, 1.442695
  %v1448 = vpow.pop %v1447
  %v1449 = vadd.f32 %v1448, 1.0
  %v1450 = vrcp.pop %v1449
  %v1451 = vmul.f32 1.0, %v1450
  %v1452 = vtanh.pop %v1369
  %v1453 = vmul.f32 %v1451, %v1261
  %1455 = vrot.lane.b32.xlu0 %v1452, 32
  %v1456 = vpop.permute.xlu0 %1455
  %v1458 = vmul.f32 %v1451, %v1456
  %1460 = vrot.lane.b32.xlu0 %v1458, 32
  %v1461 = vpop.permute.xlu0 %1460
  %v1463 = vadd.f32 %v1453, %v1461
  %v1464 = vtanh.pop %v1463
  %1466 = vrot.lane.b32.xlu0 %v1464, 32
  %v1467 = vpop.permute.xlu0 %1466
  %v1469 = vmul.f32 %v1451, %v1467
  %v1470 = vxor.u32 %v1445, 2147483648
  %v1471 = vmul.f32 %v1470, 1.442695
  %v1472 = vpow.pop %v1471
  %v1473 = vadd.f32 %v1472, 1.0
  %v1474 = vrcp.pop %v1473
  %v1475 = vmul.f32 1.0, %v1474
  %v1476 = vtanh.pop %v1445
  %v1477 = vmul.f32 %v1475, %v1285
  %1479 = vrot.lane.b32.xlu0 %v1476, 32
  %v1480 = vpop.permute.xlu0 %1479
  %v1482 = vmul.f32 %v1475, %v1480
  %1484 = vrot.lane.b32.xlu0 %v1482, 32
  %v1485 = vpop.permute.xlu0 %1484
  %v1487 = vadd.f32 %v1477, %v1485
  %v1488 = vtanh.pop %v1487
  %1490 = vrot.lane.b32.xlu0 %v1488, 32
  %v1491 = vpop.permute.xlu0 %1490
  %v1493 = vmul.f32 %v1475, %v1491
  %v1494 = vld [vmem:[#allocation2 + $0x40] sm:$0xff]
  %v1495 = vld [vmem:[#allocation2 + $0x38] sm:$0xff]
  %1497 = vrot.lane.b32.xlu0 %v1469, 64
  %v1498 = vpop.permute.xlu0 %1497
  %v1499 = vsel %vm694, %v1498, 0
  %1501 = vmatprep.subr.mxu0 0.0
  %1502 = vmatpush1.msra.mxu0 0.0
  %1503 = vmatprep.subr.mxu0 0.0
  %1504 = vmatpush1.msra.mxu0 0.0
  %1505 = vmatprep.subr.mxu0 0.0
  %1506 = vmatpush1.msra.mxu0 0.0
  %1507 = vmatprep.subr.mxu0 0.0
  %1508 = vmatpush1.msra.mxu0 0.0
  %1509 = vmatprep.subr.mxu0 0.0
  %1510 = vmatpush1.msra.mxu0 0.0
  %1511 = vmatprep.subr.mxu0 0.0
  %1512 = vmatpush1.msra.mxu0 0.0
  %1513 = vmatprep.subr.mxu0 0.0
  %1514 = vmatpush1.msra.mxu0 0.0
  %1515 = vmatprep.subr.mxu0 0.0
  %1516 = vmatpush1.msra.mxu0 0.0
  %1517 = vmatprep.subr.mxu0 0.0
  %1518 = vmatpush1.msra.mxu0 0.0
  %1519 = vmatprep.subr.mxu0 0.0
  %1520 = vmatpush1.msra.mxu0 0.0
  %1521 = vmatprep.subr.mxu0 0.0
  %1522 = vmatpush1.msra.mxu0 0.0
  %1523 = vmatprep.subr.mxu0 0.0
  %1524 = vmatpush1.msra.mxu0 0.0
  %1525 = vmatprep.subr.mxu0 0.0
  %1526 = vmatpush1.msra.mxu0 %v687
  %1527 = vmatprep.subr.mxu0 0.0
  %1528 = vmatpush1.msra.mxu0 %v686
  %1529 = vmatprep.subr.mxu0 0.0
  %1530 = vmatpush1.msra.mxu0 %v685
  %1531 = vmatprep.subr.mxu0 0.0
  %1532 = vmatpush1.msra.mxu0 %v684
  %1533 = vmatprep.subr.mxu0 0.0
  %1534 = vmatpush2.msra.mxu0 0.0
  %1535 = vmatprep.subr.mxu0 0.0
  %1536 = vmatpush2.msra.mxu0 0.0
  %1537 = vmatprep.subr.mxu0 0.0
  %1538 = vmatpush2.msra.mxu0 0.0
  %1539 = vmatprep.subr.mxu0 0.0
  %1540 = vmatpush2.msra.mxu0 0.0
  %1541 = vmatprep.subr.mxu0 0.0
  %1542 = vmatpush2.msra.mxu0 0.0
  %1543 = vmatprep.subr.mxu0 0.0
  %1544 = vmatpush2.msra.mxu0 0.0
  %1545 = vmatprep.subr.mxu0 0.0
  %1546 = vmatpush2.msra.mxu0 0.0
  %1547 = vmatprep.subr.mxu0 0.0
  %1548 = vmatpush2.msra.mxu0 0.0
  %1549 = vmatprep.subr.mxu0 0.0
  %1550 = vmatpush2.msra.mxu0 0.0
  %1551 = vmatprep.subr.mxu0 0.0
  %1552 = vmatpush2.msra.mxu0 0.0
  %1553 = vmatprep.subr.mxu0 0.0
  %1554 = vmatpush2.msra.mxu0 0.0
  %1555 = vmatprep.subr.mxu0 0.0
  %1556 = vmatpush2.msra.mxu0 0.0
  %1557 = vmatprep.subr.mxu0 0.0
  %1558 = vmatpush2.msra.mxu0 0.0
  %1559 = vmatprep.subr.mxu0 0.0
  %1560 = vmatpush2.msra.mxu0 0.0
  %1561 = vmatprep.subr.mxu0 0.0
  %1562 = vmatpush2.msra.mxu0 0.0
  %1563 = vmatprep.subr.mxu0 0.0
  %1564 = vmatpush2.msra.mxu0 0.0
  %1565 = vmatprep.mubr.f32.mxu0 0.0
  %1566 = vmatmul.mubr.f32.gmra.mxu0 %v1499
  %v1567 = vpop.f32.mrf.mxu0
  %v1568 = vadd.f32 0.0, %v1567
  %v1569 = vpop.f32.mrf.mxu0
  %1570 = vdwg.mxu0
  %v1571 = vadd.f32 %v1494, %v1568
  %1573 = vrot.lane.b32.xlu0 %v1493, 64
  %v1574 = vpop.permute.xlu0 %1573
  %v1575 = vsel %vm694, %v1574, 0
  %1577 = vmatprep.subr.mxu0 0.0
  %1578 = vmatpush1.msra.mxu0 0.0
  %1579 = vmatprep.subr.mxu0 0.0
  %1580 = vmatpush1.msra.mxu0 0.0
  %1581 = vmatprep.subr.mxu0 0.0
  %1582 = vmatpush1.msra.mxu0 0.0
  %1583 = vmatprep.subr.mxu0 0.0
  %1584 = vmatpush1.msra.mxu0 0.0
  %1585 = vmatprep.subr.mxu0 0.0
  %1586 = vmatpush1.msra.mxu0 0.0
  %1587 = vmatprep.subr.mxu0 0.0
  %1588 = vmatpush1.msra.mxu0 0.0
  %1589 = vmatprep.subr.mxu0 0.0
  %1590 = vmatpush1.msra.mxu0 0.0
  %1591 = vmatprep.subr.mxu0 0.0
  %1592 = vmatpush1.msra.mxu0 0.0
  %1593 = vmatprep.subr.mxu0 0.0
  %1594 = vmatpush1.msra.mxu0 0.0
  %1595 = vmatprep.subr.mxu0 0.0
  %1596 = vmatpush1.msra.mxu0 0.0
  %1597 = vmatprep.subr.mxu0 0.0
  %1598 = vmatpush1.msra.mxu0 0.0
  %1599 = vmatprep.subr.mxu0 0.0
  %1600 = vmatpush1.msra.mxu0 0.0
  %1601 = vmatprep.subr.mxu0 0.0
  %1602 = vmatpush1.msra.mxu0 %v691
  %1603 = vmatprep.subr.mxu0 0.0
  %1604 = vmatpush1.msra.mxu0 %v690
  %1605 = vmatprep.subr.mxu0 0.0
  %1606 = vmatpush1.msra.mxu0 %v689
  %1607 = vmatprep.subr.mxu0 0.0
  %1608 = vmatpush1.msra.mxu0 %v688
  %1609 = vmatprep.subr.mxu0 0.0
  %1610 = vmatpush2.msra.mxu0 0.0
  %1611 = vmatprep.subr.mxu0 0.0
  %1612 = vmatpush2.msra.mxu0 0.0
  %1613 = vmatprep.subr.mxu0 0.0
  %1614 = vmatpush2.msra.mxu0 0.0
  %1615 = vmatprep.subr.mxu0 0.0
  %1616 = vmatpush2.msra.mxu0 0.0
  %1617 = vmatprep.subr.mxu0 0.0
  %1618 = vmatpush2.msra.mxu0 0.0
  %1619 = vmatprep.subr.mxu0 0.0
  %1620 = vmatpush2.msra.mxu0 0.0
  %1621 = vmatprep.subr.mxu0 0.0
  %1622 = vmatpush2.msra.mxu0 0.0
  %1623 = vmatprep.subr.mxu0 0.0
  %1624 = vmatpush2.msra.mxu0 0.0
  %1625 = vmatprep.subr.mxu0 0.0
  %1626 = vmatpush2.msra.mxu0 0.0
  %1627 = vmatprep.subr.mxu0 0.0
  %1628 = vmatpush2.msra.mxu0 0.0
  %1629 = vmatprep.subr.mxu0 0.0
  %1630 = vmatpush2.msra.mxu0 0.0
  %1631 = vmatprep.subr.mxu0 0.0
  %1632 = vmatpush2.msra.mxu0 0.0
  %1633 = vmatprep.subr.mxu0 0.0
  %1634 = vmatpush2.msra.mxu0 0.0
  %1635 = vmatprep.subr.mxu0 0.0
  %1636 = vmatpush2.msra.mxu0 0.0
  %1637 = vmatprep.subr.mxu0 0.0
  %1638 = vmatpush2.msra.mxu0 0.0
  %1639 = vmatprep.subr.mxu0 0.0
  %1640 = vmatpush2.msra.mxu0 0.0
  %1641 = vmatprep.mubr.f32.mxu0 0.0
  %1642 = vmatmul.mubr.f32.gmra.mxu0 %v1575
  %v1643 = vpop.f32.mrf.mxu0
  %v1644 = vadd.f32 0.0, %v1643
  %v1645 = vpop.f32.mrf.mxu0
  %1646 = vdwg.mxu0
  %v1647 = vadd.f32 %v1495, %v1644
  %v1648 = vxor.u32 %v1571, 2147483648
  %v1649 = vmul.f32 %v1648, 1.442695
  %v1650 = vpow.pop %v1649
  %v1651 = vadd.f32 %v1650, 1.0
  %v1652 = vrcp.pop %v1651
  %v1653 = vmul.f32 1.0, %v1652
  %v1654 = vtanh.pop %v1571
  %v1655 = vmul.f32 %v1653, %v1463
  %1657 = vrot.lane.b32.xlu0 %v1654, 32
  %v1658 = vpop.permute.xlu0 %1657
  %v1660 = vmul.f32 %v1653, %v1658
  %1662 = vrot.lane.b32.xlu0 %v1660, 32
  %v1663 = vpop.permute.xlu0 %1662
  %v1665 = vadd.f32 %v1655, %v1663
  %v1666 = vtanh.pop %v1665
  %1668 = vrot.lane.b32.xlu0 %v1666, 32
  %v1669 = vpop.permute.xlu0 %1668
  %v1671 = vmul.f32 %v1653, %v1669
  %v1672 = vxor.u32 %v1647, 2147483648
  %v1673 = vmul.f32 %v1672, 1.442695
  %v1674 = vpow.pop %v1673
  %v1675 = vadd.f32 %v1674, 1.0
  %v1676 = vrcp.pop %v1675
  %v1677 = vmul.f32 1.0, %v1676
  %v1678 = vtanh.pop %v1647
  %v1679 = vmul.f32 %v1677, %v1487
  %1681 = vrot.lane.b32.xlu0 %v1678, 32
  %v1682 = vpop.permute.xlu0 %1681
  %v1684 = vmul.f32 %v1677, %v1682
  %1686 = vrot.lane.b32.xlu0 %v1684, 32
  %v1687 = vpop.permute.xlu0 %1686
  %v1689 = vadd.f32 %v1679, %v1687
  %v1690 = vtanh.pop %v1689
  %1692 = vrot.lane.b32.xlu0 %v1690, 32
  %v1693 = vpop.permute.xlu0 %1692
  %v1695 = vmul.f32 %v1677, %v1693
  %v1696 = vld [vmem:[#allocation2 + $0x50] sm:$0xff]
  %v1697 = vld [vmem:[#allocation2 + $0x28] sm:$0xff]
  %1699 = vrot.lane.b32.xlu0 %v1671, 64
  %v1700 = vpop.permute.xlu0 %1699
  %v1701 = vsel %vm694, %v1700, 0
  %1703 = vmatprep.subr.mxu0 0.0
  %1704 = vmatpush1.msra.mxu0 0.0
  %1705 = vmatprep.subr.mxu0 0.0
  %1706 = vmatpush1.msra.mxu0 0.0
  %1707 = vmatprep.subr.mxu0 0.0
  %1708 = vmatpush1.msra.mxu0 0.0
  %1709 = vmatprep.subr.mxu0 0.0
  %1710 = vmatpush1.msra.mxu0 0.0
  %1711 = vmatprep.subr.mxu0 0.0
  %1712 = vmatpush1.msra.mxu0 0.0
  %1713 = vmatprep.subr.mxu0 0.0
  %1714 = vmatpush1.msra.mxu0 0.0
  %1715 = vmatprep.subr.mxu0 0.0
  %1716 = vmatpush1.msra.mxu0 0.0
  %1717 = vmatprep.subr.mxu0 0.0
  %1718 = vmatpush1.msra.mxu0 0.0
  %1719 = vmatprep.subr.mxu0 0.0
  %1720 = vmatpush1.msra.mxu0 0.0
  %1721 = vmatprep.subr.mxu0 0.0
  %1722 = vmatpush1.msra.mxu0 0.0
  %1723 = vmatprep.subr.mxu0 0.0
  %1724 = vmatpush1.msra.mxu0 0.0
  %1725 = vmatprep.subr.mxu0 0.0
  %1726 = vmatpush1.msra.mxu0 0.0
  %1727 = vmatprep.subr.mxu0 0.0
  %1728 = vmatpush1.msra.mxu0 %v687
  %1729 = vmatprep.subr.mxu0 0.0
  %1730 = vmatpush1.msra.mxu0 %v686
  %1731 = vmatprep.subr.mxu0 0.0
  %1732 = vmatpush1.msra.mxu0 %v685
  %1733 = vmatprep.subr.mxu0 0.0
  %1734 = vmatpush1.msra.mxu0 %v684
  %1735 = vmatprep.subr.mxu0 0.0
  %1736 = vmatpush2.msra.mxu0 0.0
  %1737 = vmatprep.subr.mxu0 0.0
  %1738 = vmatpush2.msra.mxu0 0.0
  %1739 = vmatprep.subr.mxu0 0.0
  %1740 = vmatpush2.msra.mxu0 0.0
  %1741 = vmatprep.subr.mxu0 0.0
  %1742 = vmatpush2.msra.mxu0 0.0
  %1743 = vmatprep.subr.mxu0 0.0
  %1744 = vmatpush2.msra.mxu0 0.0
  %1745 = vmatprep.subr.mxu0 0.0
  %1746 = vmatpush2.msra.mxu0 0.0
  %1747 = vmatprep.subr.mxu0 0.0
  %1748 = vmatpush2.msra.mxu0 0.0
  %1749 = vmatprep.subr.mxu0 0.0
  %1750 = vmatpush2.msra.mxu0 0.0
  %1751 = vmatprep.subr.mxu0 0.0
  %1752 = vmatpush2.msra.mxu0 0.0
  %1753 = vmatprep.subr.mxu0 0.0
  %1754 = vmatpush2.msra.mxu0 0.0
  %1755 = vmatprep.subr.mxu0 0.0
  %1756 = vmatpush2.msra.mxu0 0.0
  %1757 = vmatprep.subr.mxu0 0.0
  %1758 = vmatpush2.msra.mxu0 0.0
  %1759 = vmatprep.subr.mxu0 0.0
  %1760 = vmatpush2.msra.mxu0 0.0
  %1761 = vmatprep.subr.mxu0 0.0
  %1762 = vmatpush2.msra.mxu0 0.0
  %1763 = vmatprep.subr.mxu0 0.0
  %1764 = vmatpush2.msra.mxu0 0.0
  %1765 = vmatprep.subr.mxu0 0.0
  %1766 = vmatpush2.msra.mxu0 0.0
  %1767 = vmatprep.mubr.f32.mxu0 0.0
  %1768 = vmatmul.mubr.f32.gmra.mxu0 %v1701
  %v1769 = vpop.f32.mrf.mxu0
  %v1770 = vadd.f32 0.0, %v1769
  %v1771 = vpop.f32.mrf.mxu0
  %1772 = vdwg.mxu0
  %v1773 = vadd.f32 %v1696, %v1770
  %1775 = vrot.lane.b32.xlu0 %v1695, 64
  %v1776 = vpop.permute.xlu0 %1775
  %v1777 = vsel %vm694, %v1776, 0
  %1779 = vmatprep.subr.mxu0 0.0
  %1780 = vmatpush1.msra.mxu0 0.0
  %1781 = vmatprep.subr.mxu0 0.0
  %1782 = vmatpush1.msra.mxu0 0.0
  %1783 = vmatprep.subr.mxu0 0.0
  %1784 = vmatpush1.msra.mxu0 0.0
  %1785 = vmatprep.subr.mxu0 0.0
  %1786 = vmatpush1.msra.mxu0 0.0
  %1787 = vmatprep.subr.mxu0 0.0
  %1788 = vmatpush1.msra.mxu0 0.0
  %1789 = vmatprep.subr.mxu0 0.0
  %1790 = vmatpush1.msra.mxu0 0.0
  %1791 = vmatprep.subr.mxu0 0.0
  %1792 = vmatpush1.msra.mxu0 0.0
  %1793 = vmatprep.subr.mxu0 0.0
  %1794 = vmatpush1.msra.mxu0 0.0
  %1795 = vmatprep.subr.mxu0 0.0
  %1796 = vmatpush1.msra.mxu0 0.0
  %1797 = vmatprep.subr.mxu0 0.0
  %1798 = vmatpush1.msra.mxu0 0.0
  %1799 = vmatprep.subr.mxu0 0.0
  %1800 = vmatpush1.msra.mxu0 0.0
  %1801 = vmatprep.subr.mxu0 0.0
  %1802 = vmatpush1.msra.mxu0 0.0
  %1803 = vmatprep.subr.mxu0 0.0
  %1804 = vmatpush1.msra.mxu0 %v691
  %1805 = vmatprep.subr.mxu0 0.0
  %1806 = vmatpush1.msra.mxu0 %v690
  %1807 = vmatprep.subr.mxu0 0.0
  %1808 = vmatpush1.msra.mxu0 %v689
  %1809 = vmatprep.subr.mxu0 0.0
  %1810 = vmatpush1.msra.mxu0 %v688
  %1811 = vmatprep.subr.mxu0 0.0
  %1812 = vmatpush2.msra.mxu0 0.0
  %1813 = vmatprep.subr.mxu0 0.0
  %1814 = vmatpush2.msra.mxu0 0.0
  %1815 = vmatprep.subr.mxu0 0.0
  %1816 = vmatpush2.msra.mxu0 0.0
  %1817 = vmatprep.subr.mxu0 0.0
  %1818 = vmatpush2.msra.mxu0 0.0
  %1819 = vmatprep.subr.mxu0 0.0
  %1820 = vmatpush2.msra.mxu0 0.0
  %1821 = vmatprep.subr.mxu0 0.0
  %1822 = vmatpush2.msra.mxu0 0.0
  %1823 = vmatprep.subr.mxu0 0.0
  %1824 = vmatpush2.msra.mxu0 0.0
  %1825 = vmatprep.subr.mxu0 0.0
  %1826 = vmatpush2.msra.mxu0 0.0
  %1827 = vmatprep.subr.mxu0 0.0
  %1828 = vmatpush2.msra.mxu0 0.0
  %1829 = vmatprep.subr.mxu0 0.0
  %1830 = vmatpush2.msra.mxu0 0.0
  %1831 = vmatprep.subr.mxu0 0.0
  %1832 = vmatpush2.msra.mxu0 0.0
  %1833 = vmatprep.subr.mxu0 0.0
  %1834 = vmatpush2.msra.mxu0 0.0
  %1835 = vmatprep.subr.mxu0 0.0
  %1836 = vmatpush2.msra.mxu0 0.0
  %1837 = vmatprep.subr.mxu0 0.0
  %1838 = vmatpush2.msra.mxu0 0.0
  %1839 = vmatprep.subr.mxu0 0.0
  %1840 = vmatpush2.msra.mxu0 0.0
  %1841 = vmatprep.subr.mxu0 0.0
  %1842 = vmatpush2.msra.mxu0 0.0
  %1843 = vmatprep.mubr.f32.mxu0 0.0
  %1844 = vmatmul.mubr.f32.gmra.mxu0 %v1777
  %v1845 = vpop.f32.mrf.mxu0
  %v1846 = vadd.f32 0.0, %v1845
  %v1847 = vpop.f32.mrf.mxu0
  %1848 = vdwg.mxu0
  %v1849 = vadd.f32 %v1697, %v1846
  %v1850 = vxor.u32 %v1773, 2147483648
  %v1851 = vmul.f32 %v1850, 1.442695
  %v1852 = vpow.pop %v1851
  %v1853 = vadd.f32 %v1852, 1.0
  %v1854 = vrcp.pop %v1853
  %v1855 = vmul.f32 1.0, %v1854
  %v1856 = vtanh.pop %v1773
  %v1857 = vmul.f32 %v1855, %v1665
  %1859 = vrot.lane.b32.xlu0 %v1856, 32
  %v1860 = vpop.permute.xlu0 %1859
  %v1862 = vmul.f32 %v1855, %v1860
  %1864 = vrot.lane.b32.xlu0 %v1862, 32
  %v1865 = vpop.permute.xlu0 %1864
  %v1867 = vadd.f32 %v1857, %v1865
  %v1868 = vtanh.pop %v1867
  %1870 = vrot.lane.b32.xlu0 %v1868, 32
  %v1871 = vpop.permute.xlu0 %1870
  %v1873 = vmul.f32 %v1855, %v1871
  %v1874 = vxor.u32 %v1849, 2147483648
  %v1875 = vmul.f32 %v1874, 1.442695
  %v1876 = vpow.pop %v1875
  %v1877 = vadd.f32 %v1876, 1.0
  %v1878 = vrcp.pop %v1877
  %v1879 = vmul.f32 1.0, %v1878
  %v1880 = vtanh.pop %v1849
  %v1881 = vmul.f32 %v1879, %v1689
  %1883 = vrot.lane.b32.xlu0 %v1880, 32
  %v1884 = vpop.permute.xlu0 %1883
  %v1886 = vmul.f32 %v1879, %v1884
  %1888 = vrot.lane.b32.xlu0 %v1886, 32
  %v1889 = vpop.permute.xlu0 %1888
  %v1891 = vadd.f32 %v1881, %v1889
  %v1892 = vtanh.pop %v1891
  %1894 = vrot.lane.b32.xlu0 %v1892, 32
  %v1895 = vpop.permute.xlu0 %1894
  %v1897 = vmul.f32 %v1879, %v1895
  %v1898 = vld [vmem:[#allocation2 + $0x60] sm:$0xff]
  %v1899 = vld [vmem:[#allocation2 + $0x18] sm:$0xff]
  %1901 = vrot.lane.b32.xlu0 %v1873, 64
  %v1902 = vpop.permute.xlu0 %1901
  %v1903 = vsel %vm694, %v1902, 0
  %1905 = vmatprep.subr.mxu0 0.0
  %1906 = vmatpush1.msra.mxu0 0.0
  %1907 = vmatprep.subr.mxu0 0.0
  %1908 = vmatpush1.msra.mxu0 0.0
  %1909 = vmatprep.subr.mxu0 0.0
  %1910 = vmatpush1.msra.mxu0 0.0
  %1911 = vmatprep.subr.mxu0 0.0
  %1912 = vmatpush1.msra.mxu0 0.0
  %1913 = vmatprep.subr.mxu0 0.0
  %1914 = vmatpush1.msra.mxu0 0.0
  %1915 = vmatprep.subr.mxu0 0.0
  %1916 = vmatpush1.msra.mxu0 0.0
  %1917 = vmatprep.subr.mxu0 0.0
  %1918 = vmatpush1.msra.mxu0 0.0
  %1919 = vmatprep.subr.mxu0 0.0
  %1920 = vmatpush1.msra.mxu0 0.0
  %1921 = vmatprep.subr.mxu0 0.0
  %1922 = vmatpush1.msra.mxu0 0.0
  %1923 = vmatprep.subr.mxu0 0.0
  %1924 = vmatpush1.msra.mxu0 0.0
  %1925 = vmatprep.subr.mxu0 0.0
  %1926 = vmatpush1.msra.mxu0 0.0
  %1927 = vmatprep.subr.mxu0 0.0
  %1928 = vmatpush1.msra.mxu0 0.0
  %1929 = vmatprep.subr.mxu0 0.0
  %1930 = vmatpush1.msra.mxu0 %v687
  %1931 = vmatprep.subr.mxu0 0.0
  %1932 = vmatpush1.msra.mxu0 %v686
  %1933 = vmatprep.subr.mxu0 0.0
  %1934 = vmatpush1.msra.mxu0 %v685
  %1935 = vmatprep.subr.mxu0 0.0
  %1936 = vmatpush1.msra.mxu0 %v684
  %1937 = vmatprep.subr.mxu0 0.0
  %1938 = vmatpush2.msra.mxu0 0.0
  %1939 = vmatprep.subr.mxu0 0.0
  %1940 = vmatpush2.msra.mxu0 0.0
  %1941 = vmatprep.subr.mxu0 0.0
  %1942 = vmatpush2.msra.mxu0 0.0
  %1943 = vmatprep.subr.mxu0 0.0
  %1944 = vmatpush2.msra.mxu0 0.0
  %1945 = vmatprep.subr.mxu0 0.0
  %1946 = vmatpush2.msra.mxu0 0.0
  %1947 = vmatprep.subr.mxu0 0.0
  %1948 = vmatpush2.msra.mxu0 0.0
  %1949 = vmatprep.subr.mxu0 0.0
  %1950 = vmatpush2.msra.mxu0 0.0
  %1951 = vmatprep.subr.mxu0 0.0
  %1952 = vmatpush2.msra.mxu0 0.0
  %1953 = vmatprep.subr.mxu0 0.0
  %1954 = vmatpush2.msra.mxu0 0.0
  %1955 = vmatprep.subr.mxu0 0.0
  %1956 = vmatpush2.msra.mxu0 0.0
  %1957 = vmatprep.subr.mxu0 0.0
  %1958 = vmatpush2.msra.mxu0 0.0
  %1959 = vmatprep.subr.mxu0 0.0
  %1960 = vmatpush2.msra.mxu0 0.0
  %1961 = vmatprep.subr.mxu0 0.0
  %1962 = vmatpush2.msra.mxu0 0.0
  %1963 = vmatprep.subr.mxu0 0.0
  %1964 = vmatpush2.msra.mxu0 0.0
  %1965 = vmatprep.subr.mxu0 0.0
  %1966 = vmatpush2.msra.mxu0 0.0
  %1967 = vmatprep.subr.mxu0 0.0
  %1968 = vmatpush2.msra.mxu0 0.0
  %1969 = vmatprep.mubr.f32.mxu0 0.0
  %1970 = vmatmul.mubr.f32.gmra.mxu0 %v1903
  %v1971 = vpop.f32.mrf.mxu0
  %v1972 = vadd.f32 0.0, %v1971
  %v1973 = vpop.f32.mrf.mxu0
  %1974 = vdwg.mxu0
  %v1975 = vadd.f32 %v1898, %v1972
  %1977 = vrot.lane.b32.xlu0 %v1897, 64
  %v1978 = vpop.permute.xlu0 %1977
  %v1979 = vsel %vm694, %v1978, 0
  %1981 = vmatprep.subr.mxu0 0.0
  %1982 = vmatpush1.msra.mxu0 0.0
  %1983 = vmatprep.subr.mxu0 0.0
  %1984 = vmatpush1.msra.mxu0 0.0
  %1985 = vmatprep.subr.mxu0 0.0
  %1986 = vmatpush1.msra.mxu0 0.0
  %1987 = vmatprep.subr.mxu0 0.0
  %1988 = vmatpush1.msra.mxu0 0.0
  %1989 = vmatprep.subr.mxu0 0.0
  %1990 = vmatpush1.msra.mxu0 0.0
  %1991 = vmatprep.subr.mxu0 0.0
  %1992 = vmatpush1.msra.mxu0 0.0
  %1993 = vmatprep.subr.mxu0 0.0
  %1994 = vmatpush1.msra.mxu0 0.0
  %1995 = vmatprep.subr.mxu0 0.0
  %1996 = vmatpush1.msra.mxu0 0.0
  %1997 = vmatprep.subr.mxu0 0.0
  %1998 = vmatpush1.msra.mxu0 0.0
  %1999 = vmatprep.subr.mxu0 0.0
  %2000 = vmatpush1.msra.mxu0 0.0
  %2001 = vmatprep.subr.mxu0 0.0
  %2002 = vmatpush1.msra.mxu0 0.0
  %2003 = vmatprep.subr.mxu0 0.0
  %2004 = vmatpush1.msra.mxu0 0.0
  %2005 = vmatprep.subr.mxu0 0.0
  %2006 = vmatpush1.msra.mxu0 %v691
  %2007 = vmatprep.subr.mxu0 0.0
  %2008 = vmatpush1.msra.mxu0 %v690
  %2009 = vmatprep.subr.mxu0 0.0
  %2010 = vmatpush1.msra.mxu0 %v689
  %2011 = vmatprep.subr.mxu0 0.0
  %2012 = vmatpush1.msra.mxu0 %v688
  %2013 = vmatprep.subr.mxu0 0.0
  %2014 = vmatpush2.msra.mxu0 0.0
  %2015 = vmatprep.subr.mxu0 0.0
  %2016 = vmatpush2.msra.mxu0 0.0
  %2017 = vmatprep.subr.mxu0 0.0
  %2018 = vmatpush2.msra.mxu0 0.0
  %2019 = vmatprep.subr.mxu0 0.0
  %2020 = vmatpush2.msra.mxu0 0.0
  %2021 = vmatprep.subr.mxu0 0.0
  %2022 = vmatpush2.msra.mxu0 0.0
  %2023 = vmatprep.subr.mxu0 0.0
  %2024 = vmatpush2.msra.mxu0 0.0
  %2025 = vmatprep.subr.mxu0 0.0
  %2026 = vmatpush2.msra.mxu0 0.0
  %2027 = vmatprep.subr.mxu0 0.0
  %2028 = vmatpush2.msra.mxu0 0.0
  %2029 = vmatprep.subr.mxu0 0.0
  %2030 = vmatpush2.msra.mxu0 0.0
  %2031 = vmatprep.subr.mxu0 0.0
  %2032 = vmatpush2.msra.mxu0 0.0
  %2033 = vmatprep.subr.mxu0 0.0
  %2034 = vmatpush2.msra.mxu0 0.0
  %2035 = vmatprep.subr.mxu0 0.0
  %2036 = vmatpush2.msra.mxu0 0.0
  %2037 = vmatprep.subr.mxu0 0.0
  %2038 = vmatpush2.msra.mxu0 0.0
  %2039 = vmatprep.subr.mxu0 0.0
  %2040 = vmatpush2.msra.mxu0 0.0
  %2041 = vmatprep.subr.mxu0 0.0
  %2042 = vmatpush2.msra.mxu0 0.0
  %2043 = vmatprep.subr.mxu0 0.0
  %2044 = vmatpush2.msra.mxu0 0.0
  %2045 = vmatprep.mubr.f32.mxu0 0.0
  %2046 = vmatmul.mubr.f32.gmra.mxu0 %v1979
  %v2047 = vpop.f32.mrf.mxu0
  %v2048 = vadd.f32 0.0, %v2047
  %v2049 = vpop.f32.mrf.mxu0
  %2050 = vdwg.mxu0
  %v2051 = vadd.f32 %v1899, %v2048
  %v2052 = vxor.u32 %v1975, 2147483648
  %v2053 = vmul.f32 %v2052, 1.442695
  %v2054 = vpow.pop %v2053
  %v2055 = vadd.f32 %v2054, 1.0
  %v2056 = vrcp.pop %v2055
  %v2057 = vmul.f32 1.0, %v2056
  %v2058 = vtanh.pop %v1975
  %v2059 = vmul.f32 %v2057, %v1867
  %2061 = vrot.lane.b32.xlu0 %v2058, 32
  %v2062 = vpop.permute.xlu0 %2061
  %v2064 = vmul.f32 %v2057, %v2062
  %2066 = vrot.lane.b32.xlu0 %v2064, 32
  %v2067 = vpop.permute.xlu0 %2066
  %v2069 = vadd.f32 %v2059, %v2067
  %v2070 = vtanh.pop %v2069
  %2072 = vrot.lane.b32.xlu0 %v2070, 32
  %v2073 = vpop.permute.xlu0 %2072
  %v2075 = vmul.f32 %v2057, %v2073
  %v2076 = vxor.u32 %v2051, 2147483648
  %v2077 = vmul.f32 %v2076, 1.442695
  %v2078 = vpow.pop %v2077
  %v2079 = vadd.f32 %v2078, 1.0
  %v2080 = vrcp.pop %v2079
  %v2081 = vmul.f32 1.0, %v2080
  %v2082 = vtanh.pop %v2051
  %v2083 = vmul.f32 %v2081, %v1891
  %2085 = vrot.lane.b32.xlu0 %v2082, 32
  %v2086 = vpop.permute.xlu0 %2085
  %v2088 = vmul.f32 %v2081, %v2086
  %2090 = vrot.lane.b32.xlu0 %v2088, 32
  %v2091 = vpop.permute.xlu0 %2090
  %v2093 = vadd.f32 %v2083, %v2091
  %v2094 = vtanh.pop %v2093
  %2096 = vrot.lane.b32.xlu0 %v2094, 32
  %v2097 = vpop.permute.xlu0 %2096
  %v2099 = vmul.f32 %v2081, %v2097
  %v2100 = vld [vmem:[#allocation2 + $0x70] sm:$0xff]
  %v2101 = vld [vmem:[#allocation2 + $0x8] sm:$0xff]
  %2103 = vrot.lane.b32.xlu0 %v2075, 64
  %v2104 = vpop.permute.xlu0 %2103
  %v2105 = vsel %vm694, %v2104, 0
  %2107 = vmatprep.subr.mxu0 0.0
  %2108 = vmatpush1.msra.mxu0 0.0
  %2109 = vmatprep.subr.mxu0 0.0
  %2110 = vmatpush1.msra.mxu0 0.0
  %2111 = vmatprep.subr.mxu0 0.0
  %2112 = vmatpush1.msra.mxu0 0.0
  %2113 = vmatprep.subr.mxu0 0.0
  %2114 = vmatpush1.msra.mxu0 0.0
  %2115 = vmatprep.subr.mxu0 0.0
  %2116 = vmatpush1.msra.mxu0 0.0
  %2117 = vmatprep.subr.mxu0 0.0
  %2118 = vmatpush1.msra.mxu0 0.0
  %2119 = vmatprep.subr.mxu0 0.0
  %2120 = vmatpush1.msra.mxu0 0.0
  %2121 = vmatprep.subr.mxu0 0.0
  %2122 = vmatpush1.msra.mxu0 0.0
  %2123 = vmatprep.subr.mxu0 0.0
  %2124 = vmatpush1.msra.mxu0 0.0
  %2125 = vmatprep.subr.mxu0 0.0
  %2126 = vmatpush1.msra.mxu0 0.0
  %2127 = vmatprep.subr.mxu0 0.0
  %2128 = vmatpush1.msra.mxu0 0.0
  %2129 = vmatprep.subr.mxu0 0.0
  %2130 = vmatpush1.msra.mxu0 0.0
  %2131 = vmatprep.subr.mxu0 0.0
  %2132 = vmatpush1.msra.mxu0 %v687
  %2133 = vmatprep.subr.mxu0 0.0
  %2134 = vmatpush1.msra.mxu0 %v686
  %2135 = vmatprep.subr.mxu0 0.0
  %2136 = vmatpush1.msra.mxu0 %v685
  %2137 = vmatprep.subr.mxu0 0.0
  %2138 = vmatpush1.msra.mxu0 %v684
  %2139 = vmatprep.subr.mxu0 0.0
  %2140 = vmatpush2.msra.mxu0 0.0
  %2141 = vmatprep.subr.mxu0 0.0
  %2142 = vmatpush2.msra.mxu0 0.0
  %2143 = vmatprep.subr.mxu0 0.0
  %2144 = vmatpush2.msra.mxu0 0.0
  %2145 = vmatprep.subr.mxu0 0.0
  %2146 = vmatpush2.msra.mxu0 0.0
  %2147 = vmatprep.subr.mxu0 0.0
  %2148 = vmatpush2.msra.mxu0 0.0
  %2149 = vmatprep.subr.mxu0 0.0
  %2150 = vmatpush2.msra.mxu0 0.0
  %2151 = vmatprep.subr.mxu0 0.0
  %2152 = vmatpush2.msra.mxu0 0.0
  %2153 = vmatprep.subr.mxu0 0.0
  %2154 = vmatpush2.msra.mxu0 0.0
  %2155 = vmatprep.subr.mxu0 0.0
  %2156 = vmatpush2.msra.mxu0 0.0
  %2157 = vmatprep.subr.mxu0 0.0
  %2158 = vmatpush2.msra.mxu0 0.0
  %2159 = vmatprep.subr.mxu0 0.0
  %2160 = vmatpush2.msra.mxu0 0.0
  %2161 = vmatprep.subr.mxu0 0.0
  %2162 = vmatpush2.msra.mxu0 0.0
  %2163 = vmatprep.subr.mxu0 0.0
  %2164 = vmatpush2.msra.mxu0 0.0
  %2165 = vmatprep.subr.mxu0 0.0
  %2166 = vmatpush2.msra.mxu0 0.0
  %2167 = vmatprep.subr.mxu0 0.0
  %2168 = vmatpush2.msra.mxu0 0.0
  %2169 = vmatprep.subr.mxu0 0.0
  %2170 = vmatpush2.msra.mxu0 0.0
  %2171 = vmatprep.mubr.f32.mxu0 0.0
  %2172 = vmatmul.mubr.f32.gmra.mxu0 %v2105
  %v2173 = vpop.f32.mrf.mxu0
  %v2174 = vadd.f32 0.0, %v2173
  %v2175 = vpop.f32.mrf.mxu0
  %2176 = vdwg.mxu0
  %v2177 = vadd.f32 %v2100, %v2174
  %2179 = vrot.lane.b32.xlu0 %v2099, 64
  %v2180 = vpop.permute.xlu0 %2179
  %v2181 = vsel %vm694, %v2180, 0
  %2183 = vmatprep.subr.mxu0 0.0
  %2184 = vmatpush1.msra.mxu0 0.0
  %2185 = vmatprep.subr.mxu0 0.0
  %2186 = vmatpush1.msra.mxu0 0.0
  %2187 = vmatprep.subr.mxu0 0.0
  %2188 = vmatpush1.msra.mxu0 0.0
  %2189 = vmatprep.subr.mxu0 0.0
  %2190 = vmatpush1.msra.mxu0 0.0
  %2191 = vmatprep.subr.mxu0 0.0
  %2192 = vmatpush1.msra.mxu0 0.0
  %2193 = vmatprep.subr.mxu0 0.0
  %2194 = vmatpush1.msra.mxu0 0.0
  %2195 = vmatprep.subr.mxu0 0.0
  %2196 = vmatpush1.msra.mxu0 0.0
  %2197 = vmatprep.subr.mxu0 0.0
  %2198 = vmatpush1.msra.mxu0 0.0
  %2199 = vmatprep.subr.mxu0 0.0
  %2200 = vmatpush1.msra.mxu0 0.0
  %2201 = vmatprep.subr.mxu0 0.0
  %2202 = vmatpush1.msra.mxu0 0.0
  %2203 = vmatprep.subr.mxu0 0.0
  %2204 = vmatpush1.msra.mxu0 0.0
  %2205 = vmatprep.subr.mxu0 0.0
  %2206 = vmatpush1.msra.mxu0 0.0
  %2207 = vmatprep.subr.mxu0 0.0
  %2208 = vmatpush1.msra.mxu0 %v691
  %2209 = vmatprep.subr.mxu0 0.0
  %2210 = vmatpush1.msra.mxu0 %v690
  %2211 = vmatprep.subr.mxu0 0.0
  %2212 = vmatpush1.msra.mxu0 %v689
  %2213 = vmatprep.subr.mxu0 0.0
  %2214 = vmatpush1.msra.mxu0 %v688
  %2215 = vmatprep.subr.mxu0 0.0
  %2216 = vmatpush2.msra.mxu0 0.0
  %2217 = vmatprep.subr.mxu0 0.0
  %2218 = vmatpush2.msra.mxu0 0.0
  %2219 = vmatprep.subr.mxu0 0.0
  %2220 = vmatpush2.msra.mxu0 0.0
  %2221 = vmatprep.subr.mxu0 0.0
  %2222 = vmatpush2.msra.mxu0 0.0
  %2223 = vmatprep.subr.mxu0 0.0
  %2224 = vmatpush2.msra.mxu0 0.0
  %2225 = vmatprep.subr.mxu0 0.0
  %2226 = vmatpush2.msra.mxu0 0.0
  %2227 = vmatprep.subr.mxu0 0.0
  %2228 = vmatpush2.msra.mxu0 0.0
  %2229 = vmatprep.subr.mxu0 0.0
  %2230 = vmatpush2.msra.mxu0 0.0
  %2231 = vmatprep.subr.mxu0 0.0
  %2232 = vmatpush2.msra.mxu0 0.0
  %2233 = vmatprep.subr.mxu0 0.0
  %2234 = vmatpush2.msra.mxu0 0.0
  %2235 = vmatprep.subr.mxu0 0.0
  %2236 = vmatpush2.msra.mxu0 0.0
  %2237 = vmatprep.subr.mxu0 0.0
  %2238 = vmatpush2.msra.mxu0 0.0
  %2239 = vmatprep.subr.mxu0 0.0
  %2240 = vmatpush2.msra.mxu0 0.0
  %2241 = vmatprep.subr.mxu0 0.0
  %2242 = vmatpush2.msra.mxu0 0.0
  %2243 = vmatprep.subr.mxu0 0.0
  %2244 = vmatpush2.msra.mxu0 0.0
  %2245 = vmatprep.subr.mxu0 0.0
  %2246 = vmatpush2.msra.mxu0 0.0
  %2247 = vmatprep.mubr.f32.mxu0 0.0
  %2248 = vmatmul.mubr.f32.gmra.mxu0 %v2181
  %v2249 = vpop.f32.mrf.mxu0
  %v2250 = vadd.f32 0.0, %v2249
  %v2251 = vpop.f32.mrf.mxu0
  %2252 = vdwg.mxu0
  %v2253 = vadd.f32 %v2101, %v2250
  %v2254 = vxor.u32 %v2177, 2147483648
  %v2255 = vmul.f32 %v2254, 1.442695
  %v2256 = vpow.pop %v2255
  %v2257 = vadd.f32 %v2256, 1.0
  %v2258 = vrcp.pop %v2257
  %v2259 = vmul.f32 1.0, %v2258
  %v2260 = vtanh.pop %v2177
  %v2261 = vmul.f32 %v2259, %v2069
  %2263 = vrot.lane.b32.xlu0 %v2260, 32
  %v2264 = vpop.permute.xlu0 %2263
  %v2266 = vmul.f32 %v2259, %v2264
  %2268 = vrot.lane.b32.xlu0 %v2266, 32
  %v2269 = vpop.permute.xlu0 %2268
  %v2271 = vadd.f32 %v2261, %v2269
  %v2272 = vtanh.pop %v2271
  %2274 = vrot.lane.b32.xlu0 %v2272, 32
  %v2275 = vpop.permute.xlu0 %2274
  %v2277 = vmul.f32 %v2259, %v2275
  %v2278 = vxor.u32 %v2253, 2147483648
  %v2279 = vmul.f32 %v2278, 1.442695
  %v2280 = vpow.pop %v2279
  %v2281 = vadd.f32 %v2280, 1.0
  %v2282 = vrcp.pop %v2281
  %v2283 = vmul.f32 1.0, %v2282
  %v2284 = vtanh.pop %v2253
  %v2285 = vmul.f32 %v2283, %v2093
  %2287 = vrot.lane.b32.xlu0 %v2284, 32
  %v2288 = vpop.permute.xlu0 %2287
  %v2290 = vmul.f32 %v2283, %v2288
  %2292 = vrot.lane.b32.xlu0 %v2290, 32
  %v2293 = vpop.permute.xlu0 %2292
  %v2295 = vadd.f32 %v2285, %v2293
  %v2296 = vtanh.pop %v2295
  %2298 = vrot.lane.b32.xlu0 %v2296, 32
  %v2299 = vpop.permute.xlu0 %2298
  %v2301 = vmul.f32 %v2283, %v2299
  %v2302 = vld [vmem:[%s5] sm:$0xff]
  %v2303 = vld [vmem:[%s5 + $0x8] sm:$0xff]
  %v2304 = vld [vmem:[%s5 + $0x10] sm:$0xff]
  %v2305 = vld [vmem:[%s5 + $0x18] sm:$0xff]
  %v2306 = vld [vmem:[%s5 + $0x20] sm:$0xff]
  %v2307 = vld [vmem:[%s5 + $0x28] sm:$0xff]
  %v2308 = vld [vmem:[%s5 + $0x30] sm:$0xff]
  %v2309 = vld [vmem:[%s5 + $0x38] sm:$0xff]
  %v2310 = vld [vmem:[%s5 + $0x40] sm:$0xff]
  %v2311 = vld [vmem:[%s5 + $0x48] sm:$0xff]
  %v2312 = vld [vmem:[%s5 + $0x50] sm:$0xff]
  %v2313 = vld [vmem:[%s5 + $0x58] sm:$0xff]
  %v2314 = vld [vmem:[%s6] sm:$0x1]
  %v2316 = vlaneseq
  %v2317 = vshrl.u32 %v2316, 7
  %v2318 = vsub.s32 0, %v2317
  %v2319 = vrot.slane %v2314, %v2318
  %2323 = vrot.lane.b32.xlu0 %v2301, 96
  %v2324 = vpop.permute.xlu0 %2323
  %v2326 = vsel %vm694, %v892, %v2324
  %vm2327 = vcmask 523264
  %v2328 = vsel %vm2327, %v2326, 0.0
  %vm2329 = vcmask 785408
  %v2331 = vsel %vm2329, %v2328, 0
  %2333 = vmatprep.subr.mxu0 0.0
  %2334 = vmatpush1.msra.mxu0 0.0
  %2335 = vmatprep.subr.mxu0 0.0
  %2336 = vmatpush1.msra.mxu0 0.0
  %2337 = vmatprep.subr.mxu0 0.0
  %2338 = vmatpush1.msra.mxu0 0.0
  %2339 = vmatprep.subr.mxu0 0.0
  %2340 = vmatpush1.msra.mxu0 0.0
  %2341 = vmatprep.subr.mxu0 0.0
  %2342 = vmatpush1.msra.mxu0 %v2313
  %2343 = vmatprep.subr.mxu0 0.0
  %2344 = vmatpush1.msra.mxu0 %v2312
  %2345 = vmatprep.subr.mxu0 0.0
  %2346 = vmatpush1.msra.mxu0 %v2311
  %2347 = vmatprep.subr.mxu0 0.0
  %2348 = vmatpush1.msra.mxu0 %v2310
  %2349 = vmatprep.subr.mxu0 0.0
  %2350 = vmatpush1.msra.mxu0 %v2309
  %2351 = vmatprep.subr.mxu0 0.0
  %2352 = vmatpush1.msra.mxu0 %v2308
  %2353 = vmatprep.subr.mxu0 0.0
  %2354 = vmatpush1.msra.mxu0 %v2307
  %2355 = vmatprep.subr.mxu0 0.0
  %2356 = vmatpush1.msra.mxu0 %v2306
  %2357 = vmatprep.subr.mxu0 0.0
  %2358 = vmatpush1.msra.mxu0 %v2305
  %2359 = vmatprep.subr.mxu0 0.0
  %2360 = vmatpush1.msra.mxu0 %v2304
  %2361 = vmatprep.subr.mxu0 0.0
  %2362 = vmatpush1.msra.mxu0 %v2303
  %2363 = vmatprep.subr.mxu0 0.0
  %2364 = vmatpush1.msra.mxu0 %v2302
  %2365 = vmatprep.subr.mxu0 0.0
  %2366 = vmatpush2.msra.mxu0 0.0
  %2367 = vmatprep.subr.mxu0 0.0
  %2368 = vmatpush2.msra.mxu0 0.0
  %2369 = vmatprep.subr.mxu0 0.0
  %2370 = vmatpush2.msra.mxu0 0.0
  %2371 = vmatprep.subr.mxu0 0.0
  %2372 = vmatpush2.msra.mxu0 0.0
  %2373 = vmatprep.subr.mxu0 0.0
  %2374 = vmatpush2.msra.mxu0 0.0
  %2375 = vmatprep.subr.mxu0 0.0
  %2376 = vmatpush2.msra.mxu0 0.0
  %2377 = vmatprep.subr.mxu0 0.0
  %2378 = vmatpush2.msra.mxu0 0.0
  %2379 = vmatprep.subr.mxu0 0.0
  %2380 = vmatpush2.msra.mxu0 0.0
  %2381 = vmatprep.subr.mxu0 0.0
  %2382 = vmatpush2.msra.mxu0 0.0
  %2383 = vmatprep.subr.mxu0 0.0
  %2384 = vmatpush2.msra.mxu0 0.0
  %2385 = vmatprep.subr.mxu0 0.0
  %2386 = vmatpush2.msra.mxu0 0.0
  %2387 = vmatprep.subr.mxu0 0.0
  %2388 = vmatpush2.msra.mxu0 0.0
  %2389 = vmatprep.subr.mxu0 0.0
  %2390 = vmatpush2.msra.mxu0 0.0
  %2391 = vmatprep.subr.mxu0 0.0
  %2392 = vmatpush2.msra.mxu0 0.0
  %2393 = vmatprep.subr.mxu0 0.0
  %2394 = vmatpush2.msra.mxu0 0.0
  %2395 = vmatprep.subr.mxu0 0.0
  %2396 = vmatpush2.msra.mxu0 0.0
  %2397 = vmatprep.mubr.f32.mxu0 0.0
  %2398 = vmatmul.mubr.f32.gmra.mxu0 %v2331
  %v2399 = vpop.f32.mrf.mxu0
  %v2400 = vadd.f32 %v2319, %v2399
  %v2401 = vpop.f32.mrf.mxu0
  %2402 = vdwg.mxu0
  %v2403 = vxor.u32 %v2400, 2147483648
  %v2404 = vmul.f32 %v2403, 1.442695
  %v2405 = vpow.pop %v2404
  %v2406 = vadd.f32 %v2405, 1.0
  %v2407 = vrcp.pop %v2406
  %v2408 = vmul.f32 1.0, %v2407
  %v2409 = vtanh.pop %v2400
  %v2410 = vmul.f32 %v2408, 0.0
  %2412 = vrot.lane.b32.xlu0 %v2409, 32
  %v2413 = vpop.permute.xlu0 %2412
  %v2415 = vmul.f32 %v2408, %v2413
  %2417 = vrot.lane.b32.xlu0 %v2415, 32
  %v2418 = vpop.permute.xlu0 %2417
  %v2420 = vadd.f32 %v2410, %v2418
  %v2421 = vtanh.pop %v2420
  %2423 = vrot.lane.b32.xlu0 %v2421, 32
  %v2424 = vpop.permute.xlu0 %2423
  %v2426 = vmul.f32 %v2408, %v2424
  %2428 = vrot.lane.b32.xlu0 %v2099, 96
  %v2429 = vpop.permute.xlu0 %2428
  %v2431 = vsel %vm694, %v1094, %v2429
  %v2432 = vsel %vm2327, %v2431, %v2426
  %v2434 = vsel %vm2329, %v2432, 0
  %2436 = vmatprep.subr.mxu0 0.0
  %2437 = vmatpush1.msra.mxu0 0.0
  %2438 = vmatprep.subr.mxu0 0.0
  %2439 = vmatpush1.msra.mxu0 0.0
  %2440 = vmatprep.subr.mxu0 0.0
  %2441 = vmatpush1.msra.mxu0 0.0
  %2442 = vmatprep.subr.mxu0 0.0
  %2443 = vmatpush1.msra.mxu0 0.0
  %2444 = vmatprep.subr.mxu0 0.0
  %2445 = vmatpush1.msra.mxu0 %v2313
  %2446 = vmatprep.subr.mxu0 0.0
  %2447 = vmatpush1.msra.mxu0 %v2312
  %2448 = vmatprep.subr.mxu0 0.0
  %2449 = vmatpush1.msra.mxu0 %v2311
  %2450 = vmatprep.subr.mxu0 0.0
  %2451 = vmatpush1.msra.mxu0 %v2310
  %2452 = vmatprep.subr.mxu0 0.0
  %2453 = vmatpush1.msra.mxu0 %v2309
  %2454 = vmatprep.subr.mxu0 0.0
  %2455 = vmatpush1.msra.mxu0 %v2308
  %2456 = vmatprep.subr.mxu0 0.0
  %2457 = vmatpush1.msra.mxu0 %v2307
  %2458 = vmatprep.subr.mxu0 0.0
  %2459 = vmatpush1.msra.mxu0 %v2306
  %2460 = vmatprep.subr.mxu0 0.0
  %2461 = vmatpush1.msra.mxu0 %v2305
  %2462 = vmatprep.subr.mxu0 0.0
  %2463 = vmatpush1.msra.mxu0 %v2304
  %2464 = vmatprep.subr.mxu0 0.0
  %2465 = vmatpush1.msra.mxu0 %v2303
  %2466 = vmatprep.subr.mxu0 0.0
  %2467 = vmatpush1.msra.mxu0 %v2302
  %2468 = vmatprep.subr.mxu0 0.0
  %2469 = vmatpush2.msra.mxu0 0.0
  %2470 = vmatprep.subr.mxu0 0.0
  %2471 = vmatpush2.msra.mxu0 0.0
  %2472 = vmatprep.subr.mxu0 0.0
  %2473 = vmatpush2.msra.mxu0 0.0
  %2474 = vmatprep.subr.mxu0 0.0
  %2475 = vmatpush2.msra.mxu0 0.0
  %2476 = vmatprep.subr.mxu0 0.0
  %2477 = vmatpush2.msra.mxu0 0.0
  %2478 = vmatprep.subr.mxu0 0.0
  %2479 = vmatpush2.msra.mxu0 0.0
  %2480 = vmatprep.subr.mxu0 0.0
  %2481 = vmatpush2.msra.mxu0 0.0
  %2482 = vmatprep.subr.mxu0 0.0
  %2483 = vmatpush2.msra.mxu0 0.0
  %2484 = vmatprep.subr.mxu0 0.0
  %2485 = vmatpush2.msra.mxu0 0.0
  %2486 = vmatprep.subr.mxu0 0.0
  %2487 = vmatpush2.msra.mxu0 0.0
  %2488 = vmatprep.subr.mxu0 0.0
  %2489 = vmatpush2.msra.mxu0 0.0
  %2490 = vmatprep.subr.mxu0 0.0
  %2491 = vmatpush2.msra.mxu0 0.0
  %2492 = vmatprep.subr.mxu0 0.0
  %2493 = vmatpush2.msra.mxu0 0.0
  %2494 = vmatprep.subr.mxu0 0.0
  %2495 = vmatpush2.msra.mxu0 0.0
  %2496 = vmatprep.subr.mxu0 0.0
  %2497 = vmatpush2.msra.mxu0 0.0
  %2498 = vmatprep.subr.mxu0 0.0
  %2499 = vmatpush2.msra.mxu0 0.0
  %2500 = vmatprep.mubr.f32.mxu0 0.0
  %2501 = vmatmul.mubr.f32.gmra.mxu0 %v2434
  %v2502 = vpop.f32.mrf.mxu0
  %v2503 = vadd.f32 %v2319, %v2502
  %v2504 = vpop.f32.mrf.mxu0
  %2505 = vdwg.mxu0
  %v2506 = vxor.u32 %v2503, 2147483648
  %v2507 = vmul.f32 %v2506, 1.442695
  %v2508 = vpow.pop %v2507
  %v2509 = vadd.f32 %v2508, 1.0
  %v2510 = vrcp.pop %v2509
  %v2511 = vmul.f32 1.0, %v2510
  %v2512 = vtanh.pop %v2503
  %v2513 = vmul.f32 %v2511, %v2420
  %2515 = vrot.lane.b32.xlu0 %v2512, 32
  %v2516 = vpop.permute.xlu0 %2515
  %v2518 = vmul.f32 %v2511, %v2516
  %2520 = vrot.lane.b32.xlu0 %v2518, 32
  %v2521 = vpop.permute.xlu0 %2520
  %v2523 = vadd.f32 %v2513, %v2521
  %v2524 = vtanh.pop %v2523
  %2526 = vrot.lane.b32.xlu0 %v2524, 32
  %v2527 = vpop.permute.xlu0 %2526
  %v2529 = vmul.f32 %v2511, %v2527
  %2531 = vrot.lane.b32.xlu0 %v1897, 96
  %v2532 = vpop.permute.xlu0 %2531
  %v2534 = vsel %vm694, %v1296, %v2532
  %v2535 = vsel %vm2327, %v2534, %v2529
  %v2537 = vsel %vm2329, %v2535, 0
  %2539 = vmatprep.subr.mxu0 0.0
  %2540 = vmatpush1.msra.mxu0 0.0
  %2541 = vmatprep.subr.mxu0 0.0
  %2542 = vmatpush1.msra.mxu0 0.0
  %2543 = vmatprep.subr.mxu0 0.0
  %2544 = vmatpush1.msra.mxu0 0.0
  %2545 = vmatprep.subr.mxu0 0.0
  %2546 = vmatpush1.msra.mxu0 0.0
  %2547 = vmatprep.subr.mxu0 0.0
  %2548 = vmatpush1.msra.mxu0 %v2313
  %2549 = vmatprep.subr.mxu0 0.0
  %2550 = vmatpush1.msra.mxu0 %v2312
  %2551 = vmatprep.subr.mxu0 0.0
  %2552 = vmatpush1.msra.mxu0 %v2311
  %2553 = vmatprep.subr.mxu0 0.0
  %2554 = vmatpush1.msra.mxu0 %v2310
  %2555 = vmatprep.subr.mxu0 0.0
  %2556 = vmatpush1.msra.mxu0 %v2309
  %2557 = vmatprep.subr.mxu0 0.0
  %2558 = vmatpush1.msra.mxu0 %v2308
  %2559 = vmatprep.subr.mxu0 0.0
  %2560 = vmatpush1.msra.mxu0 %v2307
  %2561 = vmatprep.subr.mxu0 0.0
  %2562 = vmatpush1.msra.mxu0 %v2306
  %2563 = vmatprep.subr.mxu0 0.0
  %2564 = vmatpush1.msra.mxu0 %v2305
  %2565 = vmatprep.subr.mxu0 0.0
  %2566 = vmatpush1.msra.mxu0 %v2304
  %2567 = vmatprep.subr.mxu0 0.0
  %2568 = vmatpush1.msra.mxu0 %v2303
  %2569 = vmatprep.subr.mxu0 0.0
  %2570 = vmatpush1.msra.mxu0 %v2302
  %2571 = vmatprep.subr.mxu0 0.0
  %2572 = vmatpush2.msra.mxu0 0.0
  %2573 = vmatprep.subr.mxu0 0.0
  %2574 = vmatpush2.msra.mxu0 0.0
  %2575 = vmatprep.subr.mxu0 0.0
  %2576 = vmatpush2.msra.mxu0 0.0
  %2577 = vmatprep.subr.mxu0 0.0
  %2578 = vmatpush2.msra.mxu0 0.0
  %2579 = vmatprep.subr.mxu0 0.0
  %2580 = vmatpush2.msra.mxu0 0.0
  %2581 = vmatprep.subr.mxu0 0.0
  %2582 = vmatpush2.msra.mxu0 0.0
  %2583 = vmatprep.subr.mxu0 0.0
  %2584 = vmatpush2.msra.mxu0 0.0
  %2585 = vmatprep.subr.mxu0 0.0
  %2586 = vmatpush2.msra.mxu0 0.0
  %2587 = vmatprep.subr.mxu0 0.0
  %2588 = vmatpush2.msra.mxu0 0.0
  %2589 = vmatprep.subr.mxu0 0.0
  %2590 = vmatpush2.msra.mxu0 0.0
  %2591 = vmatprep.subr.mxu0 0.0
  %2592 = vmatpush2.msra.mxu0 0.0
  %2593 = vmatprep.subr.mxu0 0.0
  %2594 = vmatpush2.msra.mxu0 0.0
  %2595 = vmatprep.subr.mxu0 0.0
  %2596 = vmatpush2.msra.mxu0 0.0
  %2597 = vmatprep.subr.mxu0 0.0
  %2598 = vmatpush2.msra.mxu0 0.0
  %2599 = vmatprep.subr.mxu0 0.0
  %2600 = vmatpush2.msra.mxu0 0.0
  %2601 = vmatprep.subr.mxu0 0.0
  %2602 = vmatpush2.msra.mxu0 0.0
  %2603 = vmatprep.mubr.f32.mxu0 0.0
  %2604 = vmatmul.mubr.f32.gmra.mxu0 %v2537
  %v2605 = vpop.f32.mrf.mxu0
  %v2606 = vadd.f32 %v2319, %v2605
  %v2607 = vpop.f32.mrf.mxu0
  %2608 = vdwg.mxu0
  %v2609 = vxor.u32 %v2606, 2147483648
  %v2610 = vmul.f32 %v2609, 1.442695
  %v2611 = vpow.pop %v2610
  %v2612 = vadd.f32 %v2611, 1.0
  %v2613 = vrcp.pop %v2612
  %v2614 = vmul.f32 1.0, %v2613
  %v2615 = vtanh.pop %v2606
  %v2616 = vmul.f32 %v2614, %v2523
  %2618 = vrot.lane.b32.xlu0 %v2615, 32
  %v2619 = vpop.permute.xlu0 %2618
  %v2621 = vmul.f32 %v2614, %v2619
  %2623 = vrot.lane.b32.xlu0 %v2621, 32
  %v2624 = vpop.permute.xlu0 %2623
  %v2626 = vadd.f32 %v2616, %v2624
  %v2627 = vtanh.pop %v2626
  %2629 = vrot.lane.b32.xlu0 %v2627, 32
  %v2630 = vpop.permute.xlu0 %2629
  %v2632 = vmul.f32 %v2614, %v2630
  %2634 = vrot.lane.b32.xlu0 %v1695, 96
  %v2635 = vpop.permute.xlu0 %2634
  %v2637 = vsel %vm694, %v1498, %v2635
  %v2638 = vsel %vm2327, %v2637, %v2632
  %v2640 = vsel %vm2329, %v2638, 0
  %2642 = vmatprep.subr.mxu0 0.0
  %2643 = vmatpush1.msra.mxu0 0.0
  %2644 = vmatprep.subr.mxu0 0.0
  %2645 = vmatpush1.msra.mxu0 0.0
  %2646 = vmatprep.subr.mxu0 0.0
  %2647 = vmatpush1.msra.mxu0 0.0
  %2648 = vmatprep.subr.mxu0 0.0
  %2649 = vmatpush1.msra.mxu0 0.0
  %2650 = vmatprep.subr.mxu0 0.0
  %2651 = vmatpush1.msra.mxu0 %v2313
  %2652 = vmatprep.subr.mxu0 0.0
  %2653 = vmatpush1.msra.mxu0 %v2312
  %2654 = vmatprep.subr.mxu0 0.0
  %2655 = vmatpush1.msra.mxu0 %v2311
  %2656 = vmatprep.subr.mxu0 0.0
  %2657 = vmatpush1.msra.mxu0 %v2310
  %2658 = vmatprep.subr.mxu0 0.0
  %2659 = vmatpush1.msra.mxu0 %v2309
  %2660 = vmatprep.subr.mxu0 0.0
  %2661 = vmatpush1.msra.mxu0 %v2308
  %2662 = vmatprep.subr.mxu0 0.0
  %2663 = vmatpush1.msra.mxu0 %v2307
  %2664 = vmatprep.subr.mxu0 0.0
  %2665 = vmatpush1.msra.mxu0 %v2306
  %2666 = vmatprep.subr.mxu0 0.0
  %2667 = vmatpush1.msra.mxu0 %v2305
  %2668 = vmatprep.subr.mxu0 0.0
  %2669 = vmatpush1.msra.mxu0 %v2304
  %2670 = vmatprep.subr.mxu0 0.0
  %2671 = vmatpush1.msra.mxu0 %v2303
  %2672 = vmatprep.subr.mxu0 0.0
  %2673 = vmatpush1.msra.mxu0 %v2302
  %2674 = vmatprep.subr.mxu0 0.0
  %2675 = vmatpush2.msra.mxu0 0.0
  %2676 = vmatprep.subr.mxu0 0.0
  %2677 = vmatpush2.msra.mxu0 0.0
  %2678 = vmatprep.subr.mxu0 0.0
  %2679 = vmatpush2.msra.mxu0 0.0
  %2680 = vmatprep.subr.mxu0 0.0
  %2681 = vmatpush2.msra.mxu0 0.0
  %2682 = vmatprep.subr.mxu0 0.0
  %2683 = vmatpush2.msra.mxu0 0.0
  %2684 = vmatprep.subr.mxu0 0.0
  %2685 = vmatpush2.msra.mxu0 0.0
  %2686 = vmatprep.subr.mxu0 0.0
  %2687 = vmatpush2.msra.mxu0 0.0
  %2688 = vmatprep.subr.mxu0 0.0
  %2689 = vmatpush2.msra.mxu0 0.0
  %2690 = vmatprep.subr.mxu0 0.0
  %2691 = vmatpush2.msra.mxu0 0.0
  %2692 = vmatprep.subr.mxu0 0.0
  %2693 = vmatpush2.msra.mxu0 0.0
  %2694 = vmatprep.subr.mxu0 0.0
  %2695 = vmatpush2.msra.mxu0 0.0
  %2696 = vmatprep.subr.mxu0 0.0
  %2697 = vmatpush2.msra.mxu0 0.0
  %2698 = vmatprep.subr.mxu0 0.0
  %2699 = vmatpush2.msra.mxu0 0.0
  %2700 = vmatprep.subr.mxu0 0.0
  %2701 = vmatpush2.msra.mxu0 0.0
  %2702 = vmatprep.subr.mxu0 0.0
  %2703 = vmatpush2.msra.mxu0 0.0
  %2704 = vmatprep.subr.mxu0 0.0
  %2705 = vmatpush2.msra.mxu0 0.0
  %2706 = vmatprep.mubr.f32.mxu0 0.0
  %2707 = vmatmul.mubr.f32.gmra.mxu0 %v2640
  %v2708 = vpop.f32.mrf.mxu0
  %v2709 = vadd.f32 %v2319, %v2708
  %v2710 = vpop.f32.mrf.mxu0
  %2711 = vdwg.mxu0
  %v2712 = vxor.u32 %v2709, 2147483648
  %v2713 = vmul.f32 %v2712, 1.442695
  %v2714 = vpow.pop %v2713
  %v2715 = vadd.f32 %v2714, 1.0
  %v2716 = vrcp.pop %v2715
  %v2717 = vmul.f32 1.0, %v2716
  %v2718 = vtanh.pop %v2709
  %v2719 = vmul.f32 %v2717, %v2626
  %2721 = vrot.lane.b32.xlu0 %v2718, 32
  %v2722 = vpop.permute.xlu0 %2721
  %v2724 = vmul.f32 %v2717, %v2722
  %2726 = vrot.lane.b32.xlu0 %v2724, 32
  %v2727 = vpop.permute.xlu0 %2726
  %v2729 = vadd.f32 %v2719, %v2727
  %v2730 = vtanh.pop %v2729
  %2732 = vrot.lane.b32.xlu0 %v2730, 32
  %v2733 = vpop.permute.xlu0 %2732
  %v2735 = vmul.f32 %v2717, %v2733
  %2737 = vrot.lane.b32.xlu0 %v1493, 96
  %v2738 = vpop.permute.xlu0 %2737
  %v2740 = vsel %vm694, %v1700, %v2738
  %v2741 = vsel %vm2327, %v2740, %v2735
  %v2743 = vsel %vm2329, %v2741, 0
  %2745 = vmatprep.subr.mxu0 0.0
  %2746 = vmatpush1.msra.mxu0 0.0
  %2747 = vmatprep.subr.mxu0 0.0
  %2748 = vmatpush1.msra.mxu0 0.0
  %2749 = vmatprep.subr.mxu0 0.0
  %2750 = vmatpush1.msra.mxu0 0.0
  %2751 = vmatprep.subr.mxu0 0.0
  %2752 = vmatpush1.msra.mxu0 0.0
  %2753 = vmatprep.subr.mxu0 0.0
  %2754 = vmatpush1.msra.mxu0 %v2313
  %2755 = vmatprep.subr.mxu0 0.0
  %2756 = vmatpush1.msra.mxu0 %v2312
  %2757 = vmatprep.subr.mxu0 0.0
  %2758 = vmatpush1.msra.mxu0 %v2311
  %2759 = vmatprep.subr.mxu0 0.0
  %2760 = vmatpush1.msra.mxu0 %v2310
  %2761 = vmatprep.subr.mxu0 0.0
  %2762 = vmatpush1.msra.mxu0 %v2309
  %2763 = vmatprep.subr.mxu0 0.0
  %2764 = vmatpush1.msra.mxu0 %v2308
  %2765 = vmatprep.subr.mxu0 0.0
  %2766 = vmatpush1.msra.mxu0 %v2307
  %2767 = vmatprep.subr.mxu0 0.0
  %2768 = vmatpush1.msra.mxu0 %v2306
  %2769 = vmatprep.subr.mxu0 0.0
  %2770 = vmatpush1.msra.mxu0 %v2305
  %2771 = vmatprep.subr.mxu0 0.0
  %2772 = vmatpush1.msra.mxu0 %v2304
  %2773 = vmatprep.subr.mxu0 0.0
  %2774 = vmatpush1.msra.mxu0 %v2303
  %2775 = vmatprep.subr.mxu0 0.0
  %2776 = vmatpush1.msra.mxu0 %v2302
  %2777 = vmatprep.subr.mxu0 0.0
  %2778 = vmatpush2.msra.mxu0 0.0
  %2779 = vmatprep.subr.mxu0 0.0
  %2780 = vmatpush2.msra.mxu0 0.0
  %2781 = vmatprep.subr.mxu0 0.0
  %2782 = vmatpush2.msra.mxu0 0.0
  %2783 = vmatprep.subr.mxu0 0.0
  %2784 = vmatpush2.msra.mxu0 0.0
  %2785 = vmatprep.subr.mxu0 0.0
  %2786 = vmatpush2.msra.mxu0 0.0
  %2787 = vmatprep.subr.mxu0 0.0
  %2788 = vmatpush2.msra.mxu0 0.0
  %2789 = vmatprep.subr.mxu0 0.0
  %2790 = vmatpush2.msra.mxu0 0.0
  %2791 = vmatprep.subr.mxu0 0.0
  %2792 = vmatpush2.msra.mxu0 0.0
  %2793 = vmatprep.subr.mxu0 0.0
  %2794 = vmatpush2.msra.mxu0 0.0
  %2795 = vmatprep.subr.mxu0 0.0
  %2796 = vmatpush2.msra.mxu0 0.0
  %2797 = vmatprep.subr.mxu0 0.0
  %2798 = vmatpush2.msra.mxu0 0.0
  %2799 = vmatprep.subr.mxu0 0.0
  %2800 = vmatpush2.msra.mxu0 0.0
  %2801 = vmatprep.subr.mxu0 0.0
  %2802 = vmatpush2.msra.mxu0 0.0
  %2803 = vmatprep.subr.mxu0 0.0
  %2804 = vmatpush2.msra.mxu0 0.0
  %2805 = vmatprep.subr.mxu0 0.0
  %2806 = vmatpush2.msra.mxu0 0.0
  %2807 = vmatprep.subr.mxu0 0.0
  %2808 = vmatpush2.msra.mxu0 0.0
  %2809 = vmatprep.mubr.f32.mxu0 0.0
  %2810 = vmatmul.mubr.f32.gmra.mxu0 %v2743
  %v2811 = vpop.f32.mrf.mxu0
  %v2812 = vadd.f32 %v2319, %v2811
  %v2813 = vpop.f32.mrf.mxu0
  %2814 = vdwg.mxu0
  %v2815 = vxor.u32 %v2812, 2147483648
  %v2816 = vmul.f32 %v2815, 1.442695
  %v2817 = vpow.pop %v2816
  %v2818 = vadd.f32 %v2817, 1.0
  %v2819 = vrcp.pop %v2818
  %v2820 = vmul.f32 1.0, %v2819
  %v2821 = vtanh.pop %v2812
  %v2822 = vmul.f32 %v2820, %v2729
  %2824 = vrot.lane.b32.xlu0 %v2821, 32
  %v2825 = vpop.permute.xlu0 %2824
  %v2827 = vmul.f32 %v2820, %v2825
  %2829 = vrot.lane.b32.xlu0 %v2827, 32
  %v2830 = vpop.permute.xlu0 %2829
  %v2832 = vadd.f32 %v2822, %v2830
  %v2833 = vtanh.pop %v2832
  %2835 = vrot.lane.b32.xlu0 %v2833, 32
  %v2836 = vpop.permute.xlu0 %2835
  %v2838 = vmul.f32 %v2820, %v2836
  %2840 = vrot.lane.b32.xlu0 %v1291, 96
  %v2841 = vpop.permute.xlu0 %2840
  %v2843 = vsel %vm694, %v1902, %v2841
  %v2844 = vsel %vm2327, %v2843, %v2838
  %v2846 = vsel %vm2329, %v2844, 0
  %2848 = vmatprep.subr.mxu0 0.0
  %2849 = vmatpush1.msra.mxu0 0.0
  %2850 = vmatprep.subr.mxu0 0.0
  %2851 = vmatpush1.msra.mxu0 0.0
  %2852 = vmatprep.subr.mxu0 0.0
  %2853 = vmatpush1.msra.mxu0 0.0
  %2854 = vmatprep.subr.mxu0 0.0
  %2855 = vmatpush1.msra.mxu0 0.0
  %2856 = vmatprep.subr.mxu0 0.0
  %2857 = vmatpush1.msra.mxu0 %v2313
  %2858 = vmatprep.subr.mxu0 0.0
  %2859 = vmatpush1.msra.mxu0 %v2312
  %2860 = vmatprep.subr.mxu0 0.0
  %2861 = vmatpush1.msra.mxu0 %v2311
  %2862 = vmatprep.subr.mxu0 0.0
  %2863 = vmatpush1.msra.mxu0 %v2310
  %2864 = vmatprep.subr.mxu0 0.0
  %2865 = vmatpush1.msra.mxu0 %v2309
  %2866 = vmatprep.subr.mxu0 0.0
  %2867 = vmatpush1.msra.mxu0 %v2308
  %2868 = vmatprep.subr.mxu0 0.0
  %2869 = vmatpush1.msra.mxu0 %v2307
  %2870 = vmatprep.subr.mxu0 0.0
  %2871 = vmatpush1.msra.mxu0 %v2306
  %2872 = vmatprep.subr.mxu0 0.0
  %2873 = vmatpush1.msra.mxu0 %v2305
  %2874 = vmatprep.subr.mxu0 0.0
  %2875 = vmatpush1.msra.mxu0 %v2304
  %2876 = vmatprep.subr.mxu0 0.0
  %2877 = vmatpush1.msra.mxu0 %v2303
  %2878 = vmatprep.subr.mxu0 0.0
  %2879 = vmatpush1.msra.mxu0 %v2302
  %2880 = vmatprep.subr.mxu0 0.0
  %2881 = vmatpush2.msra.mxu0 0.0
  %2882 = vmatprep.subr.mxu0 0.0
  %2883 = vmatpush2.msra.mxu0 0.0
  %2884 = vmatprep.subr.mxu0 0.0
  %2885 = vmatpush2.msra.mxu0 0.0
  %2886 = vmatprep.subr.mxu0 0.0
  %2887 = vmatpush2.msra.mxu0 0.0
  %2888 = vmatprep.subr.mxu0 0.0
  %2889 = vmatpush2.msra.mxu0 0.0
  %2890 = vmatprep.subr.mxu0 0.0
  %2891 = vmatpush2.msra.mxu0 0.0
  %2892 = vmatprep.subr.mxu0 0.0
  %2893 = vmatpush2.msra.mxu0 0.0
  %2894 = vmatprep.subr.mxu0 0.0
  %2895 = vmatpush2.msra.mxu0 0.0
  %2896 = vmatprep.subr.mxu0 0.0
  %2897 = vmatpush2.msra.mxu0 0.0
  %2898 = vmatprep.subr.mxu0 0.0
  %2899 = vmatpush2.msra.mxu0 0.0
  %2900 = vmatprep.subr.mxu0 0.0
  %2901 = vmatpush2.msra.mxu0 0.0
  %2902 = vmatprep.subr.mxu0 0.0
  %2903 = vmatpush2.msra.mxu0 0.0
  %2904 = vmatprep.subr.mxu0 0.0
  %2905 = vmatpush2.msra.mxu0 0.0
  %2906 = vmatprep.subr.mxu0 0.0
  %2907 = vmatpush2.msra.mxu0 0.0
  %2908 = vmatprep.subr.mxu0 0.0
  %2909 = vmatpush2.msra.mxu0 0.0
  %2910 = vmatprep.subr.mxu0 0.0
  %2911 = vmatpush2.msra.mxu0 0.0
  %2912 = vmatprep.mubr.f32.mxu0 0.0
  %2913 = vmatmul.mubr.f32.gmra.mxu0 %v2846
  %v2914 = vpop.f32.mrf.mxu0
  %v2915 = vadd.f32 %v2319, %v2914
  %v2916 = vpop.f32.mrf.mxu0
  %2917 = vdwg.mxu0
  %v2918 = vxor.u32 %v2915, 2147483648
  %v2919 = vmul.f32 %v2918, 1.442695
  %v2920 = vpow.pop %v2919
  %v2921 = vadd.f32 %v2920, 1.0
  %v2922 = vrcp.pop %v2921
  %v2923 = vmul.f32 1.0, %v2922
  %v2924 = vtanh.pop %v2915
  %v2925 = vmul.f32 %v2923, %v2832
  %2927 = vrot.lane.b32.xlu0 %v2924, 32
  %v2928 = vpop.permute.xlu0 %2927
  %v2930 = vmul.f32 %v2923, %v2928
  %2932 = vrot.lane.b32.xlu0 %v2930, 32
  %v2933 = vpop.permute.xlu0 %2932
  %v2935 = vadd.f32 %v2925, %v2933
  %v2936 = vtanh.pop %v2935
  %2938 = vrot.lane.b32.xlu0 %v2936, 32
  %v2939 = vpop.permute.xlu0 %2938
  %v2941 = vmul.f32 %v2923, %v2939
  %2943 = vrot.lane.b32.xlu0 %v1089, 96
  %v2944 = vpop.permute.xlu0 %2943
  %v2946 = vsel %vm694, %v2104, %v2944
  %v2947 = vsel %vm2327, %v2946, %v2941
  %v2949 = vsel %vm2329, %v2947, 0
  %2951 = vmatprep.subr.mxu0 0.0
  %2952 = vmatpush1.msra.mxu0 0.0
  %2953 = vmatprep.subr.mxu0 0.0
  %2954 = vmatpush1.msra.mxu0 0.0
  %2955 = vmatprep.subr.mxu0 0.0
  %2956 = vmatpush1.msra.mxu0 0.0
  %2957 = vmatprep.subr.mxu0 0.0
  %2958 = vmatpush1.msra.mxu0 0.0
  %2959 = vmatprep.subr.mxu0 0.0
  %2960 = vmatpush1.msra.mxu0 %v2313
  %2961 = vmatprep.subr.mxu0 0.0
  %2962 = vmatpush1.msra.mxu0 %v2312
  %2963 = vmatprep.subr.mxu0 0.0
  %2964 = vmatpush1.msra.mxu0 %v2311
  %2965 = vmatprep.subr.mxu0 0.0
  %2966 = vmatpush1.msra.mxu0 %v2310
  %2967 = vmatprep.subr.mxu0 0.0
  %2968 = vmatpush1.msra.mxu0 %v2309
  %2969 = vmatprep.subr.mxu0 0.0
  %2970 = vmatpush1.msra.mxu0 %v2308
  %2971 = vmatprep.subr.mxu0 0.0
  %2972 = vmatpush1.msra.mxu0 %v2307
  %2973 = vmatprep.subr.mxu0 0.0
  %2974 = vmatpush1.msra.mxu0 %v2306
  %2975 = vmatprep.subr.mxu0 0.0
  %2976 = vmatpush1.msra.mxu0 %v2305
  %2977 = vmatprep.subr.mxu0 0.0
  %2978 = vmatpush1.msra.mxu0 %v2304
  %2979 = vmatprep.subr.mxu0 0.0
  %2980 = vmatpush1.msra.mxu0 %v2303
  %2981 = vmatprep.subr.mxu0 0.0
  %2982 = vmatpush1.msra.mxu0 %v2302
  %2983 = vmatprep.subr.mxu0 0.0
  %2984 = vmatpush2.msra.mxu0 0.0
  %2985 = vmatprep.subr.mxu0 0.0
  %2986 = vmatpush2.msra.mxu0 0.0
  %2987 = vmatprep.subr.mxu0 0.0
  %2988 = vmatpush2.msra.mxu0 0.0
  %2989 = vmatprep.subr.mxu0 0.0
  %2990 = vmatpush2.msra.mxu0 0.0
  %2991 = vmatprep.subr.mxu0 0.0
  %2992 = vmatpush2.msra.mxu0 0.0
  %2993 = vmatprep.subr.mxu0 0.0
  %2994 = vmatpush2.msra.mxu0 0.0
  %2995 = vmatprep.subr.mxu0 0.0
  %2996 = vmatpush2.msra.mxu0 0.0
  %2997 = vmatprep.subr.mxu0 0.0
  %2998 = vmatpush2.msra.mxu0 0.0
  %2999 = vmatprep.subr.mxu0 0.0
  %3000 = vmatpush2.msra.mxu0 0.0
  %3001 = vmatprep.subr.mxu0 0.0
  %3002 = vmatpush2.msra.mxu0 0.0
  %3003 = vmatprep.subr.mxu0 0.0
  %3004 = vmatpush2.msra.mxu0 0.0
  %3005 = vmatprep.subr.mxu0 0.0
  %3006 = vmatpush2.msra.mxu0 0.0
  %3007 = vmatprep.subr.mxu0 0.0
  %3008 = vmatpush2.msra.mxu0 0.0
  %3009 = vmatprep.subr.mxu0 0.0
  %3010 = vmatpush2.msra.mxu0 0.0
  %3011 = vmatprep.subr.mxu0 0.0
  %3012 = vmatpush2.msra.mxu0 0.0
  %3013 = vmatprep.subr.mxu0 0.0
  %3014 = vmatpush2.msra.mxu0 0.0
  %3015 = vmatprep.mubr.f32.mxu0 0.0
  %3016 = vmatmul.mubr.f32.gmra.mxu0 %v2949
  %v3017 = vpop.f32.mrf.mxu0
  %v3018 = vadd.f32 %v2319, %v3017
  %v3019 = vpop.f32.mrf.mxu0
  %3020 = vdwg.mxu0
  %v3021 = vxor.u32 %v3018, 2147483648
  %v3022 = vmul.f32 %v3021, 1.442695
  %v3023 = vpow.pop %v3022
  %v3024 = vadd.f32 %v3023, 1.0
  %v3025 = vrcp.pop %v3024
  %v3026 = vmul.f32 1.0, %v3025
  %v3027 = vtanh.pop %v3018
  %v3028 = vmul.f32 %v3026, %v2935
  %3030 = vrot.lane.b32.xlu0 %v3027, 32
  %v3031 = vpop.permute.xlu0 %3030
  %v3033 = vmul.f32 %v3026, %v3031
  %3035 = vrot.lane.b32.xlu0 %v3033, 32
  %v3036 = vpop.permute.xlu0 %3035
  %v3038 = vadd.f32 %v3028, %v3036
  %v3039 = vtanh.pop %v3038
  %3041 = vrot.lane.b32.xlu0 %v3039, 32
  %v3042 = vpop.permute.xlu0 %3041
  %v3044 = vmul.f32 %v3026, %v3042
  %3046 = vrot.lane.b32.xlu0 %v2277, 64
  %v3047 = vpop.permute.xlu0 %3046
  %3049 = vrot.lane.b32.xlu0 %v887, 96
  %v3050 = vpop.permute.xlu0 %3049
  %v3052 = vsel %vm694, %v3047, %v3050
  %v3053 = vsel %vm2327, %v3052, %v3044
  %v3055 = vsel %vm2329, %v3053, 0
  %3057 = vmatprep.subr.mxu0 0.0
  %3058 = vmatpush1.msra.mxu0 0.0
  %3059 = vmatprep.subr.mxu0 0.0
  %3060 = vmatpush1.msra.mxu0 0.0
  %3061 = vmatprep.subr.mxu0 0.0
  %3062 = vmatpush1.msra.mxu0 0.0
  %3063 = vmatprep.subr.mxu0 0.0
  %3064 = vmatpush1.msra.mxu0 0.0
  %3065 = vmatprep.subr.mxu0 0.0
  %3066 = vmatpush1.msra.mxu0 %v2313
  %3067 = vmatprep.subr.mxu0 0.0
  %3068 = vmatpush1.msra.mxu0 %v2312
  %3069 = vmatprep.subr.mxu0 0.0
  %3070 = vmatpush1.msra.mxu0 %v2311
  %3071 = vmatprep.subr.mxu0 0.0
  %3072 = vmatpush1.msra.mxu0 %v2310
  %3073 = vmatprep.subr.mxu0 0.0
  %3074 = vmatpush1.msra.mxu0 %v2309
  %3075 = vmatprep.subr.mxu0 0.0
  %3076 = vmatpush1.msra.mxu0 %v2308
  %3077 = vmatprep.subr.mxu0 0.0
  %3078 = vmatpush1.msra.mxu0 %v2307
  %3079 = vmatprep.subr.mxu0 0.0
  %3080 = vmatpush1.msra.mxu0 %v2306
  %3081 = vmatprep.subr.mxu0 0.0
  %3082 = vmatpush1.msra.mxu0 %v2305
  %3083 = vmatprep.subr.mxu0 0.0
  %3084 = vmatpush1.msra.mxu0 %v2304
  %3085 = vmatprep.subr.mxu0 0.0
  %3086 = vmatpush1.msra.mxu0 %v2303
  %3087 = vmatprep.subr.mxu0 0.0
  %3088 = vmatpush1.msra.mxu0 %v2302
  %3089 = vmatprep.subr.mxu0 0.0
  %3090 = vmatpush2.msra.mxu0 0.0
  %3091 = vmatprep.subr.mxu0 0.0
  %3092 = vmatpush2.msra.mxu0 0.0
  %3093 = vmatprep.subr.mxu0 0.0
  %3094 = vmatpush2.msra.mxu0 0.0
  %3095 = vmatprep.subr.mxu0 0.0
  %3096 = vmatpush2.msra.mxu0 0.0
  %3097 = vmatprep.subr.mxu0 0.0
  %3098 = vmatpush2.msra.mxu0 0.0
  %3099 = vmatprep.subr.mxu0 0.0
  %3100 = vmatpush2.msra.mxu0 0.0
  %3101 = vmatprep.subr.mxu0 0.0
  %3102 = vmatpush2.msra.mxu0 0.0
  %3103 = vmatprep.subr.mxu0 0.0
  %3104 = vmatpush2.msra.mxu0 0.0
  %3105 = vmatprep.subr.mxu0 0.0
  %3106 = vmatpush2.msra.mxu0 0.0
  %3107 = vmatprep.subr.mxu0 0.0
  %3108 = vmatpush2.msra.mxu0 0.0
  %3109 = vmatprep.subr.mxu0 0.0
  %3110 = vmatpush2.msra.mxu0 0.0
  %3111 = vmatprep.subr.mxu0 0.0
  %3112 = vmatpush2.msra.mxu0 0.0
  %3113 = vmatprep.subr.mxu0 0.0
  %3114 = vmatpush2.msra.mxu0 0.0
  %3115 = vmatprep.subr.mxu0 0.0
  %3116 = vmatpush2.msra.mxu0 0.0
  %3117 = vmatprep.subr.mxu0 0.0
  %3118 = vmatpush2.msra.mxu0 0.0
  %3119 = vmatprep.subr.mxu0 0.0
  %3120 = vmatpush2.msra.mxu0 0.0
  %3121 = vmatprep.mubr.f32.mxu0 0.0
  %3122 = vmatmul.mubr.f32.gmra.mxu0 %v3055
  %v3123 = vpop.f32.mrf.mxu0
  %v3124 = vadd.f32 %v2319, %v3123
  %v3125 = vpop.f32.mrf.mxu0
  %3126 = vdwg.mxu0
  %v3127 = vxor.u32 %v3124, 2147483648
  %v3128 = vmul.f32 %v3127, 1.442695
  %v3129 = vpow.pop %v3128
  %v3130 = vadd.f32 %v3129, 1.0
  %v3131 = vrcp.pop %v3130
  %v3132 = vmul.f32 1.0, %v3131
  %v3133 = vtanh.pop %v3124
  %v3134 = vmul.f32 %v3132, %v3038
  %3136 = vrot.lane.b32.xlu0 %v3133, 32
  %v3137 = vpop.permute.xlu0 %3136
  %v3139 = vmul.f32 %v3132, %v3137
  %3141 = vrot.lane.b32.xlu0 %v3139, 32
  %v3142 = vpop.permute.xlu0 %3141
  %v3144 = vadd.f32 %v3134, %v3142
  %v3145 = vtanh.pop %v3144
  %3147 = vrot.lane.b32.xlu0 %v3145, 32
  %v3148 = vpop.permute.xlu0 %3147
  %v3150 = vmul.f32 %v3132, %v3148
  %v3151 = vld [vmem:[%s7] sm:$0xff]
  %v3152 = vld [vmem:[%s7 + $0x8] sm:$0xff]
  %v3153 = vld [vmem:[%s7 + $0x10] sm:$0xff]
  %v3154 = vld [vmem:[%s7 + $0x18] sm:$0xff]
  %v3155 = vld [vmem:[%s7 + $0x20] sm:$0xff]
  %v3156 = vld [vmem:[%s7 + $0x28] sm:$0xff]
  %v3157 = vld [vmem:[%s7 + $0x30] sm:$0xff]
  %v3158 = vld [vmem:[%s7 + $0x38] sm:$0xff]
  %v3159 = vld [vmem:[%s7 + $0x40] sm:$0xff]
  %v3160 = vld [vmem:[%s7 + $0x48] sm:$0xff]
  %v3161 = vld [vmem:[%s7 + $0x50] sm:$0xff]
  %v3162 = vld [vmem:[%s7 + $0x58] sm:$0xff]
  %v3163 = vld [vmem:[%s8] sm:$0x7]
  %v3165 = vlaneseq
  %v3166 = vshrl.u32 %v3165, 7
  %v3167 = vsub.s32 0, %v3166
  %v3168 = vrot.slane %v3163, %v3167
  %v3169 = vlaneseq
  %v3170 = vshrl.u32 %v3169, 7
  %v3171 = vsub.s32 1, %v3170
  %v3172 = vrot.slane %v3163, %v3171
  %v3173 = vlaneseq
  %v3174 = vshrl.u32 %v3173, 7
  %v3175 = vsub.s32 2, %v3174
  %v3176 = vrot.slane %v3163, %v3175
  %3181 = vrot.lane.b32.xlu0 %v3150, 64
  %v3182 = vpop.permute.xlu0 %3181
  %v3183 = vsel %vm694, %v3182, 0
  %3185 = vmatprep.subr.mxu0 0.0
  %3186 = vmatpush1.msra.mxu0 0.0
  %3187 = vmatprep.subr.mxu0 0.0
  %3188 = vmatpush1.msra.mxu0 0.0
  %3189 = vmatprep.subr.mxu0 0.0
  %3190 = vmatpush1.msra.mxu0 0.0
  %3191 = vmatprep.subr.mxu0 0.0
  %3192 = vmatpush1.msra.mxu0 0.0
  %3193 = vmatprep.subr.mxu0 0.0
  %3194 = vmatpush1.msra.mxu0 0.0
  %3195 = vmatprep.subr.mxu0 0.0
  %3196 = vmatpush1.msra.mxu0 0.0
  %3197 = vmatprep.subr.mxu0 0.0
  %3198 = vmatpush1.msra.mxu0 0.0
  %3199 = vmatprep.subr.mxu0 0.0
  %3200 = vmatpush1.msra.mxu0 0.0
  %3201 = vmatprep.subr.mxu0 0.0
  %3202 = vmatpush1.msra.mxu0 0.0
  %3203 = vmatprep.subr.mxu0 0.0
  %3204 = vmatpush1.msra.mxu0 0.0
  %3205 = vmatprep.subr.mxu0 0.0
  %3206 = vmatpush1.msra.mxu0 0.0
  %3207 = vmatprep.subr.mxu0 0.0
  %3208 = vmatpush1.msra.mxu0 0.0
  %3209 = vmatprep.subr.mxu0 %v3161
  %3210 = vmatpush1.msra.mxu0 %v3160
  %3211 = vmatprep.subr.mxu0 %v3158
  %3212 = vmatpush1.msra.mxu0 %v3157
  %3213 = vmatprep.subr.mxu0 %v3155
  %3214 = vmatpush1.msra.mxu0 %v3154
  %3215 = vmatprep.subr.mxu0 %v3152
  %3216 = vmatpush1.msra.mxu0 %v3151
  %3217 = vmatprep.subr.mxu0 0.0
  %3218 = vmatpush2.msra.mxu0 0.0
  %3219 = vmatprep.subr.mxu0 0.0
  %3220 = vmatpush2.msra.mxu0 0.0
  %3221 = vmatprep.subr.mxu0 0.0
  %3222 = vmatpush2.msra.mxu0 0.0
  %3223 = vmatprep.subr.mxu0 0.0
  %3224 = vmatpush2.msra.mxu0 0.0
  %3225 = vmatprep.subr.mxu0 0.0
  %3226 = vmatpush2.msra.mxu0 0.0
  %3227 = vmatprep.subr.mxu0 0.0
  %3228 = vmatpush2.msra.mxu0 0.0
  %3229 = vmatprep.subr.mxu0 0.0
  %3230 = vmatpush2.msra.mxu0 0.0
  %3231 = vmatprep.subr.mxu0 0.0
  %3232 = vmatpush2.msra.mxu0 0.0
  %3233 = vmatprep.subr.mxu0 0.0
  %3234 = vmatpush2.msra.mxu0 0.0
  %3235 = vmatprep.subr.mxu0 0.0
  %3236 = vmatpush2.msra.mxu0 0.0
  %3237 = vmatprep.subr.mxu0 0.0
  %3238 = vmatpush2.msra.mxu0 0.0
  %3239 = vmatprep.subr.mxu0 0.0
  %3240 = vmatpush2.msra.mxu0 0.0
  %3241 = vmatprep.subr.mxu0 0.0
  %3242 = vmatpush2.msra.mxu0 0.0
  %3243 = vmatprep.subr.mxu0 0.0
  %3244 = vmatpush2.msra.mxu0 0.0
  %3245 = vmatprep.subr.mxu0 0.0
  %3246 = vmatpush2.msra.mxu0 0.0
  %3247 = vmatprep.subr.mxu0 0.0
  %3248 = vmatpush2.msra.mxu0 0.0
  %3249 = vmatprep.mubr.f32.mxu0 0.0
  %3250 = vmatmul.mubr.f32.gmra.mxu0 %v3183
  %v3251 = vpop.f32.mrf.mxu0
  %v3252 = vadd.f32 %v3168, %v3251
  %v3253 = vpop.f32.mrf.mxu0
  %v3254 = vadd.f32 %v3172, %v3253
  %3255 = vdwg.mxu0
  %3256 = vmatprep.subr.mxu0 0.0
  %3257 = vmatpush1.msra.mxu0 0.0
  %3258 = vmatprep.subr.mxu0 0.0
  %3259 = vmatpush1.msra.mxu0 0.0
  %3260 = vmatprep.subr.mxu0 0.0
  %3261 = vmatpush1.msra.mxu0 0.0
  %3262 = vmatprep.subr.mxu0 0.0
  %3263 = vmatpush1.msra.mxu0 0.0
  %3264 = vmatprep.subr.mxu0 0.0
  %3265 = vmatpush1.msra.mxu0 0.0
  %3266 = vmatprep.subr.mxu0 0.0
  %3267 = vmatpush1.msra.mxu0 0.0
  %3268 = vmatprep.subr.mxu0 0.0
  %3269 = vmatpush1.msra.mxu0 0.0
  %3270 = vmatprep.subr.mxu0 0.0
  %3271 = vmatpush1.msra.mxu0 0.0
  %3272 = vmatprep.subr.mxu0 0.0
  %3273 = vmatpush1.msra.mxu0 0.0
  %3274 = vmatprep.subr.mxu0 0.0
  %3275 = vmatpush1.msra.mxu0 0.0
  %3276 = vmatprep.subr.mxu0 0.0
  %3277 = vmatpush1.msra.mxu0 0.0
  %3278 = vmatprep.subr.mxu0 0.0
  %3279 = vmatpush1.msra.mxu0 0.0
  %3280 = vmatprep.subr.mxu0 0.0
  %3281 = vmatpush1.msra.mxu0 %v3162
  %3282 = vmatprep.subr.mxu0 0.0
  %3283 = vmatpush1.msra.mxu0 %v3159
  %3284 = vmatprep.subr.mxu0 0.0
  %3285 = vmatpush1.msra.mxu0 %v3156
  %3286 = vmatprep.subr.mxu0 0.0
  %3287 = vmatpush1.msra.mxu0 %v3153
  %3288 = vmatprep.subr.mxu0 0.0
  %3289 = vmatpush2.msra.mxu0 0.0
  %3290 = vmatprep.subr.mxu0 0.0
  %3291 = vmatpush2.msra.mxu0 0.0
  %3292 = vmatprep.subr.mxu0 0.0
  %3293 = vmatpush2.msra.mxu0 0.0
  %3294 = vmatprep.subr.mxu0 0.0
  %3295 = vmatpush2.msra.mxu0 0.0
  %3296 = vmatprep.subr.mxu0 0.0
  %3297 = vmatpush2.msra.mxu0 0.0
  %3298 = vmatprep.subr.mxu0 0.0
  %3299 = vmatpush2.msra.mxu0 0.0
  %3300 = vmatprep.subr.mxu0 0.0
  %3301 = vmatpush2.msra.mxu0 0.0
  %3302 = vmatprep.subr.mxu0 0.0
  %3303 = vmatpush2.msra.mxu0 0.0
  %3304 = vmatprep.subr.mxu0 0.0
  %3305 = vmatpush2.msra.mxu0 0.0
  %3306 = vmatprep.subr.mxu0 0.0
  %3307 = vmatpush2.msra.mxu0 0.0
  %3308 = vmatprep.subr.mxu0 0.0
  %3309 = vmatpush2.msra.mxu0 0.0
  %3310 = vmatprep.subr.mxu0 0.0
  %3311 = vmatpush2.msra.mxu0 0.0
  %3312 = vmatprep.subr.mxu0 0.0
  %3313 = vmatpush2.msra.mxu0 0.0
  %3314 = vmatprep.subr.mxu0 0.0
  %3315 = vmatpush2.msra.mxu0 0.0
  %3316 = vmatprep.subr.mxu0 0.0
  %3317 = vmatpush2.msra.mxu0 0.0
  %3318 = vmatprep.subr.mxu0 0.0
  %3319 = vmatpush2.msra.mxu0 0.0
  %3320 = vmatprep.mubr.f32.mxu0 0.0
  %3321 = vmatmul.mubr.f32.gmra.mxu0 %v3183
  %v3322 = vpop.f32.mrf.mxu0
  %v3323 = vadd.f32 %v3176, %v3322
  %v3324 = vpop.f32.mrf.mxu0
  %3325 = vdwg.mxu0
  %vm3326 = vcmp.gt.f32.partialorder %v3252, 0.0
  %vm3327 = vcmp.gt.f32.partialorder %v3254, 0.0
  %vm3328 = vcmp.gt.f32.partialorder %v3323, 0.0
  %v3329 = vmul.f32 %v3252, 1.442695
  %v3330 = vpow.pop %v3329
  %v3331 = vmul.f32 %v3254, 1.442695
  %v3332 = vpow.pop %v3331
  %v3333 = vmul.f32 %v3323, 1.442695
  %v3334 = vpow.pop %v3333
  %v3335 = vsub.f32 %v3330, 1.0
  %v3336 = vsub.f32 %v3332, 1.0
  %v3337 = vsub.f32 %v3334, 1.0
  %v3338 = vmul.f32 %v3335, 1.6732632
  %v3339 = vmul.f32 %v3336, 1.6732632
  %v3340 = vmul.f32 %v3337, 1.6732632
  %v3341 = vsel %vm3326, %v3252, %v3338
  %v3342 = vsel %vm3327, %v3254, %v3339
  %v3343 = vsel %vm3328, %v3323, %v3340
  %v3344 = vmul.f32 %v3341, 1.050701
  %v3345 = vmul.f32 %v3342, 1.050701
  %v3346 = vmul.f32 %v3343, 1.050701
  %v3347 = vld [vmem:[%s9] sm:$0xff]
  %v3348 = vld [vmem:[%s9 + $0x8] sm:$0xff]
  %v3349 = vld [vmem:[%s9 + $0x10] sm:$0xff]
  %v3350 = vld [vmem:[%s9 + $0x18] sm:$0xff]
  %v3351 = vld [vmem:[%s9 + $0x20] sm:$0xff]
  %v3352 = vld [vmem:[%s9 + $0x28] sm:$0xff]
  %v3353 = vld [vmem:[%s9 + $0x30] sm:$0xff]
  %v3354 = vld [vmem:[%s9 + $0x38] sm:$0xff]
  %v3355 = vld [vmem:[%s9 + $0x40] sm:$0xff]
  %v3356 = vld [vmem:[%s9 + $0x48] sm:$0xff]
  %v3357 = vld [vmem:[%s9 + $0x50] sm:$0xff]
  %v3358 = vld [vmem:[%s9 + $0x58] sm:$0xff]
  %v3359 = vld [vmem:[%s9 + $0x60] sm:$0xff]
  %v3360 = vld [vmem:[%s9 + $0x68] sm:$0xff]
  %v3361 = vld [vmem:[%s9 + $0x70] sm:$0xff]
  %v3362 = vld [vmem:[%s9 + $0x78] sm:$0xff]
  %v3363 = vld [vmem:[%s9 + $0x80] sm:$0xff]
  %v3364 = vld [vmem:[%s9 + $0x88] sm:$0xff]
  %v3365 = vld [vmem:[%s9 + $0x90] sm:$0xff]
  %v3366 = vld [vmem:[%s9 + $0x98] sm:$0xff]
  %v3367 = vld [vmem:[%s9 + $0xa0] sm:$0xff]
  %v3368 = vld [vmem:[%s9 + $0xa8] sm:$0xff]
  %v3369 = vld [vmem:[%s9 + $0xb0] sm:$0xff]
  %v3370 = vld [vmem:[%s9 + $0xb8] sm:$0xff]
  %v3371 = vld [vmem:[%s9 + $0xc0] sm:$0xff]
  %v3372 = vld [vmem:[%s9 + $0xc8] sm:$0xff]
  %v3373 = vld [vmem:[%s9 + $0xd0] sm:$0xff]
  %v3374 = vld [vmem:[%s9 + $0xd8] sm:$0xff]
  %v3375 = vld [vmem:[%s9 + $0xe0] sm:$0xff]
  %v3376 = vld [vmem:[%s9 + $0xe8] sm:$0xff]
  %v3377 = vld [vmem:[%s9 + $0xf0] sm:$0xff]
  %v3378 = vld [vmem:[%s9 + $0xf8] sm:$0xff]
  %v3379 = vld [vmem:[%s9 + $0x100] sm:$0xff]
  %v3380 = vld [vmem:[%s9 + $0x108] sm:$0xff]
  %v3381 = vld [vmem:[%s9 + $0x110] sm:$0xff]
  %v3382 = vld [vmem:[%s9 + $0x118] sm:$0xff]
  %v3383 = vld [vmem:[%s9 + $0x120] sm:$0xff]
  %v3384 = vld [vmem:[%s9 + $0x128] sm:$0xff]
  %v3385 = vld [vmem:[%s9 + $0x130] sm:$0xff]
  %v3386 = vld [vmem:[%s9 + $0x138] sm:$0xff]
  %v3387 = vld [vmem:[%s9 + $0x140] sm:$0xff]
  %v3388 = vld [vmem:[%s9 + $0x148] sm:$0xff]
  %v3389 = vld [vmem:[%s9 + $0x150] sm:$0xff]
  %v3390 = vld [vmem:[%s9 + $0x158] sm:$0xff]
  %v3391 = vld [vmem:[%s9 + $0x160] sm:$0xff]
  %v3392 = vld [vmem:[%s9 + $0x168] sm:$0xff]
  %v3393 = vld [vmem:[%s9 + $0x170] sm:$0xff]
  %v3394 = vld [vmem:[%s9 + $0x178] sm:$0xff]
  %v3395 = vld [vmem:[#allocation3] sm:$0x1]
  %v3397 = vlaneseq
  %v3398 = vshrl.u32 %v3397, 7
  %v3399 = vsub.s32 0, %v3398
  %v3400 = vrot.slane %v3395, %v3399
  %3402 = vmatprep.subr.mxu0 0.0
  %3403 = vmatpush1.msra.mxu0 %v3362
  %3404 = vmatprep.subr.mxu0 0.0
  %3405 = vmatpush1.msra.mxu0 %v3361
  %3406 = vmatprep.subr.mxu0 0.0
  %3407 = vmatpush1.msra.mxu0 %v3360
  %3408 = vmatprep.subr.mxu0 0.0
  %3409 = vmatpush1.msra.mxu0 %v3359
  %3410 = vmatprep.subr.mxu0 0.0
  %3411 = vmatpush1.msra.mxu0 %v3358
  %3412 = vmatprep.subr.mxu0 0.0
  %3413 = vmatpush1.msra.mxu0 %v3357
  %3414 = vmatprep.subr.mxu0 0.0
  %3415 = vmatpush1.msra.mxu0 %v3356
  %3416 = vmatprep.subr.mxu0 0.0
  %3417 = vmatpush1.msra.mxu0 %v3355
  %3418 = vmatprep.subr.mxu0 0.0
  %3419 = vmatpush1.msra.mxu0 %v3354
  %3420 = vmatprep.subr.mxu0 0.0
  %3421 = vmatpush1.msra.mxu0 %v3353
  %3422 = vmatprep.subr.mxu0 0.0
  %3423 = vmatpush1.msra.mxu0 %v3352
  %3424 = vmatprep.subr.mxu0 0.0
  %3425 = vmatpush1.msra.mxu0 %v3351
  %3426 = vmatprep.subr.mxu0 0.0
  %3427 = vmatpush1.msra.mxu0 %v3350
  %3428 = vmatprep.subr.mxu0 0.0
  %3429 = vmatpush1.msra.mxu0 %v3349
  %3430 = vmatprep.subr.mxu0 0.0
  %3431 = vmatpush1.msra.mxu0 %v3348
  %3432 = vmatprep.subr.mxu0 0.0
  %3433 = vmatpush1.msra.mxu0 %v3347
  %3434 = vmatprep.subr.mxu0 0.0
  %3435 = vmatpush2.msra.mxu0 %v3378
  %3436 = vmatprep.subr.mxu0 0.0
  %3437 = vmatpush2.msra.mxu0 %v3377
  %3438 = vmatprep.subr.mxu0 0.0
  %3439 = vmatpush2.msra.mxu0 %v3376
  %3440 = vmatprep.subr.mxu0 0.0
  %3441 = vmatpush2.msra.mxu0 %v3375
  %3442 = vmatprep.subr.mxu0 0.0
  %3443 = vmatpush2.msra.mxu0 %v3374
  %3444 = vmatprep.subr.mxu0 0.0
  %3445 = vmatpush2.msra.mxu0 %v3373
  %3446 = vmatprep.subr.mxu0 0.0
  %3447 = vmatpush2.msra.mxu0 %v3372
  %3448 = vmatprep.subr.mxu0 0.0
  %3449 = vmatpush2.msra.mxu0 %v3371
  %3450 = vmatprep.subr.mxu0 0.0
  %3451 = vmatpush2.msra.mxu0 %v3370
  %3452 = vmatprep.subr.mxu0 0.0
  %3453 = vmatpush2.msra.mxu0 %v3369
  %3454 = vmatprep.subr.mxu0 0.0
  %3455 = vmatpush2.msra.mxu0 %v3368
  %3456 = vmatprep.subr.mxu0 0.0
  %3457 = vmatpush2.msra.mxu0 %v3367
  %3458 = vmatprep.subr.mxu0 0.0
  %3459 = vmatpush2.msra.mxu0 %v3366
  %3460 = vmatprep.subr.mxu0 0.0
  %3461 = vmatpush2.msra.mxu0 %v3365
  %3462 = vmatprep.subr.mxu0 0.0
  %3463 = vmatpush2.msra.mxu0 %v3364
  %3464 = vmatprep.subr.mxu0 0.0
  %3465 = vmatpush2.msra.mxu0 %v3363
  %3466 = vmatprep.mubr.f32.mxu0 %v3345
  %3467 = vmatmul.mubr.f32.gmra.mxu0 %v3344
  %v3468 = vpop.f32.mrf.mxu0
  %v3469 = vadd.f32 %v3400, %v3468
  %v3470 = vpop.f32.mrf.mxu0
  %3471 = vdwg.mxu0
  %3472 = vmatprep.subr.mxu0 0.0
  %3473 = vmatpush1.msra.mxu0 %v3394
  %3474 = vmatprep.subr.mxu0 0.0
  %3475 = vmatpush1.msra.mxu0 %v3393
  %3476 = vmatprep.subr.mxu0 0.0
  %3477 = vmatpush1.msra.mxu0 %v3392
  %3478 = vmatprep.subr.mxu0 0.0
  %3479 = vmatpush1.msra.mxu0 %v3391
  %3480 = vmatprep.subr.mxu0 0.0
  %3481 = vmatpush1.msra.mxu0 %v3390
  %3482 = vmatprep.subr.mxu0 0.0
  %3483 = vmatpush1.msra.mxu0 %v3389
  %3484 = vmatprep.subr.mxu0 0.0
  %3485 = vmatpush1.msra.mxu0 %v3388
  %3486 = vmatprep.subr.mxu0 0.0
  %3487 = vmatpush1.msra.mxu0 %v3387
  %3488 = vmatprep.subr.mxu0 0.0
  %3489 = vmatpush1.msra.mxu0 %v3386
  %3490 = vmatprep.subr.mxu0 0.0
  %3491 = vmatpush1.msra.mxu0 %v3385
  %3492 = vmatprep.subr.mxu0 0.0
  %3493 = vmatpush1.msra.mxu0 %v3384
  %3494 = vmatprep.subr.mxu0 0.0
  %3495 = vmatpush1.msra.mxu0 %v3383
  %3496 = vmatprep.subr.mxu0 0.0
  %3497 = vmatpush1.msra.mxu0 %v3382
  %3498 = vmatprep.subr.mxu0 0.0
  %3499 = vmatpush1.msra.mxu0 %v3381
  %3500 = vmatprep.subr.mxu0 0.0
  %3501 = vmatpush1.msra.mxu0 %v3380
  %3502 = vmatprep.subr.mxu0 0.0
  %3503 = vmatpush1.msra.mxu0 %v3379
  %3504 = vmatprep.subr.mxu0 0.0
  %3505 = vmatpush2.msra.mxu0 0.0
  %3506 = vmatprep.subr.mxu0 0.0
  %3507 = vmatpush2.msra.mxu0 0.0
  %3508 = vmatprep.subr.mxu0 0.0
  %3509 = vmatpush2.msra.mxu0 0.0
  %3510 = vmatprep.subr.mxu0 0.0
  %3511 = vmatpush2.msra.mxu0 0.0
  %3512 = vmatprep.subr.mxu0 0.0
  %3513 = vmatpush2.msra.mxu0 0.0
  %3514 = vmatprep.subr.mxu0 0.0
  %3515 = vmatpush2.msra.mxu0 0.0
  %3516 = vmatprep.subr.mxu0 0.0
  %3517 = vmatpush2.msra.mxu0 0.0
  %3518 = vmatprep.subr.mxu0 0.0
  %3519 = vmatpush2.msra.mxu0 0.0
  %3520 = vmatprep.subr.mxu0 0.0
  %3521 = vmatpush2.msra.mxu0 0.0
  %3522 = vmatprep.subr.mxu0 0.0
  %3523 = vmatpush2.msra.mxu0 0.0
  %3524 = vmatprep.subr.mxu0 0.0
  %3525 = vmatpush2.msra.mxu0 0.0
  %3526 = vmatprep.subr.mxu0 0.0
  %3527 = vmatpush2.msra.mxu0 0.0
  %3528 = vmatprep.subr.mxu0 0.0
  %3529 = vmatpush2.msra.mxu0 0.0
  %3530 = vmatprep.subr.mxu0 0.0
  %3531 = vmatpush2.msra.mxu0 0.0
  %3532 = vmatprep.subr.mxu0 0.0
  %3533 = vmatpush2.msra.mxu0 0.0
  %3534 = vmatprep.subr.mxu0 0.0
  %3535 = vmatpush2.msra.mxu0 0.0
  %3536 = vmatprep.mubr.f32.mxu0 0.0
  %3537 = vmatmul.mubr.f32.gmra.mxu0 %v3346
  %v3538 = vpop.f32.mrf.mxu0
  %v3539 = vadd.f32 %v3469, %v3538
  %v3540 = vpop.f32.mrf.mxu0
  %3541 = vdwg.mxu0
  %v3542 = vxor.u32 %v3539, 2147483648
  %v3543 = vmul.f32 %v3542, 1.442695
  %v3544 = vpow.pop %v3543
  %v3545 = vadd.f32 %v3544, 1.0
  %v3546 = vrcp.pop %v3545
  %v3547 = vmul.f32 1.0, %v3546
  %vm3548 = vcmask 7168
  %3549 = vst.msk [vmem:[%s11] sm:$0xff] %vm3548, %v3547
  // Predicated region
  $region46: #{lstm_model_forward.1} parent=0 // pred_check
    _
  $region47: #{lstm_model_forward.1} parent=0 // pred_check_branch
    %3551 = sbr.rel (0) target = $region49
  $region48: #{lstm_model_forward.1} parent=0 // pred_region
    _
  $region49: #{lstm_model_forward.1} parent=0 // pred_fallthru
    _
  // Predicated region
  $region50: #{lstm_model_forward.1} parent=0 // pred_check
    _
  $region51: #{lstm_model_forward.1} parent=0 // pred_check_branch
    %3553 = sbr.rel (0) target = $region53
  $region52: #{lstm_model_forward.1} parent=0 // pred_region
    _
  $region53: #{lstm_model_forward.1} parent=0 // pred_fallthru
    _

</llo_original>
